<compile_context>
chip_gen: v6e
topology: v6e:2x2x1
jax: 0.10.0
libtpu: 0.0.40
codegen_flags: <defaults>
</compile_context>

<pallas_src>
import functools

import numpy as np

import jax
import jax.numpy as jnp
from jax.experimental import pallas as pl
from jax.experimental.pallas import tpu as pltpu

_BN_EPS = 1e-5


def _round8(n):
    return ((n + 7) // 8) * 8


# ---------------------------------------------------------------------------
# In-kernel helpers (operate on loaded 2-D values: (channels, (H+2)*(W+2)))
# ---------------------------------------------------------------------------
def _tap_matrix(x, offsets):
    """Stack lane-shifted copies of x on the sublane axis.

    Returns pat with pat[t*C + c, q] = x[c, q + offsets[t]] (zero past ends).
    Channel counts are multiples of 8, so every stacked piece is 8-sublane
    aligned.
    """
    C, L = x.shape
    g = max(abs(o) for o in offsets)
    z = jnp.zeros((C, g), x.dtype)
    base = jnp.concatenate([z, x, z], axis=-1)            # (C, L + 2g)
    taps = [base[:, g + o:g + o + L] for o in offsets]
    return jnp.concatenate(taps, axis=0)                  # (len(offsets)*C, L)


def _conv3x3_flat(x, w_flat, wpad):
    """3x3 'same' conv in padded-flat layout as ONE matmul with K = 9*Cin.

    x:      (Cin, L), L = (H+2)*(W+2); border lanes must be zero.
    w_flat: (Cout, 9*Cin), columns ordered (kh, kw, ci).
    Returns the raw (Cout, L) accumulator (border lanes hold garbage; the
    caller re-applies the interior mask).
    """
    offs = [(kh - 1) * wpad + (kw - 1) for kh in range(3) for kw in range(3)]
    pat = _tap_matrix(x, offs)                            # (9*Cin, L)
    return jnp.dot(w_flat, pat, preferred_element_type=jnp.float32)


def _bn_act_mask(acc, scale, bias, mask, act):
    """Folded BN (per-channel scale/bias), activation, re-zero border lanes."""
    y = acc * scale + bias
    if act == "leaky":                                    # LeakyReLU(0.2)
        y = jnp.where(y >= 0.0, y, 0.2 * y)
    elif act == "relu":
        y = jnp.maximum(y, 0.0)
    return y * mask


# ---------------------------------------------------------------------------
# Pallas kernels
# ---------------------------------------------------------------------------
def _enc_kernel(*refs, wpad, do_pool):
    """Fused: conv3x3+BN+LeakyReLU -> conv3x3+BN+LeakyReLU [+ 2x2 max-pool]."""
    if do_pool:
        (x_ref, w1_ref, s1_ref, b1_ref, w2_ref, s2_ref, b2_ref,
         mask_ref, sel_ref, e_ref, pool_ref) = refs
    else:
        (x_ref, w1_ref, s1_ref, b1_ref, w2_ref, s2_ref, b2_ref,
         mask_ref, e_ref) = refs

    x = x_ref[0]                                          # (Cin, L)
    mask = mask_ref[...]                                  # (1, L)
    y1 = _bn_act_mask(_conv3x3_flat(x, w1_ref[...], wpad),
                      s1_ref[...], b1_ref[...], mask, "leaky")
    y2 = _bn_act_mask(_conv3x3_flat(y1, w2_ref[...], wpad),
                      s2_ref[...], b2_ref[...], mask, "leaky")
    e_ref[0] = y2.astype(e_ref.dtype)

    if do_pool:
        # 2x2/stride-2 max pool fused into the epilogue: 2x2 window max via
        # two lane shifts, then compaction + re-padding as one 0/1 matmul.
        m1 = jnp.maximum(y2, _tap_matrix(y2, [1]))
        m2 = jnp.maximum(m1, _tap_matrix(m1, [wpad]))
        pool_ref[0] = jnp.dot(m2, sel_ref[...],
                              preferred_element_type=jnp.float32
                              ).astype(pool_ref.dtype)


def _dec_kernel(e_ref, s_ref, w1e_ref, w1s_ref, s1_ref, b1_ref,
                w2_ref, s2_ref, b2_ref, mask_ref, o_ref, *, wpad):
    """Fused: conv3x3(concat via split contraction)+BN+ReLU -> conv3x3+BN+ReLU."""
    e = e_ref[0]
    sb = s_ref[0]
    mask = mask_ref[...]
    acc1 = (_conv3x3_flat(e, w1e_ref[...], wpad)
            + _conv3x3_flat(sb, w1s_ref[...], wpad))      # no HBM concat
    y1 = _bn_act_mask(acc1, s1_ref[...], b1_ref[...], mask, "relu")
    acc2 = _conv3x3_flat(y1, w2_ref[...], wpad)
    o_ref[0] = _bn_act_mask(acc2, s2_ref[...], b2_ref[...], mask,
                            "relu").astype(o_ref.dtype)


def _upconv_kernel(x_ref, wph_ref, b_ref, place_ref, mask_ref, o_ref, *, wpad):
    """ConvTranspose2d(k=4, s=2, p=1) via the 4-phase (2x2-tap) decomposition."""
    x = x_ref[0]                                          # (Cin, l)
    phase_outs = []
    for r in range(2):
        for s in range(2):
            offs = [dh * wpad + dw for dh in (r - 1, r) for dw in (s - 1, s)]
            pat = _tap_matrix(x, offs)                    # (4*Cin, l)
            phase_outs.append(jnp.dot(wph_ref[2 * r + s], pat,
                                      preferred_element_type=jnp.float32))
    ycat = jnp.concatenate(phase_outs, axis=-1)           # (Cout, 4*l)
    # interleave the 4 phases into the padded-flat (2H, 2W) output grid
    o = jnp.dot(ycat, place_ref[...], preferred_element_type=jnp.float32)
    o = (o + b_ref[...]) * mask_ref[...]
    o_ref[0] = o.astype(o_ref.dtype)


# ---------------------------------------------------------------------------
# BlockSpec helpers + host-side spatial constants
# ---------------------------------------------------------------------------
def _full_spec(arr):
    nd = arr.ndim
    return pl.BlockSpec(arr.shape, lambda n: (0,) * nd)


def _batch_spec(shape):
    rest = len(shape) - 1
    return pl.BlockSpec((1,) + tuple(shape[1:]),
                        lambda n: (n,) + (0,) * rest)


@functools.lru_cache(maxsize=None)
def _interior_mask(H, W):
    Hp, Wp = H + 2, W + 2
    m = np.zeros((Hp, Wp), np.float32)
    m[1:-1, 1:-1] = 1.0
    return jnp.asarray(m.reshape(1, Hp * Wp))


@functools.lru_cache(maxsize=None)
def _pool_select_matrix(H, W):
    """0/1 matrix: padded-flat HxW grid -> padded-flat (H/2)x(W/2) grid."""
    Hp, Wp = H + 2, W + 2
    H2, W2 = H // 2, W // 2
    Hp2, Wp2 = H2 + 2, W2 + 2
    S = np.zeros((Hp * Wp, Hp2 * Wp2), np.float32)
    for i in range(H2):
        for j in range(W2):
            S[(2 * i + 1) * Wp + (2 * j + 1), (i + 1) * Wp2 + (j + 1)] = 1.0
    return jnp.asarray(S)


@functools.lru_cache(maxsize=None)
def _upsample_place_matrix(h, w):
    """0/1 matrix interleaving the 4 phase outputs into the 2h x 2w grid."""
    hp, wp = h + 2, w + 2
    Hp, Wp = 2 * h + 2, 2 * w + 2
    P = np.zeros((4 * hp * wp, Hp * Wp), np.float32)
    for r in range(2):
        for s in range(2):
            base = (2 * r + s) * hp * wp
            for a in range(h):
                for b in range(w):
                    P[base + (a + 1) * wp + (b + 1),
                      (2 * a + r + 1) * Wp + (2 * b + s + 1)] = 1.0
    return jnp.asarray(P)


# ---------------------------------------------------------------------------
# pallas_call wrappers
# ---------------------------------------------------------------------------
_CPARAMS = pltpu.CompilerParams(dimension_semantics=("parallel",))


def enc_forward(x_flat, p1, p2, H, W, *, do_pool):
    N, _, L = x_flat.shape
    w1, s1, b1 = p1
    w2, s2, b2 = p2
    C = w1.shape[0]
    mask = _interior_mask(H, W)
    inputs = [x_flat, w1, s1, b1, w2, s2, b2, mask]
    in_specs = [_batch_spec(x_flat.shape)] + [_full_spec(a) for a in inputs[1:]]

    if do_pool:
        sel = _pool_select_matrix(H, W)
        L2 = (H // 2 + 2) * (W // 2 + 2)
        return pl.pallas_call(
            functools.partial(_enc_kernel, wpad=W + 2, do_pool=True),
            out_shape=(jax.ShapeDtypeStruct((N, C, L), jnp.float32),
                       jax.ShapeDtypeStruct((N, C, L2), jnp.float32)),
            grid=(N,),
            in_specs=in_specs + [_full_spec(sel)],
            out_specs=(_batch_spec((N, C, L)), _batch_spec((N, C, L2))),
            compiler_params=_CPARAMS,
        )(*(inputs + [sel]))

    return pl.pallas_call(
        functools.partial(_enc_kernel, wpad=W + 2, do_pool=False),
        out_shape=jax.ShapeDtypeStruct((N, C, L), jnp.float32),
        grid=(N,),
        in_specs=in_specs,
        out_specs=_batch_spec((N, C, L)),
        compiler_params=_CPARAMS,
    )(*inputs)


def dec_forward(e, sub, p1, p2, H, W):
    N, C, L = e.shape
    w1e, w1s, s1, b1 = p1
    w2, s2, b2 = p2
    mask = _interior_mask(H, W)
    inputs = [e, sub, w1e, w1s, s1, b1, w2, s2, b2, mask]
    in_specs = ([_batch_spec(e.shape), _batch_spec(sub.shape)]
                + [_full_spec(a) for a in inputs[2:]])
    return pl.pallas_call(
        functools.partial(_dec_kernel, wpad=W + 2),
        out_shape=jax.ShapeDtypeStruct((N, C, L), jnp.float32),
        grid=(N,),
        in_specs=in_specs,
        out_specs=_batch_spec((N, C, L)),
        compiler_params=_CPARAMS,
    )(*inputs)


def upconv_forward(x, params, h, w):
    """ConvTranspose2d(2C -> C, 4, 2, 1) on padded-flat (N, 2C, (h+2)*(w+2))."""
    N = x.shape[0]
    wph, bias = params
    C = wph.shape[1]
    H, W = 2 * h, 2 * w
    L = (H + 2) * (W + 2)
    place = _upsample_place_matrix(h, w)
    mask = _interior_mask(H, W)
    inputs = [x, wph, bias, place, mask]
    in_specs = [_batch_spec(x.shape)] + [_full_spec(a) for a in inputs[1:]]
    return pl.pallas_call(
        functools.partial(_upconv_kernel, wpad=w + 2),
        out_shape=jax.ShapeDtypeStruct((N, C, L), jnp.float32),
        grid=(N,),
        in_specs=in_specs,
        out_specs=_batch_spec((N, C, L)),
        compiler_params=_CPARAMS,
    )(*inputs)


# ---------------------------------------------------------------------------
# Deterministic parameter construction (PyTorch-shaped, then converted)
# ---------------------------------------------------------------------------
def _fold_bn(key_bn, conv_bias, cout):
    kg, kbe, km, kv = jax.random.split(key_bn, 4)
    gamma = 1.0 + 0.1 * jax.random.normal(kg, (cout,), jnp.float32)
    beta = 0.1 * jax.random.normal(kbe, (cout,), jnp.float32)
    r_mean = 0.1 * jax.random.normal(km, (cout,), jnp.float32)
    r_var = 1.0 + 0.5 * jax.random.uniform(kv, (cout,), jnp.float32)
    scale = gamma / jnp.sqrt(r_var + _BN_EPS)
    bias = beta + scale * (conv_bias - r_mean)
    return scale.reshape(cout, 1), bias.reshape(cout, 1)


def _flatten_conv_w(w_oihw):
    """torch (Cout, Cin, 3, 3) -> (Cout, 9*Cin_pad), columns ordered (kh, kw, ci).

    The input-channel axis is zero-padded to a multiple of 8 so the in-kernel
    tap stack stays 8-sublane aligned (matching zero-padded activations)."""
    cout, cin = w_oihw.shape[:2]
    cin_pad = _round8(cin)
    if cin_pad != cin:
        w_oihw = jnp.pad(w_oihw, ((0, 0), (0, cin_pad - cin), (0, 0), (0, 0)))
    return jnp.transpose(w_oihw, (0, 2, 3, 1)).reshape(cout, 9 * cin_pad)


def make_conv_bn_params(key, cin, cout):
    kw_, kb, kbn = jax.random.split(key, 3)
    w = 0.1 * jax.random.normal(kw_, (cout, cin, 3, 3), jnp.float32)   # OIHW
    b = 0.1 * jax.random.normal(kb, (cout,), jnp.float32)
    scale, bias = _fold_bn(kbn, b, cout)
    return _flatten_conv_w(w), scale, bias


def make_dec1_params(key, c):
    """Conv2d(2c -> c, 3, 1, 1)+BN, weight split along input channels so the
    skip concat never has to be materialized (split contraction)."""
    kw_, kb, kbn = jax.random.split(key, 3)
    w = 0.1 * jax.random.normal(kw_, (c, 2 * c, 3, 3), jnp.float32)
    b = 0.1 * jax.random.normal(kb, (c,), jnp.float32)
    scale, bias = _fold_bn(kbn, b, c)
    return _flatten_conv_w(w[:, :c]), _flatten_conv_w(w[:, c:]), scale, bias


def make_upconv_params(key, cin, cout):
    """ConvTranspose2d(cin, cout, 4, 2, 1): per-phase 2x2-tap weight matrices."""
    kw_, kb = jax.random.split(key)
    wt = 0.1 * jax.random.normal(kw_, (cin, cout, 4, 4), jnp.float32)  # (in,out,kh,kw)
    b = 0.1 * jax.random.normal(kb, (cout,), jnp.float32)
    phases = []
    for r in range(2):
        for s in range(2):
            blocks = []
            for dh in (r - 1, r):
                for dw in (s - 1, s):
                    kh = 1 + r - 2 * dh
                    kw = 1 + s - 2 * dw
                    blocks.append(wt[:, :, kh, kw].T)          # (cout, cin)
            phases.append(jnp.concatenate(blocks, axis=1))     # (cout, 4*cin)
    return jnp.stack(phases, axis=0), b.reshape(cout, 1)


# ---------------------------------------------------------------------------
# Module
# ---------------------------------------------------------------------------
class UnetSkipConnetionPallas:
    """JAX/Pallas equivalent of the PyTorch UnetSkipConnetion forward pass.

    Activations flow between kernels in padded, spatially-flattened layout
    (N, C, (H+2)*(W+2)) with an explicit zero border.  output_dim is assumed
    to be a multiple of 8 (true for this script: 8 and 16)."""

    def __init__(self, key, input_dim, output_dim, submodule=None):
        self.submodule = submodule
        self.output_dim = output_dim
        ks = jax.random.split(key, 5)
        self.enc1 = make_conv_bn_params(ks[0], input_dim, output_dim)
        self.enc2 = make_conv_bn_params(ks[1], output_dim, output_dim)
        self.dec1 = make_dec1_params(ks[2], output_dim)
        self.dec2 = make_conv_bn_params(ks[3], output_dim, output_dim)
        self.pre_up = make_upconv_params(ks[4], output_dim * 2, output_dim)

    def __call__(self, x_flat, H, W):
        if self.submodule is None:
            return enc_forward(x_flat, self.enc1, self.enc2, H, W, do_pool=False)
        e, pooled = enc_forward(x_flat, self.enc1, self.enc2, H, W, do_pool=True)
        sub = self.submodule(pooled, H // 2, W // 2)
        sub = upconv_forward(sub, self.pre_up, H // 2, W // 2)
        return dec_forward(e, sub, self.dec1, self.dec2, H, W)


def unet_skip_forward_nchw(module, x_nchw):
    """NCHW in / NCHW out wrapper (torch convention)."""
    N, C, H, W = x_nchw.shape
    c_pad = _round8(C)
    xp = jnp.pad(x_nchw, ((0, 0), (0, c_pad - C), (1, 1), (1, 1)))  # entry pad once
    y_flat = module(xp.reshape(N, c_pad, (H + 2) * (W + 2)), H, W)
    y = y_flat.reshape(N, module.output_dim, H + 2, W + 2)[:, :, 1:-1, 1:-1]
    return y


# ---------------------------------------------------------------------------
if __name__ == "__main__":
    key = jax.random.PRNGKey(0)
    k_in, k_outer, k_inner = jax.random.split(key, 3)

    N, C_IN, H, W = 2, 4, 16, 16     # small NCHW input, torch convention
    C_OUT = 8

    # Inner level (submodule=None): returns its enc output with 2*C_OUT
    # channels, matching the outer pre_up_conv's expected input channels.
    inner = UnetSkipConnetionPallas(k_inner, C_OUT, C_OUT * 2, submodule=None)
    outer = UnetSkipConnetionPallas(k_outer, C_IN, C_OUT, submodule=inner)

    x = jax.random.normal(k_in, (N, C_IN, H, W), jnp.float32)

    fwd = jax.jit(lambda xx: unet_skip_forward_nchw(outer, xx))
    out = jax.block_until_ready(fwd(x))

    assert out.shape == (N, C_OUT, H, W), out.shape
    assert out.dtype == jnp.float32
    assert bool(jnp.all(jnp.isfinite(out)))

    print("KERNEL_OK")
</pallas_src>

<mosaic_0001>
module attributes {stable_mosaic.version = 11 : i64} {
  func.func @_enc_kernel(%arg0: i32, %arg1: memref<1x8x100xf32, #tpu.memory_space<vmem>>, %arg2: memref<16x72xf32, #tpu.memory_space<vmem>>, %arg3: memref<16x1xf32, #tpu.memory_space<vmem>>, %arg4: memref<16x1xf32, #tpu.memory_space<vmem>>, %arg5: memref<16x144xf32, #tpu.memory_space<vmem>>, %arg6: memref<16x1xf32, #tpu.memory_space<vmem>>, %arg7: memref<16x1xf32, #tpu.memory_space<vmem>>, %arg8: memref<1x100xf32, #tpu.memory_space<vmem>>, %arg9: memref<1x16x100xf32, #tpu.memory_space<vmem>>) attributes {dimension_semantics = [#tpu.dimension_semantics<parallel>], iteration_bounds = array<i64: 2>, scalar_prefetch = 0 : i64, scratch_operands = 0 : i64, tpu.core_type = #tpu.core_type<tc>, window_params = [{transform_indices = @transform_0, window_bounds = array<i64: 1, 8, 100>}, {pipeline_mode = #tpu.pipeline_mode<synchronous>, transform_indices = @transform_1, window_bounds = array<i64: 16, 72>}, {pipeline_mode = #tpu.pipeline_mode<synchronous>, transform_indices = @transform_2, window_bounds = array<i64: 16, 1>}, {pipeline_mode = #tpu.pipeline_mode<synchronous>, transform_indices = @transform_3, window_bounds = array<i64: 16, 1>}, {pipeline_mode = #tpu.pipeline_mode<synchronous>, transform_indices = @transform_4, window_bounds = array<i64: 16, 144>}, {pipeline_mode = #tpu.pipeline_mode<synchronous>, transform_indices = @transform_5, window_bounds = array<i64: 16, 1>}, {pipeline_mode = #tpu.pipeline_mode<synchronous>, transform_indices = @transform_6, window_bounds = array<i64: 16, 1>}, {pipeline_mode = #tpu.pipeline_mode<synchronous>, transform_indices = @transform_7, window_bounds = array<i64: 1, 100>}, {transform_indices = @transform_8, window_bounds = array<i64: 1, 16, 100>}]} {
    %c0 = arith.constant 0 : index
    %c0_0 = arith.constant 0 : index
    %c0_1 = arith.constant 0 : index
    %0 = vector.load %arg1[%c0, %c0_0, %c0_1] : memref<1x8x100xf32, #tpu.memory_space<vmem>>, vector<1x8x100xf32>
    %1 = vector.shape_cast %0 : vector<1x8x100xf32> to vector<8x100xf32>
    %c0_2 = arith.constant 0 : index
    %c0_3 = arith.constant 0 : index
    %2 = vector.load %arg8[%c0_2, %c0_3] : memref<1x100xf32, #tpu.memory_space<vmem>>, vector<1x100xf32>
    %c0_4 = arith.constant 0 : index
    %c0_5 = arith.constant 0 : index
    %3 = vector.load %arg2[%c0_4, %c0_5] : memref<16x72xf32, #tpu.memory_space<vmem>>, vector<16x72xf32>
    %cst = arith.constant 0.000000e+00 : f32
    %4 = vector.broadcast %cst : f32 to vector<8x11xf32>
    %5 = tpu.concatenate %4, %1, %4 in 1 : vector<8x11xf32>, vector<8x100xf32>, vector<8x11xf32> -> vector<8x122xf32>
    %6 = vector.extract_strided_slice %5 {offsets = [0, 0], sizes = [8, 100], strides = [1, 1]} : vector<8x122xf32> to vector<8x100xf32>
    %7 = vector.extract_strided_slice %5 {offsets = [0, 1], sizes = [8, 100], strides = [1, 1]} : vector<8x122xf32> to vector<8x100xf32>
    %8 = vector.extract_strided_slice %5 {offsets = [0, 2], sizes = [8, 100], strides = [1, 1]} : vector<8x122xf32> to vector<8x100xf32>
    %9 = vector.extract_strided_slice %5 {offsets = [0, 10], sizes = [8, 100], strides = [1, 1]} : vector<8x122xf32> to vector<8x100xf32>
    %10 = vector.extract_strided_slice %5 {offsets = [0, 11], sizes = [8, 100], strides = [1, 1]} : vector<8x122xf32> to vector<8x100xf32>
    %11 = vector.extract_strided_slice %5 {offsets = [0, 12], sizes = [8, 100], strides = [1, 1]} : vector<8x122xf32> to vector<8x100xf32>
    %12 = vector.extract_strided_slice %5 {offsets = [0, 20], sizes = [8, 100], strides = [1, 1]} : vector<8x122xf32> to vector<8x100xf32>
    %13 = vector.extract_strided_slice %5 {offsets = [0, 21], sizes = [8, 100], strides = [1, 1]} : vector<8x122xf32> to vector<8x100xf32>
    %14 = vector.extract_strided_slice %5 {offsets = [0, 22], sizes = [8, 100], strides = [1, 1]} : vector<8x122xf32> to vector<8x100xf32>
    %15 = tpu.concatenate %6, %7, %8, %9, %10, %11, %12, %13, %14 in 0 : vector<8x100xf32>, vector<8x100xf32>, vector<8x100xf32>, vector<8x100xf32>, vector<8x100xf32>, vector<8x100xf32>, vector<8x100xf32>, vector<8x100xf32>, vector<8x100xf32> -> vector<72x100xf32>
    %cst_6 = arith.constant dense<0.000000e+00> : vector<16x100xf32>
    %16 = tpu.matmul %3, %15, %cst_6 {dimension_numbers = #tpu.dot_dimension_numbers<[1], [0], [0], [1], [0, 0, 1, 1], [], []>} : vector<16x72xf32>, vector<72x100xf32>, vector<16x100xf32> -> vector<16x100xf32>
    %c0_7 = arith.constant 0 : index
    %c0_8 = arith.constant 0 : index
    %17 = vector.load %arg3[%c0_7, %c0_8] : memref<16x1xf32, #tpu.memory_space<vmem>>, vector<16x1xf32>
    %c0_9 = arith.constant 0 : index
    %c0_10 = arith.constant 0 : index
    %18 = vector.load %arg4[%c0_9, %c0_10] : memref<16x1xf32, #tpu.memory_space<vmem>>, vector<16x1xf32>
    %19 = vector.broadcast %17 : vector<16x1xf32> to vector<16x100xf32>
    %20 = arith.mulf %16, %19 : vector<16x100xf32>
    %21 = vector.broadcast %18 : vector<16x1xf32> to vector<16x100xf32>
    %22 = arith.addf %20, %21 : vector<16x100xf32>
    %cst_11 = arith.constant 0.000000e+00 : f32
    %23 = vector.broadcast %cst_11 : f32 to vector<16x100xf32>
    %24 = arith.cmpf oge, %22, %23 : vector<16x100xf32>
    %cst_12 = arith.constant 2.000000e-01 : f32
    %25 = vector.broadcast %cst_12 : f32 to vector<16x100xf32>
    %26 = arith.mulf %25, %22 : vector<16x100xf32>
    %27 = arith.select %24, %22, %26 : vector<16x100xi1>, vector<16x100xf32>
    %28 = vector.broadcast %2 : vector<1x100xf32> to vector<16x100xf32>
    %29 = arith.mulf %27, %28 : vector<16x100xf32>
    %c0_13 = arith.constant 0 : index
    %c0_14 = arith.constant 0 : index
    %30 = vector.load %arg5[%c0_13, %c0_14] : memref<16x144xf32, #tpu.memory_space<vmem>>, vector<16x144xf32>
    %cst_15 = arith.constant 0.000000e+00 : f32
    %31 = vector.broadcast %cst_15 : f32 to vector<16x11xf32>
    %32 = tpu.concatenate %31, %29, %31 in 1 : vector<16x11xf32>, vector<16x100xf32>, vector<16x11xf32> -> vector<16x122xf32>
    %33 = vector.extract_strided_slice %32 {offsets = [0, 0], sizes = [16, 100], strides = [1, 1]} : vector<16x122xf32> to vector<16x100xf32>
    %34 = vector.extract_strided_slice %32 {offsets = [0, 1], sizes = [16, 100], strides = [1, 1]} : vector<16x122xf32> to vector<16x100xf32>
    %35 = vector.extract_strided_slice %32 {offsets = [0, 2], sizes = [16, 100], strides = [1, 1]} : vector<16x122xf32> to vector<16x100xf32>
    %36 = vector.extract_strided_slice %32 {offsets = [0, 10], sizes = [16, 100], strides = [1, 1]} : vector<16x122xf32> to vector<16x100xf32>
    %37 = vector.extract_strided_slice %32 {offsets = [0, 11], sizes = [16, 100], strides = [1, 1]} : vector<16x122xf32> to vector<16x100xf32>
    %38 = vector.extract_strided_slice %32 {offsets = [0, 12], sizes = [16, 100], strides = [1, 1]} : vector<16x122xf32> to vector<16x100xf32>
    %39 = vector.extract_strided_slice %32 {offsets = [0, 20], sizes = [16, 100], strides = [1, 1]} : vector<16x122xf32> to vector<16x100xf32>
    %40 = vector.extract_strided_slice %32 {offsets = [0, 21], sizes = [16, 100], strides = [1, 1]} : vector<16x122xf32> to vector<16x100xf32>
    %41 = vector.extract_strided_slice %32 {offsets = [0, 22], sizes = [16, 100], strides = [1, 1]} : vector<16x122xf32> to vector<16x100xf32>
    %42 = tpu.concatenate %33, %34, %35, %36, %37, %38, %39, %40, %41 in 0 : vector<16x100xf32>, vector<16x100xf32>, vector<16x100xf32>, vector<16x100xf32>, vector<16x100xf32>, vector<16x100xf32>, vector<16x100xf32>, vector<16x100xf32>, vector<16x100xf32> -> vector<144x100xf32>
    %cst_16 = arith.constant dense<0.000000e+00> : vector<16x100xf32>
    %43 = tpu.matmul %30, %42, %cst_16 {dimension_numbers = #tpu.dot_dimension_numbers<[1], [0], [0], [1], [0, 0, 1, 1], [], []>} : vector<16x144xf32>, vector<144x100xf32>, vector<16x100xf32> -> vector<16x100xf32>
    %c0_17 = arith.constant 0 : index
    %c0_18 = arith.constant 0 : index
    %44 = vector.load %arg6[%c0_17, %c0_18] : memref<16x1xf32, #tpu.memory_space<vmem>>, vector<16x1xf32>
    %c0_19 = arith.constant 0 : index
    %c0_20 = arith.constant 0 : index
    %45 = vector.load %arg7[%c0_19, %c0_20] : memref<16x1xf32, #tpu.memory_space<vmem>>, vector<16x1xf32>
    %46 = vector.broadcast %44 : vector<16x1xf32> to vector<16x100xf32>
    %47 = arith.mulf %43, %46 : vector<16x100xf32>
    %48 = vector.broadcast %45 : vector<16x1xf32> to vector<16x100xf32>
    %49 = arith.addf %47, %48 : vector<16x100xf32>
    %cst_21 = arith.constant 0.000000e+00 : f32
    %50 = vector.broadcast %cst_21 : f32 to vector<16x100xf32>
    %51 = arith.cmpf oge, %49, %50 : vector<16x100xf32>
    %cst_22 = arith.constant 2.000000e-01 : f32
    %52 = vector.broadcast %cst_22 : f32 to vector<16x100xf32>
    %53 = arith.mulf %52, %49 : vector<16x100xf32>
    %54 = arith.select %51, %49, %53 : vector<16x100xi1>, vector<16x100xf32>
    %55 = vector.broadcast %2 : vector<1x100xf32> to vector<16x100xf32>
    %56 = arith.mulf %54, %55 : vector<16x100xf32>
    %c0_23 = arith.constant 0 : index
    %c0_24 = arith.constant 0 : index
    %c0_25 = arith.constant 0 : index
    %57 = vector.load %arg9[%c0_23, %c0_24, %c0_25] : memref<1x16x100xf32, #tpu.memory_space<vmem>>, vector<1x16x100xf32>
    %58 = vector.shape_cast %57 : vector<1x16x100xf32> to vector<16x100xf32>
    %59 = vector.shape_cast %56 : vector<16x100xf32> to vector<1x16x100xf32>
    tpu.vector_store %arg9[%c0_23, %c0_24, %c0_25], %59 {strides = array<i32>} : memref<1x16x100xf32, #tpu.memory_space<vmem>>, vector<1x16x100xf32>,
    return
  }
  func.func @transform_0(%arg0: i32) -> (i32, i32, i32) {
    %c0_i32 = arith.constant 0 : i32
    %c0_i32_0 = arith.constant 0 : i32
    %c0_i32_1 = arith.constant 0 : i32
    return %arg0, %c0_i32, %c0_i32_0 : i32, i32, i32
  }
  func.func @transform_1(%arg0: i32) -> (i32, i32) {
    %c0_i32 = arith.constant 0 : i32
    %c0_i32_0 = arith.constant 0 : i32
    %c0_i32_1 = arith.constant 0 : i32
    return %c0_i32, %c0_i32_0 : i32, i32
  }
  func.func @transform_2(%arg0: i32) -> (i32, i32) {
    %c0_i32 = arith.constant 0 : i32
    %c0_i32_0 = arith.constant 0 : i32
    %c0_i32_1 = arith.constant 0 : i32
    return %c0_i32, %c0_i32_0 : i32, i32
  }
  func.func @transform_3(%arg0: i32) -> (i32, i32) {
    %c0_i32 = arith.constant 0 : i32
    %c0_i32_0 = arith.constant 0 : i32
    %c0_i32_1 = arith.constant 0 : i32
    return %c0_i32, %c0_i32_0 : i32, i32
  }
  func.func @transform_4(%arg0: i32) -> (i32, i32) {
    %c0_i32 = arith.constant 0 : i32
    %c0_i32_0 = arith.constant 0 : i32
    %c0_i32_1 = arith.constant 0 : i32
    return %c0_i32, %c0_i32_0 : i32, i32
  }
  func.func @transform_5(%arg0: i32) -> (i32, i32) {
    %c0_i32 = arith.constant 0 : i32
    %c0_i32_0 = arith.constant 0 : i32
    %c0_i32_1 = arith.constant 0 : i32
    return %c0_i32, %c0_i32_0 : i32, i32
  }
  func.func @transform_6(%arg0: i32) -> (i32, i32) {
    %c0_i32 = arith.constant 0 : i32
    %c0_i32_0 = arith.constant 0 : i32
    %c0_i32_1 = arith.constant 0 : i32
    return %c0_i32, %c0_i32_0 : i32, i32
  }
  func.func @transform_7(%arg0: i32) -> (i32, i32) {
    %c0_i32 = arith.constant 0 : i32
    %c0_i32_0 = arith.constant 0 : i32
    %c0_i32_1 = arith.constant 0 : i32
    return %c0_i32, %c0_i32_0 : i32, i32
  }
  func.func @transform_8(%arg0: i32) -> (i32, i32, i32) {
    %c0_i32 = arith.constant 0 : i32
    %c0_i32_0 = arith.constant 0 : i32
    %c0_i32_1 = arith.constant 0 : i32
    return %arg0, %c0_i32, %c0_i32_0 : i32, i32, i32
  }
}

module attributes {stable_mosaic.version = 11 : i64} {
  func.func @_enc_kernel(%arg0: i32, %arg1: memref<1x8x324xf32, #tpu.memory_space<vmem>>, %arg2: memref<8x72xf32, #tpu.memory_space<vmem>>, %arg3: memref<8x1xf32, #tpu.memory_space<vmem>>, %arg4: memref<8x1xf32, #tpu.memory_space<vmem>>, %arg5: memref<8x72xf32, #tpu.memory_space<vmem>>, %arg6: memref<8x1xf32, #tpu.memory_space<vmem>>, %arg7: memref<8x1xf32, #tpu.memory_space<vmem>>, %arg8: memref<1x324xf32, #tpu.memory_space<vmem>>, %arg9: memref<324x100xf32, #tpu.memory_space<vmem>>, %arg10: memref<1x8x324xf32, #tpu.memory_space<vmem>>, %arg11: memref<1x8x100xf32, #tpu.memory_space<vmem>>) attributes {dimension_semantics = [#tpu.dimension_semantics<parallel>], iteration_bounds = array<i64: 2>, scalar_prefetch = 0 : i64, scratch_operands = 0 : i64, tpu.core_type = #tpu.core_type<tc>, window_params = [{transform_indices = @transform_0, window_bounds = array<i64: 1, 8, 324>}, {pipeline_mode = #tpu.pipeline_mode<synchronous>, transform_indices = @transform_1, window_bounds = array<i64: 8, 72>}, {pipeline_mode = #tpu.pipeline_mode<synchronous>, transform_indices = @transform_2, window_bounds = array<i64: 8, 1>}, {pipeline_mode = #tpu.pipeline_mode<synchronous>, transform_indices = @transform_3, window_bounds = array<i64: 8, 1>}, {pipeline_mode = #tpu.pipeline_mode<synchronous>, transform_indices = @transform_4, window_bounds = array<i64: 8, 72>}, {pipeline_mode = #tpu.pipeline_mode<synchronous>, transform_indices = @transform_5, window_bounds = array<i64: 8, 1>}, {pipeline_mode = #tpu.pipeline_mode<synchronous>, transform_indices = @transform_6, window_bounds = array<i64: 8, 1>}, {pipeline_mode = #tpu.pipeline_mode<synchronous>, transform_indices = @transform_7, window_bounds = array<i64: 1, 324>}, {pipeline_mode = #tpu.pipeline_mode<synchronous>, transform_indices = @transform_8, window_bounds = array<i64: 324, 100>}, {transform_indices = @transform_9, window_bounds = array<i64: 1, 8, 324>}, {transform_indices = @transform_10, window_bounds = array<i64: 1, 8, 100>}]} {
    %c0 = arith.constant 0 : index
    %c0_0 = arith.constant 0 : index
    %c0_1 = arith.constant 0 : index
    %0 = vector.load %arg1[%c0, %c0_0, %c0_1] : memref<1x8x324xf32, #tpu.memory_space<vmem>>, vector<1x8x324xf32>
    %1 = vector.shape_cast %0 : vector<1x8x324xf32> to vector<8x324xf32>
    %c0_2 = arith.constant 0 : index
    %c0_3 = arith.constant 0 : index
    %2 = vector.load %arg8[%c0_2, %c0_3] : memref<1x324xf32, #tpu.memory_space<vmem>>, vector<1x324xf32>
    %c0_4 = arith.constant 0 : index
    %c0_5 = arith.constant 0 : index
    %3 = vector.load %arg2[%c0_4, %c0_5] : memref<8x72xf32, #tpu.memory_space<vmem>>, vector<8x72xf32>
    %cst = arith.constant 0.000000e+00 : f32
    %4 = vector.broadcast %cst : f32 to vector<8x19xf32>
    %5 = tpu.concatenate %4, %1, %4 in 1 : vector<8x19xf32>, vector<8x324xf32>, vector<8x19xf32> -> vector<8x362xf32>
    %6 = vector.extract_strided_slice %5 {offsets = [0, 0], sizes = [8, 324], strides = [1, 1]} : vector<8x362xf32> to vector<8x324xf32>
    %7 = vector.extract_strided_slice %5 {offsets = [0, 1], sizes = [8, 324], strides = [1, 1]} : vector<8x362xf32> to vector<8x324xf32>
    %8 = vector.extract_strided_slice %5 {offsets = [0, 2], sizes = [8, 324], strides = [1, 1]} : vector<8x362xf32> to vector<8x324xf32>
    %9 = vector.extract_strided_slice %5 {offsets = [0, 18], sizes = [8, 324], strides = [1, 1]} : vector<8x362xf32> to vector<8x324xf32>
    %10 = vector.extract_strided_slice %5 {offsets = [0, 19], sizes = [8, 324], strides = [1, 1]} : vector<8x362xf32> to vector<8x324xf32>
    %11 = vector.extract_strided_slice %5 {offsets = [0, 20], sizes = [8, 324], strides = [1, 1]} : vector<8x362xf32> to vector<8x324xf32>
    %12 = vector.extract_strided_slice %5 {offsets = [0, 36], sizes = [8, 324], strides = [1, 1]} : vector<8x362xf32> to vector<8x324xf32>
    %13 = vector.extract_strided_slice %5 {offsets = [0, 37], sizes = [8, 324], strides = [1, 1]} : vector<8x362xf32> to vector<8x324xf32>
    %14 = vector.extract_strided_slice %5 {offsets = [0, 38], sizes = [8, 324], strides = [1, 1]} : vector<8x362xf32> to vector<8x324xf32>
    %15 = tpu.concatenate %6, %7, %8, %9, %10, %11, %12, %13, %14 in 0 : vector<8x324xf32>, vector<8x324xf32>, vector<8x324xf32>, vector<8x324xf32>, vector<8x324xf32>, vector<8x324xf32>, vector<8x324xf32>, vector<8x324xf32>, vector<8x324xf32> -> vector<72x324xf32>
    %cst_6 = arith.constant dense<0.000000e+00> : vector<8x324xf32>
    %16 = tpu.matmul %3, %15, %cst_6 {dimension_numbers = #tpu.dot_dimension_numbers<[1], [0], [0], [1], [0, 0, 1, 1], [], []>} : vector<8x72xf32>, vector<72x324xf32>, vector<8x324xf32> -> vector<8x324xf32>
    %c0_7 = arith.constant 0 : index
    %c0_8 = arith.constant 0 : index
    %17 = vector.load %arg3[%c0_7, %c0_8] : memref<8x1xf32, #tpu.memory_space<vmem>>, vector<8x1xf32>
    %c0_9 = arith.constant 0 : index
    %c0_10 = arith.constant 0 : index
    %18 = vector.load %arg4[%c0_9, %c0_10] : memref<8x1xf32, #tpu.memory_space<vmem>>, vector<8x1xf32>
    %19 = vector.broadcast %17 : vector<8x1xf32> to vector<8x324xf32>
    %20 = arith.mulf %16, %19 : vector<8x324xf32>
    %21 = vector.broadcast %18 : vector<8x1xf32> to vector<8x324xf32>
    %22 = arith.addf %20, %21 : vector<8x324xf32>
    %cst_11 = arith.constant 0.000000e+00 : f32
    %23 = vector.broadcast %cst_11 : f32 to vector<8x324xf32>
    %24 = arith.cmpf oge, %22, %23 : vector<8x324xf32>
    %cst_12 = arith.constant 2.000000e-01 : f32
    %25 = vector.broadcast %cst_12 : f32 to vector<8x324xf32>
    %26 = arith.mulf %25, %22 : vector<8x324xf32>
    %27 = arith.select %24, %22, %26 : vector<8x324xi1>, vector<8x324xf32>
    %28 = vector.broadcast %2 : vector<1x324xf32> to vector<8x324xf32>
    %29 = arith.mulf %27, %28 : vector<8x324xf32>
    %c0_13 = arith.constant 0 : index
    %c0_14 = arith.constant 0 : index
    %30 = vector.load %arg5[%c0_13, %c0_14] : memref<8x72xf32, #tpu.memory_space<vmem>>, vector<8x72xf32>
    %cst_15 = arith.constant 0.000000e+00 : f32
    %31 = vector.broadcast %cst_15 : f32 to vector<8x19xf32>
    %32 = tpu.concatenate %31, %29, %31 in 1 : vector<8x19xf32>, vector<8x324xf32>, vector<8x19xf32> -> vector<8x362xf32>
    %33 = vector.extract_strided_slice %32 {offsets = [0, 0], sizes = [8, 324], strides = [1, 1]} : vector<8x362xf32> to vector<8x324xf32>
    %34 = vector.extract_strided_slice %32 {offsets = [0, 1], sizes = [8, 324], strides = [1, 1]} : vector<8x362xf32> to vector<8x324xf32>
    %35 = vector.extract_strided_slice %32 {offsets = [0, 2], sizes = [8, 324], strides = [1, 1]} : vector<8x362xf32> to vector<8x324xf32>
    %36 = vector.extract_strided_slice %32 {offsets = [0, 18], sizes = [8, 324], strides = [1, 1]} : vector<8x362xf32> to vector<8x324xf32>
    %37 = vector.extract_strided_slice %32 {offsets = [0, 19], sizes = [8, 324], strides = [1, 1]} : vector<8x362xf32> to vector<8x324xf32>
    %38 = vector.extract_strided_slice %32 {offsets = [0, 20], sizes = [8, 324], strides = [1, 1]} : vector<8x362xf32> to vector<8x324xf32>
    %39 = vector.extract_strided_slice %32 {offsets = [0, 36], sizes = [8, 324], strides = [1, 1]} : vector<8x362xf32> to vector<8x324xf32>
    %40 = vector.extract_strided_slice %32 {offsets = [0, 37], sizes = [8, 324], strides = [1, 1]} : vector<8x362xf32> to vector<8x324xf32>
    %41 = vector.extract_strided_slice %32 {offsets = [0, 38], sizes = [8, 324], strides = [1, 1]} : vector<8x362xf32> to vector<8x324xf32>
    %42 = tpu.concatenate %33, %34, %35, %36, %37, %38, %39, %40, %41 in 0 : vector<8x324xf32>, vector<8x324xf32>, vector<8x324xf32>, vector<8x324xf32>, vector<8x324xf32>, vector<8x324xf32>, vector<8x324xf32>, vector<8x324xf32>, vector<8x324xf32> -> vector<72x324xf32>
    %cst_16 = arith.constant dense<0.000000e+00> : vector<8x324xf32>
    %43 = tpu.matmul %30, %42, %cst_16 {dimension_numbers = #tpu.dot_dimension_numbers<[1], [0], [0], [1], [0, 0, 1, 1], [], []>} : vector<8x72xf32>, vector<72x324xf32>, vector<8x324xf32> -> vector<8x324xf32>
    %c0_17 = arith.constant 0 : index
    %c0_18 = arith.constant 0 : index
    %44 = vector.load %arg6[%c0_17, %c0_18] : memref<8x1xf32, #tpu.memory_space<vmem>>, vector<8x1xf32>
    %c0_19 = arith.constant 0 : index
    %c0_20 = arith.constant 0 : index
    %45 = vector.load %arg7[%c0_19, %c0_20] : memref<8x1xf32, #tpu.memory_space<vmem>>, vector<8x1xf32>
    %46 = vector.broadcast %44 : vector<8x1xf32> to vector<8x324xf32>
    %47 = arith.mulf %43, %46 : vector<8x324xf32>
    %48 = vector.broadcast %45 : vector<8x1xf32> to vector<8x324xf32>
    %49 = arith.addf %47, %48 : vector<8x324xf32>
    %cst_21 = arith.constant 0.000000e+00 : f32
    %50 = vector.broadcast %cst_21 : f32 to vector<8x324xf32>
    %51 = arith.cmpf oge, %49, %50 : vector<8x324xf32>
    %cst_22 = arith.constant 2.000000e-01 : f32
    %52 = vector.broadcast %cst_22 : f32 to vector<8x324xf32>
    %53 = arith.mulf %52, %49 : vector<8x324xf32>
    %54 = arith.select %51, %49, %53 : vector<8x324xi1>, vector<8x324xf32>
    %55 = vector.broadcast %2 : vector<1x324xf32> to vector<8x324xf32>
    %56 = arith.mulf %54, %55 : vector<8x324xf32>
    %c0_23 = arith.constant 0 : index
    %c0_24 = arith.constant 0 : index
    %c0_25 = arith.constant 0 : index
    %57 = vector.load %arg10[%c0_23, %c0_24, %c0_25] : memref<1x8x324xf32, #tpu.memory_space<vmem>>, vector<1x8x324xf32>
    %58 = vector.shape_cast %57 : vector<1x8x324xf32> to vector<8x324xf32>
    %59 = vector.shape_cast %56 : vector<8x324xf32> to vector<1x8x324xf32>
    tpu.vector_store %arg10[%c0_23, %c0_24, %c0_25], %59 {strides = array<i32>} : memref<1x8x324xf32, #tpu.memory_space<vmem>>, vector<1x8x324xf32>,
    %cst_26 = arith.constant 0.000000e+00 : f32
    %60 = vector.broadcast %cst_26 : f32 to vector<8x1xf32>
    %61 = tpu.concatenate %60, %56, %60 in 1 : vector<8x1xf32>, vector<8x324xf32>, vector<8x1xf32> -> vector<8x326xf32>
    %62 = vector.extract_strided_slice %61 {offsets = [0, 2], sizes = [8, 324], strides = [1, 1]} : vector<8x326xf32> to vector<8x324xf32>
    %63 = arith.maximumf %56, %62 : vector<8x324xf32>
    %cst_27 = arith.constant 0.000000e+00 : f32
    %64 = vector.broadcast %cst_27 : f32 to vector<8x18xf32>
    %65 = tpu.concatenate %64, %63, %64 in 1 : vector<8x18xf32>, vector<8x324xf32>, vector<8x18xf32> -> vector<8x360xf32>
    %66 = vector.extract_strided_slice %65 {offsets = [0, 36], sizes = [8, 324], strides = [1, 1]} : vector<8x360xf32> to vector<8x324xf32>
    %67 = arith.maximumf %63, %66 : vector<8x324xf32>
    %c0_28 = arith.constant 0 : index
    %c0_29 = arith.constant 0 : index
    %68 = vector.load %arg9[%c0_28, %c0_29] : memref<324x100xf32, #tpu.memory_space<vmem>>, vector<324x100xf32>
    %cst_30 = arith.constant dense<0.000000e+00> : vector<8x100xf32>
    %69 = tpu.matmul %67, %68, %cst_30 {dimension_numbers = #tpu.dot_dimension_numbers<[1], [0], [0], [1], [0, 0, 1, 1], [], []>} : vector<8x324xf32>, vector<324x100xf32>, vector<8x100xf32> -> vector<8x100xf32>
    %c0_31 = arith.constant 0 : index
    %c0_32 = arith.constant 0 : index
    %c0_33 = arith.constant 0 : index
    %70 = vector.load %arg11[%c0_31, %c0_32, %c0_33] : memref<1x8x100xf32, #tpu.memory_space<vmem>>, vector<1x8x100xf32>
    %71 = vector.shape_cast %70 : vector<1x8x100xf32> to vector<8x100xf32>
    %72 = vector.shape_cast %69 : vector<8x100xf32> to vector<1x8x100xf32>
    tpu.vector_store %arg11[%c0_31, %c0_32, %c0_33], %72 {strides = array<i32>} : memref<1x8x100xf32, #tpu.memory_space<vmem>>, vector<1x8x100xf32>,
    return
  }
  func.func @transform_0(%arg0: i32) -> (i32, i32, i32) {
    %c0_i32 = arith.constant 0 : i32
    %c0_i32_0 = arith.constant 0 : i32
    %c0_i32_1 = arith.constant 0 : i32
    return %arg0, %c0_i32, %c0_i32_0 : i32, i32, i32
  }
  func.func @transform_1(%arg0: i32) -> (i32, i32) {
    %c0_i32 = arith.constant 0 : i32
    %c0_i32_0 = arith.constant 0 : i32
    %c0_i32_1 = arith.constant 0 : i32
    return %c0_i32, %c0_i32_0 : i32, i32
  }
  func.func @transform_2(%arg0: i32) -> (i32, i32) {
    %c0_i32 = arith.constant 0 : i32
    %c0_i32_0 = arith.constant 0 : i32
    %c0_i32_1 = arith.constant 0 : i32
    return %c0_i32, %c0_i32_0 : i32, i32
  }
  func.func @transform_3(%arg0: i32) -> (i32, i32) {
    %c0_i32 = arith.constant 0 : i32
    %c0_i32_0 = arith.constant 0 : i32
    %c0_i32_1 = arith.constant 0 : i32
    return %c0_i32, %c0_i32_0 : i32, i32
  }
  func.func @transform_4(%arg0: i32) -> (i32, i32) {
    %c0_i32 = arith.constant 0 : i32
    %c0_i32_0 = arith.constant 0 : i32
    %c0_i32_1 = arith.constant 0 : i32
    return %c0_i32, %c0_i32_0 : i32, i32
  }
  func.func @transform_5(%arg0: i32) -> (i32, i32) {
    %c0_i32 = arith.constant 0 : i32
    %c0_i32_0 = arith.constant 0 : i32
    %c0_i32_1 = arith.constant 0 : i32
    return %c0_i32, %c0_i32_0 : i32, i32
  }
  func.func @transform_6(%arg0: i32) -> (i32, i32) {
    %c0_i32 = arith.constant 0 : i32
    %c0_i32_0 = arith.constant 0 : i32
    %c0_i32_1 = arith.constant 0 : i32
    return %c0_i32, %c0_i32_0 : i32, i32
  }
  func.func @transform_7(%arg0: i32) -> (i32, i32) {
    %c0_i32 = arith.constant 0 : i32
    %c0_i32_0 = arith.constant 0 : i32
    %c0_i32_1 = arith.constant 0 : i32
    return %c0_i32, %c0_i32_0 : i32, i32
  }
  func.func @transform_8(%arg0: i32) -> (i32, i32) {
    %c0_i32 = arith.constant 0 : i32
    %c0_i32_0 = arith.constant 0 : i32
    %c0_i32_1 = arith.constant 0 : i32
    return %c0_i32, %c0_i32_0 : i32, i32
  }
  func.func @transform_9(%arg0: i32) -> (i32, i32, i32) {
    %c0_i32 = arith.constant 0 : i32
    %c0_i32_0 = arith.constant 0 : i32
    %c0_i32_1 = arith.constant 0 : i32
    return %arg0, %c0_i32, %c0_i32_0 : i32, i32, i32
  }
  func.func @transform_10(%arg0: i32) -> (i32, i32, i32) {
    %c0_i32 = arith.constant 0 : i32
    %c0_i32_0 = arith.constant 0 : i32
    %c0_i32_1 = arith.constant 0 : i32
    return %arg0, %c0_i32, %c0_i32_0 : i32, i32, i32
  }
}

module attributes {stable_mosaic.version = 11 : i64} {
  func.func @_upconv_kernel(%arg0: i32, %arg1: memref<1x16x100xf32, #tpu.memory_space<vmem>>, %arg2: memref<4x8x64xf32, #tpu.memory_space<vmem>>, %arg3: memref<8x1xf32, #tpu.memory_space<vmem>>, %arg4: memref<400x324xf32, #tpu.memory_space<vmem>>, %arg5: memref<1x324xf32, #tpu.memory_space<vmem>>, %arg6: memref<1x8x324xf32, #tpu.memory_space<vmem>>) attributes {dimension_semantics = [#tpu.dimension_semantics<parallel>], iteration_bounds = array<i64: 2>, scalar_prefetch = 0 : i64, scratch_operands = 0 : i64, tpu.core_type = #tpu.core_type<tc>, window_params = [{transform_indices = @transform_0, window_bounds = array<i64: 1, 16, 100>}, {pipeline_mode = #tpu.pipeline_mode<synchronous>, transform_indices = @transform_1, window_bounds = array<i64: 4, 8, 64>}, {pipeline_mode = #tpu.pipeline_mode<synchronous>, transform_indices = @transform_2, window_bounds = array<i64: 8, 1>}, {pipeline_mode = #tpu.pipeline_mode<synchronous>, transform_indices = @transform_3, window_bounds = array<i64: 400, 324>}, {pipeline_mode = #tpu.pipeline_mode<synchronous>, transform_indices = @transform_4, window_bounds = array<i64: 1, 324>}, {transform_indices = @transform_5, window_bounds = array<i64: 1, 8, 324>}]} {
    %c0 = arith.constant 0 : index
    %c0_0 = arith.constant 0 : index
    %c0_1 = arith.constant 0 : index
    %0 = vector.load %arg1[%c0, %c0_0, %c0_1] : memref<1x16x100xf32, #tpu.memory_space<vmem>>, vector<1x16x100xf32>
    %1 = vector.shape_cast %0 : vector<1x16x100xf32> to vector<16x100xf32>
    %cst = arith.constant 0.000000e+00 : f32
    %2 = vector.broadcast %cst : f32 to vector<16x11xf32>
    %3 = tpu.concatenate %2, %1, %2 in 1 : vector<16x11xf32>, vector<16x100xf32>, vector<16x11xf32> -> vector<16x122xf32>
    %4 = vector.extract_strided_slice %3 {offsets = [0, 0], sizes = [16, 100], strides = [1, 1]} : vector<16x122xf32> to vector<16x100xf32>
    %5 = vector.extract_strided_slice %3 {offsets = [0, 1], sizes = [16, 100], strides = [1, 1]} : vector<16x122xf32> to vector<16x100xf32>
    %6 = vector.extract_strided_slice %3 {offsets = [0, 10], sizes = [16, 100], strides = [1, 1]} : vector<16x122xf32> to vector<16x100xf32>
    %7 = vector.extract_strided_slice %3 {offsets = [0, 11], sizes = [16, 100], strides = [1, 1]} : vector<16x122xf32> to vector<16x100xf32>
    %8 = tpu.concatenate %4, %5, %6, %7 in 0 : vector<16x100xf32>, vector<16x100xf32>, vector<16x100xf32>, vector<16x100xf32> -> vector<64x100xf32>
    %c0_2 = arith.constant 0 : index
    %c0_3 = arith.constant 0 : index
    %c0_4 = arith.constant 0 : index
    %9 = vector.load %arg2[%c0_2, %c0_3, %c0_4] : memref<4x8x64xf32, #tpu.memory_space<vmem>>, vector<1x8x64xf32>
    %10 = vector.shape_cast %9 : vector<1x8x64xf32> to vector<8x64xf32>
    %cst_5 = arith.constant dense<0.000000e+00> : vector<8x100xf32>
    %11 = tpu.matmul %10, %8, %cst_5 {dimension_numbers = #tpu.dot_dimension_numbers<[1], [0], [0], [1], [0, 0, 1, 1], [], []>} : vector<8x64xf32>, vector<64x100xf32>, vector<8x100xf32> -> vector<8x100xf32>
    %cst_6 = arith.constant 0.000000e+00 : f32
    %12 = vector.broadcast %cst_6 : f32 to vector<16x10xf32>
    %13 = tpu.concatenate %12, %1, %12 in 1 : vector<16x10xf32>, vector<16x100xf32>, vector<16x10xf32> -> vector<16x120xf32>
    %14 = vector.extract_strided_slice %13 {offsets = [0, 0], sizes = [16, 100], strides = [1, 1]} : vector<16x120xf32> to vector<16x100xf32>
    %15 = vector.extract_strided_slice %13 {offsets = [0, 1], sizes = [16, 100], strides = [1, 1]} : vector<16x120xf32> to vector<16x100xf32>
    %16 = vector.extract_strided_slice %13 {offsets = [0, 10], sizes = [16, 100], strides = [1, 1]} : vector<16x120xf32> to vector<16x100xf32>
    %17 = vector.extract_strided_slice %13 {offsets = [0, 11], sizes = [16, 100], strides = [1, 1]} : vector<16x120xf32> to vector<16x100xf32>
    %18 = tpu.concatenate %14, %15, %16, %17 in 0 : vector<16x100xf32>, vector<16x100xf32>, vector<16x100xf32>, vector<16x100xf32> -> vector<64x100xf32>
    %c1 = arith.constant 1 : index
    %c0_7 = arith.constant 0 : index
    %c0_8 = arith.constant 0 : index
    %19 = vector.load %arg2[%c1, %c0_7, %c0_8] : memref<4x8x64xf32, #tpu.memory_space<vmem>>, vector<1x8x64xf32>
    %20 = vector.shape_cast %19 : vector<1x8x64xf32> to vector<8x64xf32>
    %cst_9 = arith.constant dense<0.000000e+00> : vector<8x100xf32>
    %21 = tpu.matmul %20, %18, %cst_9 {dimension_numbers = #tpu.dot_dimension_numbers<[1], [0], [0], [1], [0, 0, 1, 1], [], []>} : vector<8x64xf32>, vector<64x100xf32>, vector<8x100xf32> -> vector<8x100xf32>
    %cst_10 = arith.constant 0.000000e+00 : f32
    %22 = vector.broadcast %cst_10 : f32 to vector<16x10xf32>
    %23 = tpu.concatenate %22, %1, %22 in 1 : vector<16x10xf32>, vector<16x100xf32>, vector<16x10xf32> -> vector<16x120xf32>
    %24 = vector.extract_strided_slice %23 {offsets = [0, 9], sizes = [16, 100], strides = [1, 1]} : vector<16x120xf32> to vector<16x100xf32>
    %25 = vector.extract_strided_slice %23 {offsets = [0, 10], sizes = [16, 100], strides = [1, 1]} : vector<16x120xf32> to vector<16x100xf32>
    %26 = vector.extract_strided_slice %23 {offsets = [0, 19], sizes = [16, 100], strides = [1, 1]} : vector<16x120xf32> to vector<16x100xf32>
    %27 = vector.extract_strided_slice %23 {offsets = [0, 20], sizes = [16, 100], strides = [1, 1]} : vector<16x120xf32> to vector<16x100xf32>
    %28 = tpu.concatenate %24, %25, %26, %27 in 0 : vector<16x100xf32>, vector<16x100xf32>, vector<16x100xf32>, vector<16x100xf32> -> vector<64x100xf32>
    %c2 = arith.constant 2 : index
    %c0_11 = arith.constant 0 : index
    %c0_12 = arith.constant 0 : index
    %29 = vector.load %arg2[%c2, %c0_11, %c0_12] : memref<4x8x64xf32, #tpu.memory_space<vmem>>, vector<1x8x64xf32>
    %30 = vector.shape_cast %29 : vector<1x8x64xf32> to vector<8x64xf32>
    %cst_13 = arith.constant dense<0.000000e+00> : vector<8x100xf32>
    %31 = tpu.matmul %30, %28, %cst_13 {dimension_numbers = #tpu.dot_dimension_numbers<[1], [0], [0], [1], [0, 0, 1, 1], [], []>} : vector<8x64xf32>, vector<64x100xf32>, vector<8x100xf32> -> vector<8x100xf32>
    %cst_14 = arith.constant 0.000000e+00 : f32
    %32 = vector.broadcast %cst_14 : f32 to vector<16x11xf32>
    %33 = tpu.concatenate %32, %1, %32 in 1 : vector<16x11xf32>, vector<16x100xf32>, vector<16x11xf32> -> vector<16x122xf32>
    %34 = vector.extract_strided_slice %33 {offsets = [0, 11], sizes = [16, 100], strides = [1, 1]} : vector<16x122xf32> to vector<16x100xf32>
    %35 = vector.extract_strided_slice %33 {offsets = [0, 12], sizes = [16, 100], strides = [1, 1]} : vector<16x122xf32> to vector<16x100xf32>
    %36 = vector.extract_strided_slice %33 {offsets = [0, 21], sizes = [16, 100], strides = [1, 1]} : vector<16x122xf32> to vector<16x100xf32>
    %37 = vector.extract_strided_slice %33 {offsets = [0, 22], sizes = [16, 100], strides = [1, 1]} : vector<16x122xf32> to vector<16x100xf32>
    %38 = tpu.concatenate %34, %35, %36, %37 in 0 : vector<16x100xf32>, vector<16x100xf32>, vector<16x100xf32>, vector<16x100xf32> -> vector<64x100xf32>
    %c3 = arith.constant 3 : index
    %c0_15 = arith.constant 0 : index
    %c0_16 = arith.constant 0 : index
    %39 = vector.load %arg2[%c3, %c0_15, %c0_16] : memref<4x8x64xf32, #tpu.memory_space<vmem>>, vector<1x8x64xf32>
    %40 = vector.shape_cast %39 : vector<1x8x64xf32> to vector<8x64xf32>
    %cst_17 = arith.constant dense<0.000000e+00> : vector<8x100xf32>
    %41 = tpu.matmul %40, %38, %cst_17 {dimension_numbers = #tpu.dot_dimension_numbers<[1], [0], [0], [1], [0, 0, 1, 1], [], []>} : vector<8x64xf32>, vector<64x100xf32>, vector<8x100xf32> -> vector<8x100xf32>
    %42 = tpu.concatenate %11, %21, %31, %41 in 1 : vector<8x100xf32>, vector<8x100xf32>, vector<8x100xf32>, vector<8x100xf32> -> vector<8x400xf32>
    %c0_18 = arith.constant 0 : index
    %c0_19 = arith.constant 0 : index
    %43 = vector.load %arg4[%c0_18, %c0_19] : memref<400x324xf32, #tpu.memory_space<vmem>>, vector<400x324xf32>
    %cst_20 = arith.constant dense<0.000000e+00> : vector<8x324xf32>
    %44 = tpu.matmul %42, %43, %cst_20 {dimension_numbers = #tpu.dot_dimension_numbers<[1], [0], [0], [1], [0, 0, 1, 1], [], []>} : vector<8x400xf32>, vector<400x324xf32>, vector<8x324xf32> -> vector<8x324xf32>
    %c0_21 = arith.constant 0 : index
    %c0_22 = arith.constant 0 : index
    %45 = vector.load %arg3[%c0_21, %c0_22] : memref<8x1xf32, #tpu.memory_space<vmem>>, vector<8x1xf32>
    %46 = vector.broadcast %45 : vector<8x1xf32> to vector<8x324xf32>
    %47 = arith.addf %44, %46 : vector<8x324xf32>
    %c0_23 = arith.constant 0 : index
    %c0_24 = arith.constant 0 : index
    %48 = vector.load %arg5[%c0_23, %c0_24] : memref<1x324xf32, #tpu.memory_space<vmem>>, vector<1x324xf32>
    %49 = vector.broadcast %48 : vector<1x324xf32> to vector<8x324xf32>
    %50 = arith.mulf %47, %49 : vector<8x324xf32>
    %c0_25 = arith.constant 0 : index
    %c0_26 = arith.constant 0 : index
    %c0_27 = arith.constant 0 : index
    %51 = vector.load %arg6[%c0_25, %c0_26, %c0_27] : memref<1x8x324xf32, #tpu.memory_space<vmem>>, vector<1x8x324xf32>
    %52 = vector.shape_cast %51 : vector<1x8x324xf32> to vector<8x324xf32>
    %53 = vector.shape_cast %50 : vector<8x324xf32> to vector<1x8x324xf32>
    tpu.vector_store %arg6[%c0_25, %c0_26, %c0_27], %53 {strides = array<i32>} : memref<1x8x324xf32, #tpu.memory_space<vmem>>, vector<1x8x324xf32>,
    return
  }
  func.func @transform_0(%arg0: i32) -> (i32, i32, i32) {
    %c0_i32 = arith.constant 0 : i32
    %c0_i32_0 = arith.constant 0 : i32
    %c0_i32_1 = arith.constant 0 : i32
    return %arg0, %c0_i32, %c0_i32_0 : i32, i32, i32
  }
  func.func @transform_1(%arg0: i32) -> (i32, i32, i32) {
    %c0_i32 = arith.constant 0 : i32
    %c0_i32_0 = arith.constant 0 : i32
    %c0_i32_1 = arith.constant 0 : i32
    %c0_i32_2 = arith.constant 0 : i32
    return %c0_i32, %c0_i32_0, %c0_i32_1 : i32, i32, i32
  }
  func.func @transform_2(%arg0: i32) -> (i32, i32) {
    %c0_i32 = arith.constant 0 : i32
    %c0_i32_0 = arith.constant 0 : i32
    %c0_i32_1 = arith.constant 0 : i32
    return %c0_i32, %c0_i32_0 : i32, i32
  }
  func.func @transform_3(%arg0: i32) -> (i32, i32) {
    %c0_i32 = arith.constant 0 : i32
    %c0_i32_0 = arith.constant 0 : i32
    %c0_i32_1 = arith.constant 0 : i32
    return %c0_i32, %c0_i32_0 : i32, i32
  }
  func.func @transform_4(%arg0: i32) -> (i32, i32) {
    %c0_i32 = arith.constant 0 : i32
    %c0_i32_0 = arith.constant 0 : i32
    %c0_i32_1 = arith.constant 0 : i32
    return %c0_i32, %c0_i32_0 : i32, i32
  }
  func.func @transform_5(%arg0: i32) -> (i32, i32, i32) {
    %c0_i32 = arith.constant 0 : i32
    %c0_i32_0 = arith.constant 0 : i32
    %c0_i32_1 = arith.constant 0 : i32
    return %arg0, %c0_i32, %c0_i32_0 : i32, i32, i32
  }
}

module attributes {stable_mosaic.version = 11 : i64} {
  func.func @_dec_kernel(%arg0: i32, %arg1: memref<1x8x324xf32, #tpu.memory_space<vmem>>, %arg2: memref<1x8x324xf32, #tpu.memory_space<vmem>>, %arg3: memref<8x72xf32, #tpu.memory_space<vmem>>, %arg4: memref<8x72xf32, #tpu.memory_space<vmem>>, %arg5: memref<8x1xf32, #tpu.memory_space<vmem>>, %arg6: memref<8x1xf32, #tpu.memory_space<vmem>>, %arg7: memref<8x72xf32, #tpu.memory_space<vmem>>, %arg8: memref<8x1xf32, #tpu.memory_space<vmem>>, %arg9: memref<8x1xf32, #tpu.memory_space<vmem>>, %arg10: memref<1x324xf32, #tpu.memory_space<vmem>>, %arg11: memref<1x8x324xf32, #tpu.memory_space<vmem>>) attributes {dimension_semantics = [#tpu.dimension_semantics<parallel>], iteration_bounds = array<i64: 2>, scalar_prefetch = 0 : i64, scratch_operands = 0 : i64, tpu.core_type = #tpu.core_type<tc>, window_params = [{transform_indices = @transform_0, window_bounds = array<i64: 1, 8, 324>}, {transform_indices = @transform_1, window_bounds = array<i64: 1, 8, 324>}, {pipeline_mode = #tpu.pipeline_mode<synchronous>, transform_indices = @transform_2, window_bounds = array<i64: 8, 72>}, {pipeline_mode = #tpu.pipeline_mode<synchronous>, transform_indices = @transform_3, window_bounds = array<i64: 8, 72>}, {pipeline_mode = #tpu.pipeline_mode<synchronous>, transform_indices = @transform_4, window_bounds = array<i64: 8, 1>}, {pipeline_mode = #tpu.pipeline_mode<synchronous>, transform_indices = @transform_5, window_bounds = array<i64: 8, 1>}, {pipeline_mode = #tpu.pipeline_mode<synchronous>, transform_indices = @transform_6, window_bounds = array<i64: 8, 72>}, {pipeline_mode = #tpu.pipeline_mode<synchronous>, transform_indices = @transform_7, window_bounds = array<i64: 8, 1>}, {pipeline_mode = #tpu.pipeline_mode<synchronous>, transform_indices = @transform_8, window_bounds = array<i64: 8, 1>}, {pipeline_mode = #tpu.pipeline_mode<synchronous>, transform_indices = @transform_9, window_bounds = array<i64: 1, 324>}, {transform_indices = @transform_10, window_bounds = array<i64: 1, 8, 324>}]} {
    %c0 = arith.constant 0 : index
    %c0_0 = arith.constant 0 : index
    %c0_1 = arith.constant 0 : index
    %0 = vector.load %arg1[%c0, %c0_0, %c0_1] : memref<1x8x324xf32, #tpu.memory_space<vmem>>, vector<1x8x324xf32>
    %1 = vector.shape_cast %0 : vector<1x8x324xf32> to vector<8x324xf32>
    %c0_2 = arith.constant 0 : index
    %c0_3 = arith.constant 0 : index
    %c0_4 = arith.constant 0 : index
    %2 = vector.load %arg2[%c0_2, %c0_3, %c0_4] : memref<1x8x324xf32, #tpu.memory_space<vmem>>, vector<1x8x324xf32>
    %3 = vector.shape_cast %2 : vector<1x8x324xf32> to vector<8x324xf32>
    %c0_5 = arith.constant 0 : index
    %c0_6 = arith.constant 0 : index
    %4 = vector.load %arg10[%c0_5, %c0_6] : memref<1x324xf32, #tpu.memory_space<vmem>>, vector<1x324xf32>
    %c0_7 = arith.constant 0 : index
    %c0_8 = arith.constant 0 : index
    %5 = vector.load %arg3[%c0_7, %c0_8] : memref<8x72xf32, #tpu.memory_space<vmem>>, vector<8x72xf32>
    %cst = arith.constant 0.000000e+00 : f32
    %6 = vector.broadcast %cst : f32 to vector<8x19xf32>
    %7 = tpu.concatenate %6, %1, %6 in 1 : vector<8x19xf32>, vector<8x324xf32>, vector<8x19xf32> -> vector<8x362xf32>
    %8 = vector.extract_strided_slice %7 {offsets = [0, 0], sizes = [8, 324], strides = [1, 1]} : vector<8x362xf32> to vector<8x324xf32>
    %9 = vector.extract_strided_slice %7 {offsets = [0, 1], sizes = [8, 324], strides = [1, 1]} : vector<8x362xf32> to vector<8x324xf32>
    %10 = vector.extract_strided_slice %7 {offsets = [0, 2], sizes = [8, 324], strides = [1, 1]} : vector<8x362xf32> to vector<8x324xf32>
    %11 = vector.extract_strided_slice %7 {offsets = [0, 18], sizes = [8, 324], strides = [1, 1]} : vector<8x362xf32> to vector<8x324xf32>
    %12 = vector.extract_strided_slice %7 {offsets = [0, 19], sizes = [8, 324], strides = [1, 1]} : vector<8x362xf32> to vector<8x324xf32>
    %13 = vector.extract_strided_slice %7 {offsets = [0, 20], sizes = [8, 324], strides = [1, 1]} : vector<8x362xf32> to vector<8x324xf32>
    %14 = vector.extract_strided_slice %7 {offsets = [0, 36], sizes = [8, 324], strides = [1, 1]} : vector<8x362xf32> to vector<8x324xf32>
    %15 = vector.extract_strided_slice %7 {offsets = [0, 37], sizes = [8, 324], strides = [1, 1]} : vector<8x362xf32> to vector<8x324xf32>
    %16 = vector.extract_strided_slice %7 {offsets = [0, 38], sizes = [8, 324], strides = [1, 1]} : vector<8x362xf32> to vector<8x324xf32>
    %17 = tpu.concatenate %8, %9, %10, %11, %12, %13, %14, %15, %16 in 0 : vector<8x324xf32>, vector<8x324xf32>, vector<8x324xf32>, vector<8x324xf32>, vector<8x324xf32>, vector<8x324xf32>, vector<8x324xf32>, vector<8x324xf32>, vector<8x324xf32> -> vector<72x324xf32>
    %cst_9 = arith.constant dense<0.000000e+00> : vector<8x324xf32>
    %18 = tpu.matmul %5, %17, %cst_9 {dimension_numbers = #tpu.dot_dimension_numbers<[1], [0], [0], [1], [0, 0, 1, 1], [], []>} : vector<8x72xf32>, vector<72x324xf32>, vector<8x324xf32> -> vector<8x324xf32>
    %c0_10 = arith.constant 0 : index
    %c0_11 = arith.constant 0 : index
    %19 = vector.load %arg4[%c0_10, %c0_11] : memref<8x72xf32, #tpu.memory_space<vmem>>, vector<8x72xf32>
    %cst_12 = arith.constant 0.000000e+00 : f32
    %20 = vector.broadcast %cst_12 : f32 to vector<8x19xf32>
    %21 = tpu.concatenate %20, %3, %20 in 1 : vector<8x19xf32>, vector<8x324xf32>, vector<8x19xf32> -> vector<8x362xf32>
    %22 = vector.extract_strided_slice %21 {offsets = [0, 0], sizes = [8, 324], strides = [1, 1]} : vector<8x362xf32> to vector<8x324xf32>
    %23 = vector.extract_strided_slice %21 {offsets = [0, 1], sizes = [8, 324], strides = [1, 1]} : vector<8x362xf32> to vector<8x324xf32>
    %24 = vector.extract_strided_slice %21 {offsets = [0, 2], sizes = [8, 324], strides = [1, 1]} : vector<8x362xf32> to vector<8x324xf32>
    %25 = vector.extract_strided_slice %21 {offsets = [0, 18], sizes = [8, 324], strides = [1, 1]} : vector<8x362xf32> to vector<8x324xf32>
    %26 = vector.extract_strided_slice %21 {offsets = [0, 19], sizes = [8, 324], strides = [1, 1]} : vector<8x362xf32> to vector<8x324xf32>
    %27 = vector.extract_strided_slice %21 {offsets = [0, 20], sizes = [8, 324], strides = [1, 1]} : vector<8x362xf32> to vector<8x324xf32>
    %28 = vector.extract_strided_slice %21 {offsets = [0, 36], sizes = [8, 324], strides = [1, 1]} : vector<8x362xf32> to vector<8x324xf32>
    %29 = vector.extract_strided_slice %21 {offsets = [0, 37], sizes = [8, 324], strides = [1, 1]} : vector<8x362xf32> to vector<8x324xf32>
    %30 = vector.extract_strided_slice %21 {offsets = [0, 38], sizes = [8, 324], strides = [1, 1]} : vector<8x362xf32> to vector<8x324xf32>
    %31 = tpu.concatenate %22, %23, %24, %25, %26, %27, %28, %29, %30 in 0 : vector<8x324xf32>, vector<8x324xf32>, vector<8x324xf32>, vector<8x324xf32>, vector<8x324xf32>, vector<8x324xf32>, vector<8x324xf32>, vector<8x324xf32>, vector<8x324xf32> -> vector<72x324xf32>
    %cst_13 = arith.constant dense<0.000000e+00> : vector<8x324xf32>
    %32 = tpu.matmul %19, %31, %cst_13 {dimension_numbers = #tpu.dot_dimension_numbers<[1], [0], [0], [1], [0, 0, 1, 1], [], []>} : vector<8x72xf32>, vector<72x324xf32>, vector<8x324xf32> -> vector<8x324xf32>
    %33 = arith.addf %18, %32 : vector<8x324xf32>
    %c0_14 = arith.constant 0 : index
    %c0_15 = arith.constant 0 : index
    %34 = vector.load %arg5[%c0_14, %c0_15] : memref<8x1xf32, #tpu.memory_space<vmem>>, vector<8x1xf32>
    %c0_16 = arith.constant 0 : index
    %c0_17 = arith.constant 0 : index
    %35 = vector.load %arg6[%c0_16, %c0_17] : memref<8x1xf32, #tpu.memory_space<vmem>>, vector<8x1xf32>
    %36 = vector.broadcast %34 : vector<8x1xf32> to vector<8x324xf32>
    %37 = arith.mulf %33, %36 : vector<8x324xf32>
    %38 = vector.broadcast %35 : vector<8x1xf32> to vector<8x324xf32>
    %39 = arith.addf %37, %38 : vector<8x324xf32>
    %cst_18 = arith.constant 0.000000e+00 : f32
    %40 = vector.broadcast %cst_18 : f32 to vector<8x324xf32>
    %41 = arith.maximumf %39, %40 : vector<8x324xf32>
    %42 = vector.broadcast %4 : vector<1x324xf32> to vector<8x324xf32>
    %43 = arith.mulf %41, %42 : vector<8x324xf32>
    %c0_19 = arith.constant 0 : index
    %c0_20 = arith.constant 0 : index
    %44 = vector.load %arg7[%c0_19, %c0_20] : memref<8x72xf32, #tpu.memory_space<vmem>>, vector<8x72xf32>
    %cst_21 = arith.constant 0.000000e+00 : f32
    %45 = vector.broadcast %cst_21 : f32 to vector<8x19xf32>
    %46 = tpu.concatenate %45, %43, %45 in 1 : vector<8x19xf32>, vector<8x324xf32>, vector<8x19xf32> -> vector<8x362xf32>
    %47 = vector.extract_strided_slice %46 {offsets = [0, 0], sizes = [8, 324], strides = [1, 1]} : vector<8x362xf32> to vector<8x324xf32>
    %48 = vector.extract_strided_slice %46 {offsets = [0, 1], sizes = [8, 324], strides = [1, 1]} : vector<8x362xf32> to vector<8x324xf32>
    %49 = vector.extract_strided_slice %46 {offsets = [0, 2], sizes = [8, 324], strides = [1, 1]} : vector<8x362xf32> to vector<8x324xf32>
    %50 = vector.extract_strided_slice %46 {offsets = [0, 18], sizes = [8, 324], strides = [1, 1]} : vector<8x362xf32> to vector<8x324xf32>
    %51 = vector.extract_strided_slice %46 {offsets = [0, 19], sizes = [8, 324], strides = [1, 1]} : vector<8x362xf32> to vector<8x324xf32>
    %52 = vector.extract_strided_slice %46 {offsets = [0, 20], sizes = [8, 324], strides = [1, 1]} : vector<8x362xf32> to vector<8x324xf32>
    %53 = vector.extract_strided_slice %46 {offsets = [0, 36], sizes = [8, 324], strides = [1, 1]} : vector<8x362xf32> to vector<8x324xf32>
    %54 = vector.extract_strided_slice %46 {offsets = [0, 37], sizes = [8, 324], strides = [1, 1]} : vector<8x362xf32> to vector<8x324xf32>
    %55 = vector.extract_strided_slice %46 {offsets = [0, 38], sizes = [8, 324], strides = [1, 1]} : vector<8x362xf32> to vector<8x324xf32>
    %56 = tpu.concatenate %47, %48, %49, %50, %51, %52, %53, %54, %55 in 0 : vector<8x324xf32>, vector<8x324xf32>, vector<8x324xf32>, vector<8x324xf32>, vector<8x324xf32>, vector<8x324xf32>, vector<8x324xf32>, vector<8x324xf32>, vector<8x324xf32> -> vector<72x324xf32>
    %cst_22 = arith.constant dense<0.000000e+00> : vector<8x324xf32>
    %57 = tpu.matmul %44, %56, %cst_22 {dimension_numbers = #tpu.dot_dimension_numbers<[1], [0], [0], [1], [0, 0, 1, 1], [], []>} : vector<8x72xf32>, vector<72x324xf32>, vector<8x324xf32> -> vector<8x324xf32>
    %c0_23 = arith.constant 0 : index
    %c0_24 = arith.constant 0 : index
    %58 = vector.load %arg8[%c0_23, %c0_24] : memref<8x1xf32, #tpu.memory_space<vmem>>, vector<8x1xf32>
    %c0_25 = arith.constant 0 : index
    %c0_26 = arith.constant 0 : index
    %59 = vector.load %arg9[%c0_25, %c0_26] : memref<8x1xf32, #tpu.memory_space<vmem>>, vector<8x1xf32>
    %60 = vector.broadcast %58 : vector<8x1xf32> to vector<8x324xf32>
    %61 = arith.mulf %57, %60 : vector<8x324xf32>
    %62 = vector.broadcast %59 : vector<8x1xf32> to vector<8x324xf32>
    %63 = arith.addf %61, %62 : vector<8x324xf32>
    %cst_27 = arith.constant 0.000000e+00 : f32
    %64 = vector.broadcast %cst_27 : f32 to vector<8x324xf32>
    %65 = arith.maximumf %63, %64 : vector<8x324xf32>
    %66 = vector.broadcast %4 : vector<1x324xf32> to vector<8x324xf32>
    %67 = arith.mulf %65, %66 : vector<8x324xf32>
    %c0_28 = arith.constant 0 : index
    %c0_29 = arith.constant 0 : index
    %c0_30 = arith.constant 0 : index
    %68 = vector.load %arg11[%c0_28, %c0_29, %c0_30] : memref<1x8x324xf32, #tpu.memory_space<vmem>>, vector<1x8x324xf32>
    %69 = vector.shape_cast %68 : vector<1x8x324xf32> to vector<8x324xf32>
    %70 = vector.shape_cast %67 : vector<8x324xf32> to vector<1x8x324xf32>
    tpu.vector_store %arg11[%c0_28, %c0_29, %c0_30], %70 {strides = array<i32>} : memref<1x8x324xf32, #tpu.memory_space<vmem>>, vector<1x8x324xf32>,
    return
  }
  func.func @transform_0(%arg0: i32) -> (i32, i32, i32) {
    %c0_i32 = arith.constant 0 : i32
    %c0_i32_0 = arith.constant 0 : i32
    %c0_i32_1 = arith.constant 0 : i32
    return %arg0, %c0_i32, %c0_i32_0 : i32, i32, i32
  }
  func.func @transform_1(%arg0: i32) -> (i32, i32, i32) {
    %c0_i32 = arith.constant 0 : i32
    %c0_i32_0 = arith.constant 0 : i32
    %c0_i32_1 = arith.constant 0 : i32
    return %arg0, %c0_i32, %c0_i32_0 : i32, i32, i32
  }
  func.func @transform_2(%arg0: i32) -> (i32, i32) {
    %c0_i32 = arith.constant 0 : i32
    %c0_i32_0 = arith.constant 0 : i32
    %c0_i32_1 = arith.constant 0 : i32
    return %c0_i32, %c0_i32_0 : i32, i32
  }
  func.func @transform_3(%arg0: i32) -> (i32, i32) {
    %c0_i32 = arith.constant 0 : i32
    %c0_i32_0 = arith.constant 0 : i32
    %c0_i32_1 = arith.constant 0 : i32
    return %c0_i32, %c0_i32_0 : i32, i32
  }
  func.func @transform_4(%arg0: i32) -> (i32, i32) {
    %c0_i32 = arith.constant 0 : i32
    %c0_i32_0 = arith.constant 0 : i32
    %c0_i32_1 = arith.constant 0 : i32
    return %c0_i32, %c0_i32_0 : i32, i32
  }
  func.func @transform_5(%arg0: i32) -> (i32, i32) {
    %c0_i32 = arith.constant 0 : i32
    %c0_i32_0 = arith.constant 0 : i32
    %c0_i32_1 = arith.constant 0 : i32
    return %c0_i32, %c0_i32_0 : i32, i32
  }
  func.func @transform_6(%arg0: i32) -> (i32, i32) {
    %c0_i32 = arith.constant 0 : i32
    %c0_i32_0 = arith.constant 0 : i32
    %c0_i32_1 = arith.constant 0 : i32
    return %c0_i32, %c0_i32_0 : i32, i32
  }
  func.func @transform_7(%arg0: i32) -> (i32, i32) {
    %c0_i32 = arith.constant 0 : i32
    %c0_i32_0 = arith.constant 0 : i32
    %c0_i32_1 = arith.constant 0 : i32
    return %c0_i32, %c0_i32_0 : i32, i32
  }
  func.func @transform_8(%arg0: i32) -> (i32, i32) {
    %c0_i32 = arith.constant 0 : i32
    %c0_i32_0 = arith.constant 0 : i32
    %c0_i32_1 = arith.constant 0 : i32
    return %c0_i32, %c0_i32_0 : i32, i32
  }
  func.func @transform_9(%arg0: i32) -> (i32, i32) {
    %c0_i32 = arith.constant 0 : i32
    %c0_i32_0 = arith.constant 0 : i32
    %c0_i32_1 = arith.constant 0 : i32
    return %c0_i32, %c0_i32_0 : i32, i32
  }
  func.func @transform_10(%arg0: i32) -> (i32, i32, i32) {
    %c0_i32 = arith.constant 0 : i32
    %c0_i32_0 = arith.constant 0 : i32
    %c0_i32_1 = arith.constant 0 : i32
    return %arg0, %c0_i32, %c0_i32_0 : i32, i32, i32
  }
}

</mosaic_0001>

<llo_original>
// kernel: _lambda_.5
$region0: #{_lambda_.5}
  #allocation0 [shape = 'u32[]', space=smem, size = 0x4, offset = 0x4, fixed_abs, tag = 'smem constant byte address 0x4 - core index']
  #allocation1 [shape = 'u32[144,128]{1,0:T(1,128)}', space=vmem, size = 0x12000, scoped, tag = 'internal scratch']
  %s0 = inlined_call_operand.vmem [shape: f32[2,8,100], index: 0, kind: input, shape index: {}]
  %s1 = inlined_call_operand.hbm [shape: f32[16,72], index: 1, kind: input, shape index: {}]
  %s2 = inlined_call_operand.hbm [shape: f32[16,1], index: 2, kind: input, shape index: {}]
  %s3 = inlined_call_operand.hbm [shape: f32[16,1], index: 3, kind: input, shape index: {}]
  %s4 = inlined_call_operand.hbm [shape: f32[16,144], index: 4, kind: input, shape index: {}]
  %s5 = inlined_call_operand.vmem [shape: f32[16,1], index: 5, kind: input, shape index: {}]
  %s6 = inlined_call_operand.vmem [shape: f32[16,1], index: 6, kind: input, shape index: {}]
  %s7 = inlined_call_operand.hbm [shape: f32[1,100], index: 7, kind: input, shape index: {}]
  %s8 = inlined_call_operand.vmem [shape: f32[2,16,100], index: 8, kind: output, shape index: {}]
  %s9 = sld [smem:[#allocation0]]
  $region85: #{_lambda_.5} parent=0
    _
  %s11 = ssub.s32 1, %s9
  %s12 = scalar_select 0, %s11, %s9
  $region1: #{_lambda_.5} parent=0
    #allocation2 [shape = 'u8[8192]{0}', space=vmem, size = 0x2000, scoped, tag = 'input window, operand 1, single buffered']
    #allocation3 [shape = 's32[2]{0}', space=sflag, size = 0x8, scoped, tag = 'scoped memory for _lambda_.5']
    #allocation4 [shape = 'u8[8192]{0}', space=vmem, size = 0x2000, scoped, tag = 'input window, operand 2, single buffered']
    #allocation5 [shape = 's32[1]{0}', space=sflag, size = 0x4, scoped, tag = 'scoped memory for _lambda_.5']
    #allocation6 [shape = 'u8[8192]{0}', space=vmem, size = 0x2000, scoped, tag = 'input window, operand 3, single buffered']
    #allocation7 [shape = 'u8[16384]{0}', space=vmem, size = 0x4000, scoped, tag = 'input window, operand 4, single buffered']
    #allocation8 [shape = 's32[1]{0}', space=sflag, size = 0x4, scoped, tag = 'scoped memory for _lambda_.5']
    #allocation9 [shape = 'u8[512]{0}', space=vmem, size = 0x400, scoped, tag = 'input window, operand 7, single buffered']
    %13 = vsyncpa [#allocation3], 0
    %14 = vsyncpa [#allocation5], 0
    %15 = vsyncpa [#allocation8], 0
    loop: start=0, step=1, limit=4
    $region2: #{_lambda_.5} parent=1 // loop_pre_header
      _
    $region3: #{_lambda_.5} parent=1 // loop_header
      %s17 = sphi 0, %s21
      %p18 = scmp.ge.s32.totalorder %s17, 4
      %s27 = sphi 0, %s29
      %s30 = sphi 0, %s27
      %s31 = sphi 0, %s30
      %s47 = sphi 0, %s31
      %s51 = sphi 0, %s51
      %s53 = sphi 0, %s51
      %s54 = sphi 0, %s53
      %s68 = sphi 0, %s54
      %s72 = sphi 0, %s72
      %s74 = sphi 0, %s72
      %s75 = sphi 0, %s74
      %s89 = sphi 0, %s75
      %s93 = sphi 0, %s93
      %s95 = sphi 0, %s93
      %s96 = sphi 0, %s95
      %s110 = sphi 0, %s96
      %s114 = sphi 0, %s114
      %s116 = sphi 0, %s114
      %s117 = sphi 0, %s116
      %s131 = sphi 0, %s117
      %s135 = sphi 0, %s135
      %s137 = sphi 0, %s135
      %s138 = sphi 0, %s137
      %s152 = sphi 0, %s138
      %s156 = sphi 0, %s156
      %s158 = sphi 0, %s156
      %s159 = sphi 0, %s158
      %s173 = sphi 0, %s159
      %s177 = sphi 0, %s177
      %s179 = sphi 0, %s177
      %s180 = sphi 0, %s179
      %s194 = sphi 0, %s180
      %s200 = sphi 0, %s202
      %s203 = sphi 0, %s200
      %s204 = sphi 0, %s203
      %s220 = sphi 0, %s204
    $region4: #{_lambda_.5} parent=1 // loop_header_branch
      %20 = sbr.rel (%p18) target = $region8
    $region5: #{_lambda_.5} parent=1 // loop_body
      %s22 = ssub.s32 %s17, 1
      %s23 = ssub.s32 %s17, 2
      %s24 = sadd.s32 %s17, 1
      %s25 = ssub.s32 %s17, %s24
      %p26 = scmp.eq.s32.totalorder %s25, 0
      %s28 = sadd.s32 %s27, 1
      %s29 = scalar_select %p26, %s27, %s28
      %p32 = pneg %p26
      %p33 = scmp.eq.s32.totalorder %s17, 1
      %p34 = por %p32, %p33
      %p35 = scmp.ne.s32.totalorder %s27, %s30
      %p36 = scmp.eq.s32.totalorder %s17, 0
      %p37 = por %p35, %p36
      %p38 = scmp.ne.s32.totalorder %s27, %s30
      %p39 = scmp.eq.s32.totalorder %s22, 1
      %p40 = por %p38, %p39
      %p41 = scmp.ne.s32.totalorder %s30, %s31
      %p42 = scmp.eq.s32.totalorder %s22, 0
      %p43 = por %p41, %p42
      %p44 = scmp.ne.s32.totalorder %s30, %s31
      %p45 = scmp.eq.s32.totalorder %s23, 1
      %p46 = por %p44, %p45
      %p48 = scmp.ne.s32.totalorder %s31, %s47
      %p49 = scmp.eq.s32.totalorder %s23, 0
      %p50 = por %p48, %p49
      %s52 = sadd.s32 %s51, 1
      %p55 = scmp.eq.s32.totalorder %s17, 1
      %p56 = scmp.ne.s32.totalorder %s51, %s53
      %p57 = scmp.eq.s32.totalorder %s17, 0
      %p58 = por %p56, %p57
      %p59 = scmp.ne.s32.totalorder %s51, %s53
      %p60 = scmp.eq.s32.totalorder %s22, 1
      %p61 = por %p59, %p60
      %p62 = scmp.ne.s32.totalorder %s53, %s54
      %p63 = scmp.eq.s32.totalorder %s22, 0
      %p64 = por %p62, %p63
      %p65 = scmp.ne.s32.totalorder %s53, %s54
      %p66 = scmp.eq.s32.totalorder %s23, 1
      %p67 = por %p65, %p66
      %p69 = scmp.ne.s32.totalorder %s54, %s68
      %p70 = scmp.eq.s32.totalorder %s23, 0
      %p71 = por %p69, %p70
      %s73 = sadd.s32 %s72, 1
      %p76 = scmp.eq.s32.totalorder %s17, 1
      %p77 = scmp.ne.s32.totalorder %s72, %s74
      %p78 = scmp.eq.s32.totalorder %s17, 0
      %p79 = por %p77, %p78
      %p80 = scmp.ne.s32.totalorder %s72, %s74
      %p81 = scmp.eq.s32.totalorder %s22, 1
      %p82 = por %p80, %p81
      %p83 = scmp.ne.s32.totalorder %s74, %s75
      %p84 = scmp.eq.s32.totalorder %s22, 0
      %p85 = por %p83, %p84
      %p86 = scmp.ne.s32.totalorder %s74, %s75
      %p87 = scmp.eq.s32.totalorder %s23, 1
      %p88 = por %p86, %p87
      %p90 = scmp.ne.s32.totalorder %s75, %s89
      %p91 = scmp.eq.s32.totalorder %s23, 0
      %p92 = por %p90, %p91
      %s94 = sadd.s32 %s93, 1
      %p97 = scmp.eq.s32.totalorder %s17, 1
      %p98 = scmp.ne.s32.totalorder %s93, %s95
      %p99 = scmp.eq.s32.totalorder %s17, 0
      %p100 = por %p98, %p99
      %p101 = scmp.ne.s32.totalorder %s93, %s95
      %p102 = scmp.eq.s32.totalorder %s22, 1
      %p103 = por %p101, %p102
      %p104 = scmp.ne.s32.totalorder %s95, %s96
      %p105 = scmp.eq.s32.totalorder %s22, 0
      %p106 = por %p104, %p105
      %p107 = scmp.ne.s32.totalorder %s95, %s96
      %p108 = scmp.eq.s32.totalorder %s23, 1
      %p109 = por %p107, %p108
      %p111 = scmp.ne.s32.totalorder %s96, %s110
      %p112 = scmp.eq.s32.totalorder %s23, 0
      %p113 = por %p111, %p112
      %s115 = sadd.s32 %s114, 1
      %p118 = scmp.eq.s32.totalorder %s17, 1
      %p119 = scmp.ne.s32.totalorder %s114, %s116
      %p120 = scmp.eq.s32.totalorder %s17, 0
      %p121 = por %p119, %p120
      %p122 = scmp.ne.s32.totalorder %s114, %s116
      %p123 = scmp.eq.s32.totalorder %s22, 1
      %p124 = por %p122, %p123
      %p125 = scmp.ne.s32.totalorder %s116, %s117
      %p126 = scmp.eq.s32.totalorder %s22, 0
      %p127 = por %p125, %p126
      %p128 = scmp.ne.s32.totalorder %s116, %s117
      %p129 = scmp.eq.s32.totalorder %s23, 1
      %p130 = por %p128, %p129
      %p132 = scmp.ne.s32.totalorder %s117, %s131
      %p133 = scmp.eq.s32.totalorder %s23, 0
      %p134 = por %p132, %p133
      %s136 = sadd.s32 %s135, 1
      %p139 = scmp.eq.s32.totalorder %s17, 1
      %p140 = scmp.ne.s32.totalorder %s135, %s137
      %p141 = scmp.eq.s32.totalorder %s17, 0
      %p142 = por %p140, %p141
      %p143 = scmp.ne.s32.totalorder %s135, %s137
      %p144 = scmp.eq.s32.totalorder %s22, 1
      %p145 = por %p143, %p144
      %p146 = scmp.ne.s32.totalorder %s137, %s138
      %p147 = scmp.eq.s32.totalorder %s22, 0
      %p148 = por %p146, %p147
      %p149 = scmp.ne.s32.totalorder %s137, %s138
      %p150 = scmp.eq.s32.totalorder %s23, 1
      %p151 = por %p149, %p150
      %p153 = scmp.ne.s32.totalorder %s138, %s152
      %p154 = scmp.eq.s32.totalorder %s23, 0
      %p155 = por %p153, %p154
      %s157 = sadd.s32 %s156, 1
      %p160 = scmp.eq.s32.totalorder %s17, 1
      %p161 = scmp.ne.s32.totalorder %s156, %s158
      %p162 = scmp.eq.s32.totalorder %s17, 0
      %p163 = por %p161, %p162
      %p164 = scmp.ne.s32.totalorder %s156, %s158
      %p165 = scmp.eq.s32.totalorder %s22, 1
      %p166 = por %p164, %p165
      %p167 = scmp.ne.s32.totalorder %s158, %s159
      %p168 = scmp.eq.s32.totalorder %s22, 0
      %p169 = por %p167, %p168
      %p170 = scmp.ne.s32.totalorder %s158, %s159
      %p171 = scmp.eq.s32.totalorder %s23, 1
      %p172 = por %p170, %p171
      %p174 = scmp.ne.s32.totalorder %s159, %s173
      %p175 = scmp.eq.s32.totalorder %s23, 0
      %p176 = por %p174, %p175
      %s178 = sadd.s32 %s177, 1
      %p181 = scmp.eq.s32.totalorder %s17, 1
      %p182 = scmp.ne.s32.totalorder %s177, %s179
      %p183 = scmp.eq.s32.totalorder %s17, 0
      %p184 = por %p182, %p183
      %p185 = scmp.ne.s32.totalorder %s177, %s179
      %p186 = scmp.eq.s32.totalorder %s22, 1
      %p187 = por %p185, %p186
      %p188 = scmp.ne.s32.totalorder %s179, %s180
      %p189 = scmp.eq.s32.totalorder %s22, 0
      %p190 = por %p188, %p189
      %p191 = scmp.ne.s32.totalorder %s179, %s180
      %p192 = scmp.eq.s32.totalorder %s23, 1
      %p193 = por %p191, %p192
      %p195 = scmp.ne.s32.totalorder %s180, %s194
      %p196 = scmp.eq.s32.totalorder %s23, 0
      %p197 = por %p195, %p196
      %s198 = ssub.s32 %s17, %s24
      %p199 = scmp.eq.s32.totalorder %s198, 0
      %s201 = sadd.s32 %s200, 1
      %s202 = scalar_select %p199, %s200, %s201
      %p205 = pneg %p199
      %p206 = scmp.eq.s32.totalorder %s17, 1
      %p207 = por %p205, %p206
      %p208 = scmp.ne.s32.totalorder %s200, %s203
      %p209 = scmp.eq.s32.totalorder %s17, 0
      %p210 = por %p208, %p209
      %p211 = scmp.ne.s32.totalorder %s200, %s203
      %p212 = scmp.eq.s32.totalorder %s22, 1
      %p213 = por %p211, %p212
      %p214 = scmp.ne.s32.totalorder %s203, %s204
      %p215 = scmp.eq.s32.totalorder %s22, 0
      %p216 = por %p214, %p215
      %p217 = scmp.ne.s32.totalorder %s203, %s204
      %p218 = scmp.eq.s32.totalorder %s23, 1
      %p219 = por %p217, %p218
      %p221 = scmp.ne.s32.totalorder %s204, %s220
      %p222 = scmp.eq.s32.totalorder %s23, 0
      %p223 = por %p221, %p222
      %p224 = scmp.le.s32.totalorder 1, %s17
      %p225 = scmp.lt.s32.totalorder %s17, 3
      %p226 = pnand %p224, %p225
      %p227 = pneg %p226
      // Predicated region
      $region9: #{_lambda_.5} parent=5 // pred_check
        _
      $region10: #{_lambda_.5} parent=5 // pred_check_branch
        %229 = sbr.rel (%p226) target = $region12
      $region11: #{_lambda_.5} parent=5 // pred_region
        %s230 = ssub.s32 %s17, 1
        // Predicated region
        $region13: #{_lambda_.5} parent=11 // pred_check
          %p231 = pneg %p64
        $region14: #{_lambda_.5} parent=11 // pred_check_branch
          %233 = sbr.rel (%p231) target = $region16
        $region15: #{_lambda_.5} parent=11 // pred_region
          %s235 = ssub.s32 256, 256
          %236 = vsyncadd [#allocation3], %s235
          %s237 = sshll.u32 [#allocation2], 4
          %s238 = int_to_ptr.vmem [resolvable:$true] %s237
          %243 = dma.hbm_to_vmem [thread:$0]  %s1, 256, %s238, [#allocation3], 128, 128, 8
        $region16: #{_lambda_.5} parent=11 // pred_fallthru
          _
        // Predicated region
        $region17: #{_lambda_.5} parent=11 // pred_check
          %p244 = pneg %p85
        $region18: #{_lambda_.5} parent=11 // pred_check_branch
          %246 = sbr.rel (%p244) target = $region20
        $region19: #{_lambda_.5} parent=11 // pred_region
          %s248 = ssub.s32 256, 256
          %249 = vsyncadd [#allocation5], %s248
          %s250 = sshll.u32 [#allocation4], 4
          %s251 = int_to_ptr.vmem [resolvable:$true] %s250
          %256 = dma.hbm_to_vmem [thread:$0]  %s2, 256, %s251, [#allocation5], 128, 128, 8
        $region20: #{_lambda_.5} parent=11 // pred_fallthru
          _
        // Predicated region
        $region21: #{_lambda_.5} parent=11 // pred_check
          %p257 = pneg %p106
        $region22: #{_lambda_.5} parent=11 // pred_check_branch
          %259 = sbr.rel (%p257) target = $region24
        $region23: #{_lambda_.5} parent=11 // pred_region
          %s261 = ssub.s32 256, 256
          %262 = vsyncadd [#allocation5], %s261
          %s263 = sshll.u32 [#allocation6], 4
          %s264 = int_to_ptr.vmem [resolvable:$true] %s263
          %269 = dma.hbm_to_vmem [thread:$0]  %s3, 256, %s264, [#allocation5], 128, 128, 8
        $region24: #{_lambda_.5} parent=11 // pred_fallthru
          _
        // Predicated region
        $region25: #{_lambda_.5} parent=11 // pred_check
          %p270 = pneg %p127
        $region26: #{_lambda_.5} parent=11 // pred_check_branch
          %272 = sbr.rel (%p270) target = $region28
        $region27: #{_lambda_.5} parent=11 // pred_region
          %s274 = ssub.s32 512, 512
          %275 = vsyncadd [#allocation8], %s274
          %s276 = sshll.u32 [#allocation7], 4
          %s277 = int_to_ptr.vmem [resolvable:$true] %s276
          %282 = dma.hbm_to_vmem [thread:$0]  %s4, 512, %s277, [#allocation8], 256, 256, 16
        $region28: #{_lambda_.5} parent=11 // pred_fallthru
          _
        // Predicated region
        $region29: #{_lambda_.5} parent=11 // pred_check
          %p283 = pneg %p148
        $region30: #{_lambda_.5} parent=11 // pred_check_branch
          %285 = sbr.rel (%p283) target = $region32
        $region31: #{_lambda_.5} parent=11 // pred_region
          _
        $region32: #{_lambda_.5} parent=11 // pred_fallthru
          _
        // Predicated region
        $region33: #{_lambda_.5} parent=11 // pred_check
          %p286 = pneg %p169
        $region34: #{_lambda_.5} parent=11 // pred_check_branch
          %288 = sbr.rel (%p286) target = $region36
        $region35: #{_lambda_.5} parent=11 // pred_region
          _
        $region36: #{_lambda_.5} parent=11 // pred_fallthru
          _
        // Predicated region
        $region37: #{_lambda_.5} parent=11 // pred_check
          %p289 = pneg %p190
        $region38: #{_lambda_.5} parent=11 // pred_check_branch
          %291 = sbr.rel (%p289) target = $region40
        $region39: #{_lambda_.5} parent=11 // pred_region
          %s293 = ssub.s32 16, 16
          %294 = vsyncadd [#allocation8], %s293
          %s296 = sshll.u32 [#allocation9], 4
          %s297 = int_to_ptr.vmem [resolvable:$true] %s296
          %299 = dma.hbm_to_vmem [thread:$0]  %s7, 16, %s297, [#allocation8]
        $region40: #{_lambda_.5} parent=11 // pred_fallthru
          _
      $region12: #{_lambda_.5} parent=5 // pred_fallthru
        _
      %p300 = scmp.lt.s32.totalorder %s17, 2
      // Predicated region
      $region41: #{_lambda_.5} parent=5 // pred_check
        %p301 = pneg %p300
      $region42: #{_lambda_.5} parent=5 // pred_check_branch
        %303 = sbr.rel (%p301) target = $region44
      $region43: #{_lambda_.5} parent=5 // pred_region
        // Predicated region
        $region45: #{_lambda_.5} parent=43 // pred_check
          %p304 = pneg %p37
        $region46: #{_lambda_.5} parent=43 // pred_check_branch
          %306 = sbr.rel (%p304) target = $region48
        $region47: #{_lambda_.5} parent=43 // pred_region
          %p307 = scmp.lt.s32.totalorder %s17, 1
          %s308 = scalar_select %p307, %s17, 1
          %s309 = smul.addr %s308, 8
          %s310 = scalar_lea.vmem %s0, %s309
        $region48: #{_lambda_.5} parent=43 // pred_fallthru
          _
      $region44: #{_lambda_.5} parent=5 // pred_fallthru
        _
      %p311 = scmp.le.s32.totalorder 1, %s17
      %p312 = scmp.lt.s32.totalorder %s17, 3
      %p313 = pnand %p311, %p312
      %p314 = pneg %p313
      // Predicated region
      $region49: #{_lambda_.5} parent=5 // pred_check
        _
      $region50: #{_lambda_.5} parent=5 // pred_check_branch
        %316 = sbr.rel (%p313) target = $region52
      $region51: #{_lambda_.5} parent=5 // pred_region
        %s317 = ssub.s32 %s17, 1
        // Predicated region
        $region53: #{_lambda_.5} parent=51 // pred_check
          %p318 = pneg %p64
        $region54: #{_lambda_.5} parent=51 // pred_check_branch
          %320 = sbr.rel (%p318) target = $region56
        $region55: #{_lambda_.5} parent=51 // pred_region
          %321 = dma.done [#allocation3], 256
        $region56: #{_lambda_.5} parent=51 // pred_fallthru
          _
        // Predicated region
        $region57: #{_lambda_.5} parent=51 // pred_check
          %p322 = pneg %p85
        $region58: #{_lambda_.5} parent=51 // pred_check_branch
          %324 = sbr.rel (%p322) target = $region60
        $region59: #{_lambda_.5} parent=51 // pred_region
          %325 = dma.done [#allocation5], 256
        $region60: #{_lambda_.5} parent=51 // pred_fallthru
          _
        // Predicated region
        $region61: #{_lambda_.5} parent=51 // pred_check
          %p326 = pneg %p106
        $region62: #{_lambda_.5} parent=51 // pred_check_branch
          %328 = sbr.rel (%p326) target = $region64
        $region63: #{_lambda_.5} parent=51 // pred_region
          %329 = dma.done [#allocation5], 256
        $region64: #{_lambda_.5} parent=51 // pred_fallthru
          _
        // Predicated region
        $region65: #{_lambda_.5} parent=51 // pred_check
          %p330 = pneg %p127
        $region66: #{_lambda_.5} parent=51 // pred_check_branch
          %332 = sbr.rel (%p330) target = $region68
        $region67: #{_lambda_.5} parent=51 // pred_region
          %333 = dma.done [#allocation8], 512
        $region68: #{_lambda_.5} parent=51 // pred_fallthru
          _
        // Predicated region
        $region69: #{_lambda_.5} parent=51 // pred_check
          %p334 = pneg %p190
        $region70: #{_lambda_.5} parent=51 // pred_check_branch
          %336 = sbr.rel (%p334) target = $region72
        $region71: #{_lambda_.5} parent=51 // pred_region
          %337 = dma.done [#allocation8], 16
        $region72: #{_lambda_.5} parent=51 // pred_fallthru
          _
        %p338 = scmp.lt.s32.totalorder %s22, 1
        %s339 = scalar_select %p338, %s22, 1
        %s340 = smul.addr %s339, 8
        %s341 = scalar_lea.vmem %s0, %s340
        %p342 = pneg %p43
        %p343 = pneg %p40
        %p344 = pneg %p64
        %p345 = pneg %p61
        %p346 = pneg %p85
        %p347 = pneg %p82
        %p348 = pneg %p106
        %p349 = pneg %p103
        %p350 = pneg %p127
        %p351 = pneg %p124
        %p352 = pneg %p148
        %p353 = pneg %p145
        %p354 = pneg %p169
        %p355 = pneg %p166
        %p356 = pneg %p190
        %p357 = pneg %p187
        %p358 = pneg %p216
        %p359 = pneg %p213
        %p360 = scmp.lt.s32.totalorder %s22, 1
        %s361 = scalar_select %p360, %s22, 1
        %s362 = smul.addr %s361, 2
        %s363 = smul.addr %s362, 8
        %s364 = scalar_lea.vmem %s8, %s363
        %p365 = scmp.lt.s32.totalorder %s22, 1
        %s366 = scalar_select %p365, %s22, 1
        %s367 = smul.addr %s366, 8
        %s368 = scalar_lea.vmem %s0, %s367
        %p369 = scmp.lt.s32.totalorder %s22, 1
        %s370 = scalar_select %p369, %s22, 1
        %s371 = smul.addr %s370, 2
        %s372 = smul.addr %s371, 8
        %s373 = scalar_lea.vmem %s8, %s372
        %v374 = vld [vmem:[%s368] sm:$0xff]
        %v375 = vld [vmem:[#allocation9] sm:$0x1]
        %v376 = vld [vmem:[#allocation2] sm:$0xff]
        %v377 = vld [vmem:[#allocation2 + $0x8] sm:$0xff]
        %379 = vrot.lane.b32.xlu0 %v374, 11
        %v380 = vpop.permute.xlu0 %379
        %vm382 = vcmask 89088
        %v383 = vsel %vm382, 0.0, %v380
        %vm384 = vcmask 908288
        %v385 = vsel %vm384, %v383, 0.0
        %387 = vrot.lane.b32.xlu0 %v385, 127
        %v388 = vpop.permute.xlu0 %387
        %390 = vrot.lane.b32.xlu0 %v385, 126
        %v391 = vpop.permute.xlu0 %390
        %393 = vrot.lane.b32.xlu0 %v385, 118
        %v394 = vpop.permute.xlu0 %393
        %396 = vrot.lane.b32.xlu0 %v385, 117
        %v397 = vpop.permute.xlu0 %396
        %399 = vrot.lane.b32.xlu0 %v385, 116
        %v400 = vpop.permute.xlu0 %399
        %402 = vrot.lane.b32.xlu0 %v385, 108
        %v403 = vpop.permute.xlu0 %402
        %405 = vrot.lane.b32.xlu0 %v385, 107
        %v406 = vpop.permute.xlu0 %405
        %408 = vrot.lane.b32.xlu0 %v385, 106
        %v409 = vpop.permute.xlu0 %408
        %vm411 = vcmask 588800
        %v413 = vsel %vm411, %v376, 0
        %v416 = vsel %vm411, %v377, 0
        %418 = vmatprep.subr.mxu0 0.0
        %419 = vmatpush1.msra.mxu0 0.0
        %420 = vmatprep.subr.mxu0 0.0
        %421 = vmatpush1.msra.mxu0 0.0
        %422 = vmatprep.subr.mxu0 0.0
        %423 = vmatpush1.msra.mxu0 0.0
        %424 = vmatprep.subr.mxu0 0.0
        %425 = vmatpush1.msra.mxu0 0.0
        %426 = vmatprep.subr.mxu0 0.0
        %427 = vmatpush1.msra.mxu0 0.0
        %428 = vmatprep.subr.mxu0 0.0
        %429 = vmatpush1.msra.mxu0 0.0
        %430 = vmatprep.subr.mxu0 0.0
        %431 = vmatpush1.msra.mxu0 0.0
        %432 = vmatprep.subr.mxu0 0.0
        %433 = vmatpush1.msra.mxu0 %v409
        %434 = vmatprep.subr.mxu0 0.0
        %435 = vmatpush1.msra.mxu0 %v406
        %436 = vmatprep.subr.mxu0 0.0
        %437 = vmatpush1.msra.mxu0 %v403
        %438 = vmatprep.subr.mxu0 0.0
        %439 = vmatpush1.msra.mxu0 %v400
        %440 = vmatprep.subr.mxu0 0.0
        %441 = vmatpush1.msra.mxu0 %v397
        %442 = vmatprep.subr.mxu0 0.0
        %443 = vmatpush1.msra.mxu0 %v394
        %444 = vmatprep.subr.mxu0 0.0
        %445 = vmatpush1.msra.mxu0 %v391
        %446 = vmatprep.subr.mxu0 0.0
        %447 = vmatpush1.msra.mxu0 %v388
        %448 = vmatprep.subr.mxu0 0.0
        %449 = vmatpush1.msra.mxu0 %v385
        %450 = vmatprep.subr.mxu0 0.0
        %451 = vmatpush2.msra.mxu0 0.0
        %452 = vmatprep.subr.mxu0 0.0
        %453 = vmatpush2.msra.mxu0 0.0
        %454 = vmatprep.subr.mxu0 0.0
        %455 = vmatpush2.msra.mxu0 0.0
        %456 = vmatprep.subr.mxu0 0.0
        %457 = vmatpush2.msra.mxu0 0.0
        %458 = vmatprep.subr.mxu0 0.0
        %459 = vmatpush2.msra.mxu0 0.0
        %460 = vmatprep.subr.mxu0 0.0
        %461 = vmatpush2.msra.mxu0 0.0
        %462 = vmatprep.subr.mxu0 0.0
        %463 = vmatpush2.msra.mxu0 0.0
        %464 = vmatprep.subr.mxu0 0.0
        %465 = vmatpush2.msra.mxu0 0.0
        %466 = vmatprep.subr.mxu0 0.0
        %467 = vmatpush2.msra.mxu0 0.0
        %468 = vmatprep.subr.mxu0 0.0
        %469 = vmatpush2.msra.mxu0 0.0
        %470 = vmatprep.subr.mxu0 0.0
        %471 = vmatpush2.msra.mxu0 0.0
        %472 = vmatprep.subr.mxu0 0.0
        %473 = vmatpush2.msra.mxu0 0.0
        %474 = vmatprep.subr.mxu0 0.0
        %475 = vmatpush2.msra.mxu0 0.0
        %476 = vmatprep.subr.mxu0 0.0
        %477 = vmatpush2.msra.mxu0 0.0
        %478 = vmatprep.subr.mxu0 0.0
        %479 = vmatpush2.msra.mxu0 0.0
        %480 = vmatprep.subr.mxu0 0.0
        %481 = vmatpush2.msra.mxu0 0.0
        %482 = vmatprep.mubr.f32.mxu0 0.0
        %483 = vmatmul.mubr.f32.gmra.mxu0 %v413
        %v484 = vpop.f32.mrf.mxu0
        %v485 = vadd.f32 0.0, %v484
        %v486 = vpop.f32.mrf.mxu0
        %487 = vmatprep.mubr.f32.mxu0 0.0
        %488 = vmatmul.mubr.f32.gmra.mxu0 %v416
        %v489 = vpop.f32.mrf.mxu0
        %v490 = vadd.f32 0.0, %v489
        %v491 = vpop.f32.mrf.mxu0
        %492 = vdwg.mxu0
        %v493 = vld [vmem:[#allocation4] sm:$0xff]
        %v494 = vld [vmem:[#allocation4 + $0x8] sm:$0xff]
        %v495 = vld [vmem:[#allocation6] sm:$0xff]
        %v496 = vld [vmem:[#allocation6 + $0x8] sm:$0xff]
        %498 = vset.pattern.permute.xlu0 0
        %499 = vperm.xlu0 %498, %v493
        %v500 = vpop.permute.xlu0 %499
        %503 = vset.pattern.permute.xlu0 0
        %504 = vperm.xlu0 %503, %v494
        %v505 = vpop.permute.xlu0 %504
        %v507 = vmul.f32 %v485, %v500
        %v508 = vmul.f32 %v490, %v505
        %510 = vset.pattern.permute.xlu0 0
        %511 = vperm.xlu0 %510, %v495
        %v512 = vpop.permute.xlu0 %511
        %515 = vset.pattern.permute.xlu0 0
        %516 = vperm.xlu0 %515, %v496
        %v517 = vpop.permute.xlu0 %516
        %v519 = vadd.f32 %v507, %v512
        %v520 = vadd.f32 %v508, %v517
        %vm521 = vcmp.ge.f32.partialorder %v519, 0.0
        %vm522 = vcmp.ge.f32.partialorder %v520, 0.0
        %v523 = vmul.f32 %v519, 0.2
        %v524 = vmul.f32 %v520, 0.2
        %v525 = vsel %vm521, %v519, %v523
        %v526 = vsel %vm522, %v520, %v524
        %v528 = vlaneseq
        %v529 = vshrl.u32 %v528, 7
        %v530 = vsub.s32 0, %v529
        %v531 = vrot.slane %v375, %v530
        %v533 = vmul.f32 %v525, %v531
        %v534 = vmul.f32 %v526, %v531
        %v535 = vld [vmem:[#allocation7] sm:$0xff]
        %v536 = vld [vmem:[#allocation7 + $0x8] sm:$0xff]
        %v537 = vld [vmem:[#allocation7 + $0x10] sm:$0xff]
        %v538 = vld [vmem:[#allocation7 + $0x18] sm:$0xff]
        %541 = vrot.lane.b32.xlu0 %v533, 11
        %v542 = vpop.permute.xlu0 %541
        %543 = vrot.lane.b32.xlu0 %v534, 11
        %v544 = vpop.permute.xlu0 %543
        %v547 = vsel %vm382, 0.0, %v542
        %v548 = vsel %vm382, 0.0, %v544
        %v549 = vsel %vm384, %v547, 0.0
        %v550 = vsel %vm384, %v548, 0.0
        %553 = vrot.lane.b32.xlu0 %v549, 127
        %v554 = vpop.permute.xlu0 %553
        %555 = vrot.lane.b32.xlu0 %v550, 127
        %v556 = vpop.permute.xlu0 %555
        %559 = vrot.lane.b32.xlu0 %v549, 126
        %v560 = vpop.permute.xlu0 %559
        %561 = vrot.lane.b32.xlu0 %v550, 126
        %v562 = vpop.permute.xlu0 %561
        %565 = vrot.lane.b32.xlu0 %v549, 118
        %v566 = vpop.permute.xlu0 %565
        %567 = vrot.lane.b32.xlu0 %v550, 118
        %v568 = vpop.permute.xlu0 %567
        %571 = vrot.lane.b32.xlu0 %v549, 117
        %v572 = vpop.permute.xlu0 %571
        %573 = vrot.lane.b32.xlu0 %v550, 117
        %v574 = vpop.permute.xlu0 %573
        %577 = vrot.lane.b32.xlu0 %v549, 116
        %v578 = vpop.permute.xlu0 %577
        %579 = vrot.lane.b32.xlu0 %v550, 116
        %v580 = vpop.permute.xlu0 %579
        %583 = vrot.lane.b32.xlu0 %v549, 108
        %v584 = vpop.permute.xlu0 %583
        %585 = vrot.lane.b32.xlu0 %v550, 108
        %v586 = vpop.permute.xlu0 %585
        %589 = vrot.lane.b32.xlu0 %v549, 107
        %v590 = vpop.permute.xlu0 %589
        %591 = vrot.lane.b32.xlu0 %v550, 107
        %v592 = vpop.permute.xlu0 %591
        %595 = vrot.lane.b32.xlu0 %v549, 106
        %v596 = vpop.permute.xlu0 %595
        %597 = vrot.lane.b32.xlu0 %v550, 106
        %v598 = vpop.permute.xlu0 %597
        %vm601 = vcmask 130048
        %v603 = vsel %vm601, %v536, 0
        %v606 = vsel %vm601, %v538, 0
        %608 = vmatprep.subr.mxu0 0.0
        %609 = vmatpush1.msra.mxu0 %v592
        %610 = vmatprep.subr.mxu0 0.0
        %611 = vmatpush1.msra.mxu0 %v590
        %612 = vmatprep.subr.mxu0 0.0
        %613 = vmatpush1.msra.mxu0 %v586
        %614 = vmatprep.subr.mxu0 0.0
        %615 = vmatpush1.msra.mxu0 %v584
        %616 = vmatprep.subr.mxu0 0.0
        %617 = vmatpush1.msra.mxu0 %v580
        %618 = vmatprep.subr.mxu0 0.0
        %619 = vmatpush1.msra.mxu0 %v578
        %620 = vmatprep.subr.mxu0 0.0
        %621 = vmatpush1.msra.mxu0 %v574
        %622 = vmatprep.subr.mxu0 0.0
        %623 = vmatpush1.msra.mxu0 %v572
        %624 = vmatprep.subr.mxu0 0.0
        %625 = vmatpush1.msra.mxu0 %v568
        %626 = vmatprep.subr.mxu0 0.0
        %627 = vmatpush1.msra.mxu0 %v566
        %628 = vmatprep.subr.mxu0 0.0
        %629 = vmatpush1.msra.mxu0 %v562
        %630 = vmatprep.subr.mxu0 0.0
        %631 = vmatpush1.msra.mxu0 %v560
        %632 = vmatprep.subr.mxu0 0.0
        %633 = vmatpush1.msra.mxu0 %v556
        %634 = vmatprep.subr.mxu0 0.0
        %635 = vmatpush1.msra.mxu0 %v554
        %636 = vmatprep.subr.mxu0 0.0
        %637 = vmatpush1.msra.mxu0 %v550
        %638 = vmatprep.subr.mxu0 0.0
        %639 = vmatpush1.msra.mxu0 %v549
        %640 = vmatprep.subr.mxu0 0.0
        %641 = vmatpush2.msra.mxu0 0.0
        %642 = vmatprep.subr.mxu0 0.0
        %643 = vmatpush2.msra.mxu0 0.0
        %644 = vmatprep.subr.mxu0 0.0
        %645 = vmatpush2.msra.mxu0 0.0
        %646 = vmatprep.subr.mxu0 0.0
        %647 = vmatpush2.msra.mxu0 0.0
        %648 = vmatprep.subr.mxu0 0.0
        %649 = vmatpush2.msra.mxu0 0.0
        %650 = vmatprep.subr.mxu0 0.0
        %651 = vmatpush2.msra.mxu0 0.0
        %652 = vmatprep.subr.mxu0 0.0
        %653 = vmatpush2.msra.mxu0 0.0
        %654 = vmatprep.subr.mxu0 0.0
        %655 = vmatpush2.msra.mxu0 0.0
        %656 = vmatprep.subr.mxu0 0.0
        %657 = vmatpush2.msra.mxu0 0.0
        %658 = vmatprep.subr.mxu0 0.0
        %659 = vmatpush2.msra.mxu0 0.0
        %660 = vmatprep.subr.mxu0 0.0
        %661 = vmatpush2.msra.mxu0 0.0
        %662 = vmatprep.subr.mxu0 0.0
        %663 = vmatpush2.msra.mxu0 0.0
        %664 = vmatprep.subr.mxu0 0.0
        %665 = vmatpush2.msra.mxu0 0.0
        %666 = vmatprep.subr.mxu0 0.0
        %667 = vmatpush2.msra.mxu0 0.0
        %668 = vmatprep.subr.mxu0 0.0
        %669 = vmatpush2.msra.mxu0 %v598
        %670 = vmatprep.subr.mxu0 0.0
        %671 = vmatpush2.msra.mxu0 %v596
        %672 = vmatprep.mubr.f32.mxu0 %v603
        %673 = vmatmul.mubr.f32.gmra.mxu0 %v535
        %v674 = vpop.f32.mrf.mxu0
        %v675 = vadd.f32 0.0, %v674
        %v676 = vpop.f32.mrf.mxu0
        %677 = vmatprep.mubr.f32.mxu0 %v606
        %678 = vmatmul.mubr.f32.gmra.mxu0 %v537
        %v679 = vpop.f32.mrf.mxu0
        %v680 = vadd.f32 0.0, %v679
        %v681 = vpop.f32.mrf.mxu0
        %682 = vdwg.mxu0
        %v683 = vld [vmem:[%s5] sm:$0xff]
        %v684 = vld [vmem:[%s5 + $0x8] sm:$0xff]
        %v685 = vld [vmem:[%s6] sm:$0xff]
        %v686 = vld [vmem:[%s6 + $0x8] sm:$0xff]
        %688 = vset.pattern.permute.xlu0 0
        %689 = vperm.xlu0 %688, %v683
        %v690 = vpop.permute.xlu0 %689
        %693 = vset.pattern.permute.xlu0 0
        %694 = vperm.xlu0 %693, %v684
        %v695 = vpop.permute.xlu0 %694
        %v697 = vmul.f32 %v675, %v690
        %v698 = vmul.f32 %v680, %v695
        %700 = vset.pattern.permute.xlu0 0
        %701 = vperm.xlu0 %700, %v685
        %v702 = vpop.permute.xlu0 %701
        %705 = vset.pattern.permute.xlu0 0
        %706 = vperm.xlu0 %705, %v686
        %v707 = vpop.permute.xlu0 %706
        %v709 = vadd.f32 %v697, %v702
        %v710 = vadd.f32 %v698, %v707
        %vm711 = vcmp.ge.f32.partialorder %v709, 0.0
        %vm712 = vcmp.ge.f32.partialorder %v710, 0.0
        %v713 = vmul.f32 %v709, 0.2
        %v714 = vmul.f32 %v710, 0.2
        %v715 = vsel %vm711, %v709, %v713
        %v716 = vsel %vm712, %v710, %v714
        %v717 = vmul.f32 %v715, %v531
        %v718 = vmul.f32 %v716, %v531
        %vm719 = vcmask 818176
        %720 = vst.msk [vmem:[%s373] sm:$0xff] %vm719, %v717
        %721 = vst.msk [vmem:[%s373 + $0x8] sm:$0xff] %vm719, %v718
        %p722 = scmp.lt.s32.totalorder %s22, 1
        %s723 = scalar_select %p722, %s22, 1
        %s724 = smul.addr %s723, 2
        %s725 = smul.addr %s724, 8
        %s726 = scalar_lea.vmem %s8, %s725
        // Predicated region
        $region73: #{_lambda_.5} parent=51 // pred_check
          %p727 = pneg %p213
        $region74: #{_lambda_.5} parent=51 // pred_check_branch
          %729 = sbr.rel (%p727) target = $region76
        $region75: #{_lambda_.5} parent=51 // pred_region
          _
        $region76: #{_lambda_.5} parent=51 // pred_fallthru
          _
      $region52: #{_lambda_.5} parent=5 // pred_fallthru
        _
      %p730 = scmp.le.s32.totalorder 2, %s17
      // Predicated region
      $region77: #{_lambda_.5} parent=5 // pred_check
        %p731 = pneg %p730
      $region78: #{_lambda_.5} parent=5 // pred_check_branch
        %733 = sbr.rel (%p731) target = $region80
      $region79: #{_lambda_.5} parent=5 // pred_region
        %s734 = ssub.s32 %s17, 2
        // Predicated region
        $region81: #{_lambda_.5} parent=79 // pred_check
          %p735 = pneg %p219
        $region82: #{_lambda_.5} parent=79 // pred_check_branch
          %737 = sbr.rel (%p735) target = $region84
        $region83: #{_lambda_.5} parent=79 // pred_region
          %p738 = scmp.lt.s32.totalorder %s23, 1
          %s739 = scalar_select %p738, %s23, 1
          %s740 = smul.addr %s739, 2
          %s741 = smul.addr %s740, 8
          %s742 = scalar_lea.vmem %s8, %s741
        $region84: #{_lambda_.5} parent=79 // pred_fallthru
          _
      $region80: #{_lambda_.5} parent=5 // pred_fallthru
        _
    $region6: #{_lambda_.5} parent=1 // loop_footer
      %s21 = sadd.s32 1, %s17
    $region7: #{_lambda_.5} parent=1 // loop_footer_branch
      %16 = sbr.rel target = $region3
    $region8: #{_lambda_.5} parent=1 // loop_exit
      _
    %743 = vsyncpa [#allocation3], 1
    %s744 = scalar_lea.sflag [#allocation3], 1
    %745 = vsyncpa %s744, 1
    %746 = vsyncpa [#allocation5], 1
    %747 = vsyncpa [#allocation8], 1

// kernel: _lambda_.4
$region0: #{_lambda_.4}
  #allocation0 [shape = 'u32[]', space=smem, size = 0x4, offset = 0x4, fixed_abs, tag = 'smem constant byte address 0x4 - core index']
  #allocation1 [shape = 'u32[144,128]{1,0:T(1,128)}', space=vmem, size = 0x12000, scoped, tag = 'internal scratch']
  %s0 = inlined_call_operand.vmem [shape: f32[2,8,324], index: 0, kind: input, shape index: {}]
  %s1 = inlined_call_operand.hbm [shape: f32[8,72], index: 1, kind: input, shape index: {}]
  %s2 = inlined_call_operand.hbm [shape: f32[8,1], index: 2, kind: input, shape index: {}]
  %s3 = inlined_call_operand.hbm [shape: f32[8,1], index: 3, kind: input, shape index: {}]
  %s4 = inlined_call_operand.hbm [shape: f32[8,72], index: 4, kind: input, shape index: {}]
  %s5 = inlined_call_operand.hbm [shape: f32[8,1], index: 5, kind: input, shape index: {}]
  %s6 = inlined_call_operand.vmem [shape: f32[8,1], index: 6, kind: input, shape index: {}]
  %s7 = inlined_call_operand.vmem [shape: f32[1,324], index: 7, kind: input, shape index: {}]
  %s8 = inlined_call_operand.vmem [shape: f32[324,100], index: 8, kind: input, shape index: {}]
  %s9 = inlined_call_operand.vmem [shape: f32[2,8,324], index: 9, kind: output, shape index: {0}]
  %s10 = inlined_call_operand.vmem [shape: f32[2,8,100], index: 10, kind: output, shape index: {1}]
  %11 = xla_tuple %s9, %s10
  %s12 = sld [smem:[#allocation0]]
  $region97: #{_lambda_.4} parent=0
    _
  %s14 = ssub.s32 1, %s12
  %s15 = scalar_select 0, %s14, %s12
  $region1: #{_lambda_.4} parent=0
    #allocation2 [shape = 'u8[4096]{0}', space=vmem, size = 0x1000, scoped, tag = 'input window, operand 1, single buffered']
    #allocation3 [shape = 's32[2]{0}', space=sflag, size = 0x8, scoped, tag = 'scoped memory for _lambda_.4']
    #allocation4 [shape = 'u8[4096]{0}', space=vmem, size = 0x1000, scoped, tag = 'input window, operand 2, single buffered']
    #allocation5 [shape = 's32[1]{0}', space=sflag, size = 0x4, scoped, tag = 'scoped memory for _lambda_.4']
    #allocation6 [shape = 'u8[4096]{0}', space=vmem, size = 0x1000, scoped, tag = 'input window, operand 3, single buffered']
    #allocation7 [shape = 'u8[4096]{0}', space=vmem, size = 0x1000, scoped, tag = 'input window, operand 4, single buffered']
    #allocation8 [shape = 's32[1]{0}', space=sflag, size = 0x4, scoped, tag = 'scoped memory for _lambda_.4']
    #allocation9 [shape = 'u8[4096]{0}', space=vmem, size = 0x1000, scoped, tag = 'input window, operand 5, single buffered']
    %16 = vsyncpa [#allocation3], 0
    %17 = vsyncpa [#allocation5], 0
    %18 = vsyncpa [#allocation8], 0
    loop: start=0, step=1, limit=4
    $region2: #{_lambda_.4} parent=1 // loop_pre_header
      _
    $region3: #{_lambda_.4} parent=1 // loop_header
      %s20 = sphi 0, %s24
      %p21 = scmp.ge.s32.totalorder %s20, 4
      %s30 = sphi 0, %s32
      %s33 = sphi 0, %s30
      %s34 = sphi 0, %s33
      %s50 = sphi 0, %s34
      %s54 = sphi 0, %s54
      %s56 = sphi 0, %s54
      %s57 = sphi 0, %s56
      %s71 = sphi 0, %s57
      %s75 = sphi 0, %s75
      %s77 = sphi 0, %s75
      %s78 = sphi 0, %s77
      %s92 = sphi 0, %s78
      %s96 = sphi 0, %s96
      %s98 = sphi 0, %s96
      %s99 = sphi 0, %s98
      %s113 = sphi 0, %s99
      %s117 = sphi 0, %s117
      %s119 = sphi 0, %s117
      %s120 = sphi 0, %s119
      %s134 = sphi 0, %s120
      %s138 = sphi 0, %s138
      %s140 = sphi 0, %s138
      %s141 = sphi 0, %s140
      %s155 = sphi 0, %s141
      %s159 = sphi 0, %s159
      %s161 = sphi 0, %s159
      %s162 = sphi 0, %s161
      %s176 = sphi 0, %s162
      %s180 = sphi 0, %s180
      %s182 = sphi 0, %s180
      %s183 = sphi 0, %s182
      %s197 = sphi 0, %s183
      %s201 = sphi 0, %s201
      %s203 = sphi 0, %s201
      %s204 = sphi 0, %s203
      %s218 = sphi 0, %s204
      %s224 = sphi 0, %s226
      %s227 = sphi 0, %s224
      %s228 = sphi 0, %s227
      %s244 = sphi 0, %s228
      %s250 = sphi 0, %s252
      %s253 = sphi 0, %s250
      %s254 = sphi 0, %s253
      %s270 = sphi 0, %s254
    $region4: #{_lambda_.4} parent=1 // loop_header_branch
      %23 = sbr.rel (%p21) target = $region8
    $region5: #{_lambda_.4} parent=1 // loop_body
      %s25 = ssub.s32 %s20, 1
      %s26 = ssub.s32 %s20, 2
      %s27 = sadd.s32 %s20, 1
      %s28 = ssub.s32 %s20, %s27
      %p29 = scmp.eq.s32.totalorder %s28, 0
      %s31 = sadd.s32 %s30, 1
      %s32 = scalar_select %p29, %s30, %s31
      %p35 = pneg %p29
      %p36 = scmp.eq.s32.totalorder %s20, 1
      %p37 = por %p35, %p36
      %p38 = scmp.ne.s32.totalorder %s30, %s33
      %p39 = scmp.eq.s32.totalorder %s20, 0
      %p40 = por %p38, %p39
      %p41 = scmp.ne.s32.totalorder %s30, %s33
      %p42 = scmp.eq.s32.totalorder %s25, 1
      %p43 = por %p41, %p42
      %p44 = scmp.ne.s32.totalorder %s33, %s34
      %p45 = scmp.eq.s32.totalorder %s25, 0
      %p46 = por %p44, %p45
      %p47 = scmp.ne.s32.totalorder %s33, %s34
      %p48 = scmp.eq.s32.totalorder %s26, 1
      %p49 = por %p47, %p48
      %p51 = scmp.ne.s32.totalorder %s34, %s50
      %p52 = scmp.eq.s32.totalorder %s26, 0
      %p53 = por %p51, %p52
      %s55 = sadd.s32 %s54, 1
      %p58 = scmp.eq.s32.totalorder %s20, 1
      %p59 = scmp.ne.s32.totalorder %s54, %s56
      %p60 = scmp.eq.s32.totalorder %s20, 0
      %p61 = por %p59, %p60
      %p62 = scmp.ne.s32.totalorder %s54, %s56
      %p63 = scmp.eq.s32.totalorder %s25, 1
      %p64 = por %p62, %p63
      %p65 = scmp.ne.s32.totalorder %s56, %s57
      %p66 = scmp.eq.s32.totalorder %s25, 0
      %p67 = por %p65, %p66
      %p68 = scmp.ne.s32.totalorder %s56, %s57
      %p69 = scmp.eq.s32.totalorder %s26, 1
      %p70 = por %p68, %p69
      %p72 = scmp.ne.s32.totalorder %s57, %s71
      %p73 = scmp.eq.s32.totalorder %s26, 0
      %p74 = por %p72, %p73
      %s76 = sadd.s32 %s75, 1
      %p79 = scmp.eq.s32.totalorder %s20, 1
      %p80 = scmp.ne.s32.totalorder %s75, %s77
      %p81 = scmp.eq.s32.totalorder %s20, 0
      %p82 = por %p80, %p81
      %p83 = scmp.ne.s32.totalorder %s75, %s77
      %p84 = scmp.eq.s32.totalorder %s25, 1
      %p85 = por %p83, %p84
      %p86 = scmp.ne.s32.totalorder %s77, %s78
      %p87 = scmp.eq.s32.totalorder %s25, 0
      %p88 = por %p86, %p87
      %p89 = scmp.ne.s32.totalorder %s77, %s78
      %p90 = scmp.eq.s32.totalorder %s26, 1
      %p91 = por %p89, %p90
      %p93 = scmp.ne.s32.totalorder %s78, %s92
      %p94 = scmp.eq.s32.totalorder %s26, 0
      %p95 = por %p93, %p94
      %s97 = sadd.s32 %s96, 1
      %p100 = scmp.eq.s32.totalorder %s20, 1
      %p101 = scmp.ne.s32.totalorder %s96, %s98
      %p102 = scmp.eq.s32.totalorder %s20, 0
      %p103 = por %p101, %p102
      %p104 = scmp.ne.s32.totalorder %s96, %s98
      %p105 = scmp.eq.s32.totalorder %s25, 1
      %p106 = por %p104, %p105
      %p107 = scmp.ne.s32.totalorder %s98, %s99
      %p108 = scmp.eq.s32.totalorder %s25, 0
      %p109 = por %p107, %p108
      %p110 = scmp.ne.s32.totalorder %s98, %s99
      %p111 = scmp.eq.s32.totalorder %s26, 1
      %p112 = por %p110, %p111
      %p114 = scmp.ne.s32.totalorder %s99, %s113
      %p115 = scmp.eq.s32.totalorder %s26, 0
      %p116 = por %p114, %p115
      %s118 = sadd.s32 %s117, 1
      %p121 = scmp.eq.s32.totalorder %s20, 1
      %p122 = scmp.ne.s32.totalorder %s117, %s119
      %p123 = scmp.eq.s32.totalorder %s20, 0
      %p124 = por %p122, %p123
      %p125 = scmp.ne.s32.totalorder %s117, %s119
      %p126 = scmp.eq.s32.totalorder %s25, 1
      %p127 = por %p125, %p126
      %p128 = scmp.ne.s32.totalorder %s119, %s120
      %p129 = scmp.eq.s32.totalorder %s25, 0
      %p130 = por %p128, %p129
      %p131 = scmp.ne.s32.totalorder %s119, %s120
      %p132 = scmp.eq.s32.totalorder %s26, 1
      %p133 = por %p131, %p132
      %p135 = scmp.ne.s32.totalorder %s120, %s134
      %p136 = scmp.eq.s32.totalorder %s26, 0
      %p137 = por %p135, %p136
      %s139 = sadd.s32 %s138, 1
      %p142 = scmp.eq.s32.totalorder %s20, 1
      %p143 = scmp.ne.s32.totalorder %s138, %s140
      %p144 = scmp.eq.s32.totalorder %s20, 0
      %p145 = por %p143, %p144
      %p146 = scmp.ne.s32.totalorder %s138, %s140
      %p147 = scmp.eq.s32.totalorder %s25, 1
      %p148 = por %p146, %p147
      %p149 = scmp.ne.s32.totalorder %s140, %s141
      %p150 = scmp.eq.s32.totalorder %s25, 0
      %p151 = por %p149, %p150
      %p152 = scmp.ne.s32.totalorder %s140, %s141
      %p153 = scmp.eq.s32.totalorder %s26, 1
      %p154 = por %p152, %p153
      %p156 = scmp.ne.s32.totalorder %s141, %s155
      %p157 = scmp.eq.s32.totalorder %s26, 0
      %p158 = por %p156, %p157
      %s160 = sadd.s32 %s159, 1
      %p163 = scmp.eq.s32.totalorder %s20, 1
      %p164 = scmp.ne.s32.totalorder %s159, %s161
      %p165 = scmp.eq.s32.totalorder %s20, 0
      %p166 = por %p164, %p165
      %p167 = scmp.ne.s32.totalorder %s159, %s161
      %p168 = scmp.eq.s32.totalorder %s25, 1
      %p169 = por %p167, %p168
      %p170 = scmp.ne.s32.totalorder %s161, %s162
      %p171 = scmp.eq.s32.totalorder %s25, 0
      %p172 = por %p170, %p171
      %p173 = scmp.ne.s32.totalorder %s161, %s162
      %p174 = scmp.eq.s32.totalorder %s26, 1
      %p175 = por %p173, %p174
      %p177 = scmp.ne.s32.totalorder %s162, %s176
      %p178 = scmp.eq.s32.totalorder %s26, 0
      %p179 = por %p177, %p178
      %s181 = sadd.s32 %s180, 1
      %p184 = scmp.eq.s32.totalorder %s20, 1
      %p185 = scmp.ne.s32.totalorder %s180, %s182
      %p186 = scmp.eq.s32.totalorder %s20, 0
      %p187 = por %p185, %p186
      %p188 = scmp.ne.s32.totalorder %s180, %s182
      %p189 = scmp.eq.s32.totalorder %s25, 1
      %p190 = por %p188, %p189
      %p191 = scmp.ne.s32.totalorder %s182, %s183
      %p192 = scmp.eq.s32.totalorder %s25, 0
      %p193 = por %p191, %p192
      %p194 = scmp.ne.s32.totalorder %s182, %s183
      %p195 = scmp.eq.s32.totalorder %s26, 1
      %p196 = por %p194, %p195
      %p198 = scmp.ne.s32.totalorder %s183, %s197
      %p199 = scmp.eq.s32.totalorder %s26, 0
      %p200 = por %p198, %p199
      %s202 = sadd.s32 %s201, 1
      %p205 = scmp.eq.s32.totalorder %s20, 1
      %p206 = scmp.ne.s32.totalorder %s201, %s203
      %p207 = scmp.eq.s32.totalorder %s20, 0
      %p208 = por %p206, %p207
      %p209 = scmp.ne.s32.totalorder %s201, %s203
      %p210 = scmp.eq.s32.totalorder %s25, 1
      %p211 = por %p209, %p210
      %p212 = scmp.ne.s32.totalorder %s203, %s204
      %p213 = scmp.eq.s32.totalorder %s25, 0
      %p214 = por %p212, %p213
      %p215 = scmp.ne.s32.totalorder %s203, %s204
      %p216 = scmp.eq.s32.totalorder %s26, 1
      %p217 = por %p215, %p216
      %p219 = scmp.ne.s32.totalorder %s204, %s218
      %p220 = scmp.eq.s32.totalorder %s26, 0
      %p221 = por %p219, %p220
      %s222 = ssub.s32 %s20, %s27
      %p223 = scmp.eq.s32.totalorder %s222, 0
      %s225 = sadd.s32 %s224, 1
      %s226 = scalar_select %p223, %s224, %s225
      %p229 = pneg %p223
      %p230 = scmp.eq.s32.totalorder %s20, 1
      %p231 = por %p229, %p230
      %p232 = scmp.ne.s32.totalorder %s224, %s227
      %p233 = scmp.eq.s32.totalorder %s20, 0
      %p234 = por %p232, %p233
      %p235 = scmp.ne.s32.totalorder %s224, %s227
      %p236 = scmp.eq.s32.totalorder %s25, 1
      %p237 = por %p235, %p236
      %p238 = scmp.ne.s32.totalorder %s227, %s228
      %p239 = scmp.eq.s32.totalorder %s25, 0
      %p240 = por %p238, %p239
      %p241 = scmp.ne.s32.totalorder %s227, %s228
      %p242 = scmp.eq.s32.totalorder %s26, 1
      %p243 = por %p241, %p242
      %p245 = scmp.ne.s32.totalorder %s228, %s244
      %p246 = scmp.eq.s32.totalorder %s26, 0
      %p247 = por %p245, %p246
      %s248 = ssub.s32 %s20, %s27
      %p249 = scmp.eq.s32.totalorder %s248, 0
      %s251 = sadd.s32 %s250, 1
      %s252 = scalar_select %p249, %s250, %s251
      %p255 = pneg %p249
      %p256 = scmp.eq.s32.totalorder %s20, 1
      %p257 = por %p255, %p256
      %p258 = scmp.ne.s32.totalorder %s250, %s253
      %p259 = scmp.eq.s32.totalorder %s20, 0
      %p260 = por %p258, %p259
      %p261 = scmp.ne.s32.totalorder %s250, %s253
      %p262 = scmp.eq.s32.totalorder %s25, 1
      %p263 = por %p261, %p262
      %p264 = scmp.ne.s32.totalorder %s253, %s254
      %p265 = scmp.eq.s32.totalorder %s25, 0
      %p266 = por %p264, %p265
      %p267 = scmp.ne.s32.totalorder %s253, %s254
      %p268 = scmp.eq.s32.totalorder %s26, 1
      %p269 = por %p267, %p268
      %p271 = scmp.ne.s32.totalorder %s254, %s270
      %p272 = scmp.eq.s32.totalorder %s26, 0
      %p273 = por %p271, %p272
      %p274 = scmp.le.s32.totalorder 1, %s20
      %p275 = scmp.lt.s32.totalorder %s20, 3
      %p276 = pnand %p274, %p275
      %p277 = pneg %p276
      // Predicated region
      $region9: #{_lambda_.4} parent=5 // pred_check
        _
      $region10: #{_lambda_.4} parent=5 // pred_check_branch
        %279 = sbr.rel (%p276) target = $region12
      $region11: #{_lambda_.4} parent=5 // pred_region
        %s280 = ssub.s32 %s20, 1
        // Predicated region
        $region13: #{_lambda_.4} parent=11 // pred_check
          %p281 = pneg %p67
        $region14: #{_lambda_.4} parent=11 // pred_check_branch
          %283 = sbr.rel (%p281) target = $region16
        $region15: #{_lambda_.4} parent=11 // pred_region
          %s285 = ssub.s32 128, 128
          %286 = vsyncadd [#allocation3], %s285
          %s288 = sshll.u32 [#allocation2], 4
          %s289 = int_to_ptr.vmem [resolvable:$true] %s288
          %291 = dma.hbm_to_vmem [thread:$0]  %s1, 128, %s289, [#allocation3]
        $region16: #{_lambda_.4} parent=11 // pred_fallthru
          _
        // Predicated region
        $region17: #{_lambda_.4} parent=11 // pred_check
          %p292 = pneg %p88
        $region18: #{_lambda_.4} parent=11 // pred_check_branch
          %294 = sbr.rel (%p292) target = $region20
        $region19: #{_lambda_.4} parent=11 // pred_region
          %s296 = ssub.s32 128, 128
          %297 = vsyncadd [#allocation5], %s296
          %s299 = sshll.u32 [#allocation4], 4
          %s300 = int_to_ptr.vmem [resolvable:$true] %s299
          %302 = dma.hbm_to_vmem [thread:$0]  %s2, 128, %s300, [#allocation5]
        $region20: #{_lambda_.4} parent=11 // pred_fallthru
          _
        // Predicated region
        $region21: #{_lambda_.4} parent=11 // pred_check
          %p303 = pneg %p109
        $region22: #{_lambda_.4} parent=11 // pred_check_branch
          %305 = sbr.rel (%p303) target = $region24
        $region23: #{_lambda_.4} parent=11 // pred_region
          %s307 = ssub.s32 128, 128
          %308 = vsyncadd [#allocation5], %s307
          %s310 = sshll.u32 [#allocation6], 4
          %s311 = int_to_ptr.vmem [resolvable:$true] %s310
          %313 = dma.hbm_to_vmem [thread:$0]  %s3, 128, %s311, [#allocation5]
        $region24: #{_lambda_.4} parent=11 // pred_fallthru
          _
        // Predicated region
        $region25: #{_lambda_.4} parent=11 // pred_check
          %p314 = pneg %p130
        $region26: #{_lambda_.4} parent=11 // pred_check_branch
          %316 = sbr.rel (%p314) target = $region28
        $region27: #{_lambda_.4} parent=11 // pred_region
          %s318 = ssub.s32 128, 128
          %319 = vsyncadd [#allocation8], %s318
          %s321 = sshll.u32 [#allocation7], 4
          %s322 = int_to_ptr.vmem [resolvable:$true] %s321
          %324 = dma.hbm_to_vmem [thread:$0]  %s4, 128, %s322, [#allocation8]
        $region28: #{_lambda_.4} parent=11 // pred_fallthru
          _
        // Predicated region
        $region29: #{_lambda_.4} parent=11 // pred_check
          %p325 = pneg %p151
        $region30: #{_lambda_.4} parent=11 // pred_check_branch
          %327 = sbr.rel (%p325) target = $region32
        $region31: #{_lambda_.4} parent=11 // pred_region
          %s329 = ssub.s32 128, 128
          %330 = vsyncadd [#allocation8], %s329
          %s332 = sshll.u32 [#allocation9], 4
          %s333 = int_to_ptr.vmem [resolvable:$true] %s332
          %335 = dma.hbm_to_vmem [thread:$0]  %s5, 128, %s333, [#allocation8]
        $region32: #{_lambda_.4} parent=11 // pred_fallthru
          _
        // Predicated region
        $region33: #{_lambda_.4} parent=11 // pred_check
          %p336 = pneg %p172
        $region34: #{_lambda_.4} parent=11 // pred_check_branch
          %338 = sbr.rel (%p336) target = $region36
        $region35: #{_lambda_.4} parent=11 // pred_region
          _
        $region36: #{_lambda_.4} parent=11 // pred_fallthru
          _
        // Predicated region
        $region37: #{_lambda_.4} parent=11 // pred_check
          %p339 = pneg %p193
        $region38: #{_lambda_.4} parent=11 // pred_check_branch
          %341 = sbr.rel (%p339) target = $region40
        $region39: #{_lambda_.4} parent=11 // pred_region
          _
        $region40: #{_lambda_.4} parent=11 // pred_fallthru
          _
        // Predicated region
        $region41: #{_lambda_.4} parent=11 // pred_check
          %p342 = pneg %p214
        $region42: #{_lambda_.4} parent=11 // pred_check_branch
          %344 = sbr.rel (%p342) target = $region44
        $region43: #{_lambda_.4} parent=11 // pred_region
          _
        $region44: #{_lambda_.4} parent=11 // pred_fallthru
          _
      $region12: #{_lambda_.4} parent=5 // pred_fallthru
        _
      %p345 = scmp.lt.s32.totalorder %s20, 2
      // Predicated region
      $region45: #{_lambda_.4} parent=5 // pred_check
        %p346 = pneg %p345
      $region46: #{_lambda_.4} parent=5 // pred_check_branch
        %348 = sbr.rel (%p346) target = $region48
      $region47: #{_lambda_.4} parent=5 // pred_region
        // Predicated region
        $region49: #{_lambda_.4} parent=47 // pred_check
          %p349 = pneg %p40
        $region50: #{_lambda_.4} parent=47 // pred_check_branch
          %351 = sbr.rel (%p349) target = $region52
        $region51: #{_lambda_.4} parent=47 // pred_region
          %p352 = scmp.lt.s32.totalorder %s20, 1
          %s353 = scalar_select %p352, %s20, 1
          %s354 = smul.addr %s353, 3
          %s355 = smul.addr %s354, 8
          %s356 = scalar_lea.vmem %s0, %s355
        $region52: #{_lambda_.4} parent=47 // pred_fallthru
          _
      $region48: #{_lambda_.4} parent=5 // pred_fallthru
        _
      %p357 = scmp.le.s32.totalorder 1, %s20
      %p358 = scmp.lt.s32.totalorder %s20, 3
      %p359 = pnand %p357, %p358
      %p360 = pneg %p359
      // Predicated region
      $region53: #{_lambda_.4} parent=5 // pred_check
        _
      $region54: #{_lambda_.4} parent=5 // pred_check_branch
        %362 = sbr.rel (%p359) target = $region56
      $region55: #{_lambda_.4} parent=5 // pred_region
        %s363 = ssub.s32 %s20, 1
        // Predicated region
        $region57: #{_lambda_.4} parent=55 // pred_check
          %p364 = pneg %p67
        $region58: #{_lambda_.4} parent=55 // pred_check_branch
          %366 = sbr.rel (%p364) target = $region60
        $region59: #{_lambda_.4} parent=55 // pred_region
          %367 = dma.done [#allocation3], 128
        $region60: #{_lambda_.4} parent=55 // pred_fallthru
          _
        // Predicated region
        $region61: #{_lambda_.4} parent=55 // pred_check
          %p368 = pneg %p88
        $region62: #{_lambda_.4} parent=55 // pred_check_branch
          %370 = sbr.rel (%p368) target = $region64
        $region63: #{_lambda_.4} parent=55 // pred_region
          %371 = dma.done [#allocation5], 128
        $region64: #{_lambda_.4} parent=55 // pred_fallthru
          _
        // Predicated region
        $region65: #{_lambda_.4} parent=55 // pred_check
          %p372 = pneg %p109
        $region66: #{_lambda_.4} parent=55 // pred_check_branch
          %374 = sbr.rel (%p372) target = $region68
        $region67: #{_lambda_.4} parent=55 // pred_region
          %375 = dma.done [#allocation5], 128
        $region68: #{_lambda_.4} parent=55 // pred_fallthru
          _
        // Predicated region
        $region69: #{_lambda_.4} parent=55 // pred_check
          %p376 = pneg %p130
        $region70: #{_lambda_.4} parent=55 // pred_check_branch
          %378 = sbr.rel (%p376) target = $region72
        $region71: #{_lambda_.4} parent=55 // pred_region
          %379 = dma.done [#allocation8], 128
        $region72: #{_lambda_.4} parent=55 // pred_fallthru
          _
        // Predicated region
        $region73: #{_lambda_.4} parent=55 // pred_check
          %p380 = pneg %p151
        $region74: #{_lambda_.4} parent=55 // pred_check_branch
          %382 = sbr.rel (%p380) target = $region76
        $region75: #{_lambda_.4} parent=55 // pred_region
          %383 = dma.done [#allocation8], 128
        $region76: #{_lambda_.4} parent=55 // pred_fallthru
          _
        %p384 = scmp.lt.s32.totalorder %s25, 1
        %s385 = scalar_select %p384, %s25, 1
        %s386 = smul.addr %s385, 3
        %s387 = smul.addr %s386, 8
        %s388 = scalar_lea.vmem %s0, %s387
        %p389 = pneg %p46
        %p390 = pneg %p43
        %p391 = pneg %p67
        %p392 = pneg %p64
        %p393 = pneg %p88
        %p394 = pneg %p85
        %p395 = pneg %p109
        %p396 = pneg %p106
        %p397 = pneg %p130
        %p398 = pneg %p127
        %p399 = pneg %p151
        %p400 = pneg %p148
        %p401 = pneg %p172
        %p402 = pneg %p169
        %p403 = pneg %p193
        %p404 = pneg %p190
        %p405 = pneg %p214
        %p406 = pneg %p211
        %p407 = pneg %p240
        %p408 = pneg %p237
        %p409 = scmp.lt.s32.totalorder %s25, 1
        %s410 = scalar_select %p409, %s25, 1
        %s411 = smul.addr %s410, 3
        %s412 = smul.addr %s411, 8
        %s413 = scalar_lea.vmem %s9, %s412
        %p414 = pneg %p266
        %p415 = pneg %p263
        %p416 = scmp.lt.s32.totalorder %s25, 1
        %s417 = scalar_select %p416, %s25, 1
        %s418 = smul.addr %s417, 8
        %s419 = scalar_lea.vmem %s10, %s418
        %p420 = scmp.lt.s32.totalorder %s25, 1
        %s421 = scalar_select %p420, %s25, 1
        %s422 = smul.addr %s421, 3
        %s423 = smul.addr %s422, 8
        %s424 = scalar_lea.vmem %s0, %s423
        %p425 = scmp.lt.s32.totalorder %s25, 1
        %s426 = scalar_select %p425, %s25, 1
        %s427 = smul.addr %s426, 3
        %s428 = smul.addr %s427, 8
        %s429 = scalar_lea.vmem %s9, %s428
        %p430 = scmp.lt.s32.totalorder %s25, 1
        %s431 = scalar_select %p430, %s25, 1
        %s432 = smul.addr %s431, 8
        %s433 = scalar_lea.vmem %s10, %s432
        %v434 = vld [vmem:[%s424] sm:$0xff]
        %v435 = vld [vmem:[%s424 + $0x8] sm:$0xff]
        %v436 = vld [vmem:[%s424 + $0x10] sm:$0xff]
        %v437 = vld [vmem:[%s7] sm:$0x7]
        %v438 = vld [vmem:[#allocation2] sm:$0xff]
        %442 = vrot.lane.b32.xlu0 %v434, 19
        %v443 = vpop.permute.xlu0 %442
        %444 = vrot.lane.b32.xlu0 %v435, 19
        %v445 = vpop.permute.xlu0 %444
        %446 = vrot.lane.b32.xlu0 %v436, 19
        %v447 = vpop.permute.xlu0 %446
        %vm448 = vcmask 154624
        %v449 = vsel %vm448, %v443, %v445
        %v450 = vsel %vm448, %v445, %v447
        %v454 = vsel %vm448, 0.0, %v443
        %vm455 = vcmask 711680
        %v456 = vsel %vm455, %v450, 0.0
        %459 = vrot.lane.b32.xlu0 %v454, 127
        %v460 = vpop.permute.xlu0 %459
        %461 = vrot.lane.b32.xlu0 %v449, 127
        %v462 = vpop.permute.xlu0 %461
        %463 = vrot.lane.b32.xlu0 %v456, 127
        %v464 = vpop.permute.xlu0 %463
        %vm465 = vcmask 1039360
        %v466 = vsel %vm465, %v460, %v462
        %v467 = vsel %vm465, %v462, %v464
        %471 = vrot.lane.b32.xlu0 %v454, 126
        %v472 = vpop.permute.xlu0 %471
        %473 = vrot.lane.b32.xlu0 %v449, 126
        %v474 = vpop.permute.xlu0 %473
        %475 = vrot.lane.b32.xlu0 %v456, 126
        %v476 = vpop.permute.xlu0 %475
        %vm477 = vcmask 1031168
        %v478 = vsel %vm477, %v472, %v474
        %v479 = vsel %vm477, %v474, %v476
        %483 = vrot.lane.b32.xlu0 %v454, 110
        %v484 = vpop.permute.xlu0 %483
        %485 = vrot.lane.b32.xlu0 %v449, 110
        %v486 = vpop.permute.xlu0 %485
        %487 = vrot.lane.b32.xlu0 %v456, 110
        %v488 = vpop.permute.xlu0 %487
        %vm489 = vcmask 900096
        %v490 = vsel %vm489, %v484, %v486
        %v491 = vsel %vm489, %v486, %v488
        %495 = vrot.lane.b32.xlu0 %v454, 109
        %v496 = vpop.permute.xlu0 %495
        %497 = vrot.lane.b32.xlu0 %v449, 109
        %v498 = vpop.permute.xlu0 %497
        %499 = vrot.lane.b32.xlu0 %v456, 109
        %v500 = vpop.permute.xlu0 %499
        %vm501 = vcmask 891904
        %v502 = vsel %vm501, %v496, %v498
        %v503 = vsel %vm501, %v498, %v500
        %507 = vrot.lane.b32.xlu0 %v454, 108
        %v508 = vpop.permute.xlu0 %507
        %509 = vrot.lane.b32.xlu0 %v449, 108
        %v510 = vpop.permute.xlu0 %509
        %511 = vrot.lane.b32.xlu0 %v456, 108
        %v512 = vpop.permute.xlu0 %511
        %vm513 = vcmask 883712
        %v514 = vsel %vm513, %v508, %v510
        %v515 = vsel %vm513, %v510, %v512
        %519 = vrot.lane.b32.xlu0 %v454, 92
        %v520 = vpop.permute.xlu0 %519
        %521 = vrot.lane.b32.xlu0 %v449, 92
        %v522 = vpop.permute.xlu0 %521
        %523 = vrot.lane.b32.xlu0 %v456, 92
        %v524 = vpop.permute.xlu0 %523
        %vm525 = vcmask 752640
        %v526 = vsel %vm525, %v520, %v522
        %v527 = vsel %vm525, %v522, %v524
        %531 = vrot.lane.b32.xlu0 %v454, 91
        %v532 = vpop.permute.xlu0 %531
        %533 = vrot.lane.b32.xlu0 %v449, 91
        %v534 = vpop.permute.xlu0 %533
        %535 = vrot.lane.b32.xlu0 %v456, 91
        %v536 = vpop.permute.xlu0 %535
        %vm537 = vcmask 744448
        %v538 = vsel %vm537, %v532, %v534
        %v539 = vsel %vm537, %v534, %v536
        %543 = vrot.lane.b32.xlu0 %v454, 90
        %v544 = vpop.permute.xlu0 %543
        %545 = vrot.lane.b32.xlu0 %v449, 90
        %v546 = vpop.permute.xlu0 %545
        %547 = vrot.lane.b32.xlu0 %v456, 90
        %v548 = vpop.permute.xlu0 %547
        %vm549 = vcmask 736256
        %v550 = vsel %vm549, %v544, %v546
        %v551 = vsel %vm549, %v546, %v548
        %vm555 = vcmask 588800
        %v557 = vsel %vm555, %v438, 0
        %559 = vmatprep.subr.mxu0 0.0
        %560 = vmatpush1.msra.mxu0 0.0
        %561 = vmatprep.subr.mxu0 0.0
        %562 = vmatpush1.msra.mxu0 0.0
        %563 = vmatprep.subr.mxu0 0.0
        %564 = vmatpush1.msra.mxu0 0.0
        %565 = vmatprep.subr.mxu0 0.0
        %566 = vmatpush1.msra.mxu0 0.0
        %567 = vmatprep.subr.mxu0 0.0
        %568 = vmatpush1.msra.mxu0 0.0
        %569 = vmatprep.subr.mxu0 0.0
        %570 = vmatpush1.msra.mxu0 0.0
        %571 = vmatprep.subr.mxu0 0.0
        %572 = vmatpush1.msra.mxu0 0.0
        %573 = vmatprep.subr.mxu0 %v551
        %574 = vmatpush1.msra.mxu0 %v550
        %575 = vmatprep.subr.mxu0 %v539
        %576 = vmatpush1.msra.mxu0 %v538
        %577 = vmatprep.subr.mxu0 %v527
        %578 = vmatpush1.msra.mxu0 %v526
        %579 = vmatprep.subr.mxu0 %v515
        %580 = vmatpush1.msra.mxu0 %v514
        %581 = vmatprep.subr.mxu0 %v503
        %582 = vmatpush1.msra.mxu0 %v502
        %583 = vmatprep.subr.mxu0 %v491
        %584 = vmatpush1.msra.mxu0 %v490
        %585 = vmatprep.subr.mxu0 %v479
        %586 = vmatpush1.msra.mxu0 %v478
        %587 = vmatprep.subr.mxu0 %v467
        %588 = vmatpush1.msra.mxu0 %v466
        %589 = vmatprep.subr.mxu0 %v449
        %590 = vmatpush1.msra.mxu0 %v454
        %591 = vmatprep.subr.mxu0 0.0
        %592 = vmatpush2.msra.mxu0 0.0
        %593 = vmatprep.subr.mxu0 0.0
        %594 = vmatpush2.msra.mxu0 0.0
        %595 = vmatprep.subr.mxu0 0.0
        %596 = vmatpush2.msra.mxu0 0.0
        %597 = vmatprep.subr.mxu0 0.0
        %598 = vmatpush2.msra.mxu0 0.0
        %599 = vmatprep.subr.mxu0 0.0
        %600 = vmatpush2.msra.mxu0 0.0
        %601 = vmatprep.subr.mxu0 0.0
        %602 = vmatpush2.msra.mxu0 0.0
        %603 = vmatprep.subr.mxu0 0.0
        %604 = vmatpush2.msra.mxu0 0.0
        %605 = vmatprep.subr.mxu0 0.0
        %606 = vmatpush2.msra.mxu0 0.0
        %607 = vmatprep.subr.mxu0 0.0
        %608 = vmatpush2.msra.mxu0 0.0
        %609 = vmatprep.subr.mxu0 0.0
        %610 = vmatpush2.msra.mxu0 0.0
        %611 = vmatprep.subr.mxu0 0.0
        %612 = vmatpush2.msra.mxu0 0.0
        %613 = vmatprep.subr.mxu0 0.0
        %614 = vmatpush2.msra.mxu0 0.0
        %615 = vmatprep.subr.mxu0 0.0
        %616 = vmatpush2.msra.mxu0 0.0
        %617 = vmatprep.subr.mxu0 0.0
        %618 = vmatpush2.msra.mxu0 0.0
        %619 = vmatprep.subr.mxu0 0.0
        %620 = vmatpush2.msra.mxu0 0.0
        %621 = vmatprep.subr.mxu0 0.0
        %622 = vmatpush2.msra.mxu0 0.0
        %623 = vmatprep.mubr.f32.mxu0 0.0
        %624 = vmatmul.mubr.f32.gmra.mxu0 %v557
        %v625 = vpop.f32.mrf.mxu0
        %v626 = vadd.f32 0.0, %v625
        %v627 = vpop.f32.mrf.mxu0
        %v628 = vadd.f32 0.0, %v627
        %629 = vdwg.mxu0
        %630 = vmatprep.subr.mxu0 0.0
        %631 = vmatpush1.msra.mxu0 0.0
        %632 = vmatprep.subr.mxu0 0.0
        %633 = vmatpush1.msra.mxu0 0.0
        %634 = vmatprep.subr.mxu0 0.0
        %635 = vmatpush1.msra.mxu0 0.0
        %636 = vmatprep.subr.mxu0 0.0
        %637 = vmatpush1.msra.mxu0 0.0
        %638 = vmatprep.subr.mxu0 0.0
        %639 = vmatpush1.msra.mxu0 0.0
        %640 = vmatprep.subr.mxu0 0.0
        %641 = vmatpush1.msra.mxu0 0.0
        %642 = vmatprep.subr.mxu0 0.0
        %643 = vmatpush1.msra.mxu0 0.0
        %644 = vmatprep.subr.mxu0 0.0
        %645 = vmatpush1.msra.mxu0 %v548
        %646 = vmatprep.subr.mxu0 0.0
        %647 = vmatpush1.msra.mxu0 %v536
        %648 = vmatprep.subr.mxu0 0.0
        %649 = vmatpush1.msra.mxu0 %v524
        %650 = vmatprep.subr.mxu0 0.0
        %651 = vmatpush1.msra.mxu0 %v512
        %652 = vmatprep.subr.mxu0 0.0
        %653 = vmatpush1.msra.mxu0 %v500
        %654 = vmatprep.subr.mxu0 0.0
        %655 = vmatpush1.msra.mxu0 %v488
        %656 = vmatprep.subr.mxu0 0.0
        %657 = vmatpush1.msra.mxu0 %v476
        %658 = vmatprep.subr.mxu0 0.0
        %659 = vmatpush1.msra.mxu0 %v464
        %660 = vmatprep.subr.mxu0 0.0
        %661 = vmatpush1.msra.mxu0 %v456
        %662 = vmatprep.subr.mxu0 0.0
        %663 = vmatpush2.msra.mxu0 0.0
        %664 = vmatprep.subr.mxu0 0.0
        %665 = vmatpush2.msra.mxu0 0.0
        %666 = vmatprep.subr.mxu0 0.0
        %667 = vmatpush2.msra.mxu0 0.0
        %668 = vmatprep.subr.mxu0 0.0
        %669 = vmatpush2.msra.mxu0 0.0
        %670 = vmatprep.subr.mxu0 0.0
        %671 = vmatpush2.msra.mxu0 0.0
        %672 = vmatprep.subr.mxu0 0.0
        %673 = vmatpush2.msra.mxu0 0.0
        %674 = vmatprep.subr.mxu0 0.0
        %675 = vmatpush2.msra.mxu0 0.0
        %676 = vmatprep.subr.mxu0 0.0
        %677 = vmatpush2.msra.mxu0 0.0
        %678 = vmatprep.subr.mxu0 0.0
        %679 = vmatpush2.msra.mxu0 0.0
        %680 = vmatprep.subr.mxu0 0.0
        %681 = vmatpush2.msra.mxu0 0.0
        %682 = vmatprep.subr.mxu0 0.0
        %683 = vmatpush2.msra.mxu0 0.0
        %684 = vmatprep.subr.mxu0 0.0
        %685 = vmatpush2.msra.mxu0 0.0
        %686 = vmatprep.subr.mxu0 0.0
        %687 = vmatpush2.msra.mxu0 0.0
        %688 = vmatprep.subr.mxu0 0.0
        %689 = vmatpush2.msra.mxu0 0.0
        %690 = vmatprep.subr.mxu0 0.0
        %691 = vmatpush2.msra.mxu0 0.0
        %692 = vmatprep.subr.mxu0 0.0
        %693 = vmatpush2.msra.mxu0 0.0
        %694 = vmatprep.mubr.f32.mxu0 0.0
        %695 = vmatmul.mubr.f32.gmra.mxu0 %v557
        %v696 = vpop.f32.mrf.mxu0
        %v697 = vadd.f32 0.0, %v696
        %v698 = vpop.f32.mrf.mxu0
        %699 = vdwg.mxu0
        %v700 = vld [vmem:[#allocation4] sm:$0xff]
        %v701 = vld [vmem:[#allocation6] sm:$0xff]
        %703 = vset.pattern.permute.xlu0 0
        %704 = vperm.xlu0 %703, %v700
        %v705 = vpop.permute.xlu0 %704
        %v707 = vmul.f32 %v626, %v705
        %v708 = vmul.f32 %v628, %v705
        %v709 = vmul.f32 %v697, %v705
        %711 = vset.pattern.permute.xlu0 0
        %712 = vperm.xlu0 %711, %v701
        %v713 = vpop.permute.xlu0 %712
        %v715 = vadd.f32 %v707, %v713
        %v716 = vadd.f32 %v708, %v713
        %v717 = vadd.f32 %v709, %v713
        %vm718 = vcmp.ge.f32.partialorder %v715, 0.0
        %vm719 = vcmp.ge.f32.partialorder %v716, 0.0
        %vm720 = vcmp.ge.f32.partialorder %v717, 0.0
        %v721 = vmul.f32 %v715, 0.2
        %v722 = vmul.f32 %v716, 0.2
        %v723 = vmul.f32 %v717, 0.2
        %v724 = vsel %vm718, %v715, %v721
        %v725 = vsel %vm719, %v716, %v722
        %v726 = vsel %vm720, %v717, %v723
        %v728 = vlaneseq
        %v729 = vshrl.u32 %v728, 7
        %v730 = vsub.s32 0, %v729
        %v731 = vrot.slane %v437, %v730
        %v732 = vlaneseq
        %v733 = vshrl.u32 %v732, 7
        %v734 = vsub.s32 1, %v733
        %v735 = vrot.slane %v437, %v734
        %v736 = vlaneseq
        %v737 = vshrl.u32 %v736, 7
        %v738 = vsub.s32 2, %v737
        %v739 = vrot.slane %v437, %v738
        %v743 = vmul.f32 %v724, %v731
        %v744 = vmul.f32 %v725, %v735
        %v745 = vmul.f32 %v726, %v739
        %v746 = vld [vmem:[#allocation7] sm:$0xff]
        %750 = vrot.lane.b32.xlu0 %v743, 19
        %v751 = vpop.permute.xlu0 %750
        %752 = vrot.lane.b32.xlu0 %v744, 19
        %v753 = vpop.permute.xlu0 %752
        %754 = vrot.lane.b32.xlu0 %v745, 19
        %v755 = vpop.permute.xlu0 %754
        %v756 = vsel %vm448, %v751, %v753
        %v757 = vsel %vm448, %v753, %v755
        %v761 = vsel %vm448, 0.0, %v751
        %v762 = vsel %vm455, %v757, 0.0
        %765 = vrot.lane.b32.xlu0 %v761, 127
        %v766 = vpop.permute.xlu0 %765
        %767 = vrot.lane.b32.xlu0 %v756, 127
        %v768 = vpop.permute.xlu0 %767
        %769 = vrot.lane.b32.xlu0 %v762, 127
        %v770 = vpop.permute.xlu0 %769
        %v771 = vsel %vm465, %v766, %v768
        %v772 = vsel %vm465, %v768, %v770
        %776 = vrot.lane.b32.xlu0 %v761, 126
        %v777 = vpop.permute.xlu0 %776
        %778 = vrot.lane.b32.xlu0 %v756, 126
        %v779 = vpop.permute.xlu0 %778
        %780 = vrot.lane.b32.xlu0 %v762, 126
        %v781 = vpop.permute.xlu0 %780
        %v782 = vsel %vm477, %v777, %v779
        %v783 = vsel %vm477, %v779, %v781
        %787 = vrot.lane.b32.xlu0 %v761, 110
        %v788 = vpop.permute.xlu0 %787
        %789 = vrot.lane.b32.xlu0 %v756, 110
        %v790 = vpop.permute.xlu0 %789
        %791 = vrot.lane.b32.xlu0 %v762, 110
        %v792 = vpop.permute.xlu0 %791
        %v793 = vsel %vm489, %v788, %v790
        %v794 = vsel %vm489, %v790, %v792
        %798 = vrot.lane.b32.xlu0 %v761, 109
        %v799 = vpop.permute.xlu0 %798
        %800 = vrot.lane.b32.xlu0 %v756, 109
        %v801 = vpop.permute.xlu0 %800
        %802 = vrot.lane.b32.xlu0 %v762, 109
        %v803 = vpop.permute.xlu0 %802
        %v804 = vsel %vm501, %v799, %v801
        %v805 = vsel %vm501, %v801, %v803
        %809 = vrot.lane.b32.xlu0 %v761, 108
        %v810 = vpop.permute.xlu0 %809
        %811 = vrot.lane.b32.xlu0 %v756, 108
        %v812 = vpop.permute.xlu0 %811
        %813 = vrot.lane.b32.xlu0 %v762, 108
        %v814 = vpop.permute.xlu0 %813
        %v815 = vsel %vm513, %v810, %v812
        %v816 = vsel %vm513, %v812, %v814
        %820 = vrot.lane.b32.xlu0 %v761, 92
        %v821 = vpop.permute.xlu0 %820
        %822 = vrot.lane.b32.xlu0 %v756, 92
        %v823 = vpop.permute.xlu0 %822
        %824 = vrot.lane.b32.xlu0 %v762, 92
        %v825 = vpop.permute.xlu0 %824
        %v826 = vsel %vm525, %v821, %v823
        %v827 = vsel %vm525, %v823, %v825
        %831 = vrot.lane.b32.xlu0 %v761, 91
        %v832 = vpop.permute.xlu0 %831
        %833 = vrot.lane.b32.xlu0 %v756, 91
        %v834 = vpop.permute.xlu0 %833
        %835 = vrot.lane.b32.xlu0 %v762, 91
        %v836 = vpop.permute.xlu0 %835
        %v837 = vsel %vm537, %v832, %v834
        %v838 = vsel %vm537, %v834, %v836
        %842 = vrot.lane.b32.xlu0 %v761, 90
        %v843 = vpop.permute.xlu0 %842
        %844 = vrot.lane.b32.xlu0 %v756, 90
        %v845 = vpop.permute.xlu0 %844
        %846 = vrot.lane.b32.xlu0 %v762, 90
        %v847 = vpop.permute.xlu0 %846
        %v848 = vsel %vm549, %v843, %v845
        %v849 = vsel %vm549, %v845, %v847
        %v854 = vsel %vm555, %v746, 0
        %856 = vmatprep.subr.mxu0 0.0
        %857 = vmatpush1.msra.mxu0 0.0
        %858 = vmatprep.subr.mxu0 0.0
        %859 = vmatpush1.msra.mxu0 0.0
        %860 = vmatprep.subr.mxu0 0.0
        %861 = vmatpush1.msra.mxu0 0.0
        %862 = vmatprep.subr.mxu0 0.0
        %863 = vmatpush1.msra.mxu0 0.0
        %864 = vmatprep.subr.mxu0 0.0
        %865 = vmatpush1.msra.mxu0 0.0
        %866 = vmatprep.subr.mxu0 0.0
        %867 = vmatpush1.msra.mxu0 0.0
        %868 = vmatprep.subr.mxu0 0.0
        %869 = vmatpush1.msra.mxu0 0.0
        %870 = vmatprep.subr.mxu0 %v849
        %871 = vmatpush1.msra.mxu0 %v848
        %872 = vmatprep.subr.mxu0 %v838
        %873 = vmatpush1.msra.mxu0 %v837
        %874 = vmatprep.subr.mxu0 %v827
        %875 = vmatpush1.msra.mxu0 %v826
        %876 = vmatprep.subr.mxu0 %v816
        %877 = vmatpush1.msra.mxu0 %v815
        %878 = vmatprep.subr.mxu0 %v805
        %879 = vmatpush1.msra.mxu0 %v804
        %880 = vmatprep.subr.mxu0 %v794
        %881 = vmatpush1.msra.mxu0 %v793
        %882 = vmatprep.subr.mxu0 %v783
        %883 = vmatpush1.msra.mxu0 %v782
        %884 = vmatprep.subr.mxu0 %v772
        %885 = vmatpush1.msra.mxu0 %v771
        %886 = vmatprep.subr.mxu0 %v756
        %887 = vmatpush1.msra.mxu0 %v761
        %888 = vmatprep.subr.mxu0 0.0
        %889 = vmatpush2.msra.mxu0 0.0
        %890 = vmatprep.subr.mxu0 0.0
        %891 = vmatpush2.msra.mxu0 0.0
        %892 = vmatprep.subr.mxu0 0.0
        %893 = vmatpush2.msra.mxu0 0.0
        %894 = vmatprep.subr.mxu0 0.0
        %895 = vmatpush2.msra.mxu0 0.0
        %896 = vmatprep.subr.mxu0 0.0
        %897 = vmatpush2.msra.mxu0 0.0
        %898 = vmatprep.subr.mxu0 0.0
        %899 = vmatpush2.msra.mxu0 0.0
        %900 = vmatprep.subr.mxu0 0.0
        %901 = vmatpush2.msra.mxu0 0.0
        %902 = vmatprep.subr.mxu0 0.0
        %903 = vmatpush2.msra.mxu0 0.0
        %904 = vmatprep.subr.mxu0 0.0
        %905 = vmatpush2.msra.mxu0 0.0
        %906 = vmatprep.subr.mxu0 0.0
        %907 = vmatpush2.msra.mxu0 0.0
        %908 = vmatprep.subr.mxu0 0.0
        %909 = vmatpush2.msra.mxu0 0.0
        %910 = vmatprep.subr.mxu0 0.0
        %911 = vmatpush2.msra.mxu0 0.0
        %912 = vmatprep.subr.mxu0 0.0
        %913 = vmatpush2.msra.mxu0 0.0
        %914 = vmatprep.subr.mxu0 0.0
        %915 = vmatpush2.msra.mxu0 0.0
        %916 = vmatprep.subr.mxu0 0.0
        %917 = vmatpush2.msra.mxu0 0.0
        %918 = vmatprep.subr.mxu0 0.0
        %919 = vmatpush2.msra.mxu0 0.0
        %920 = vmatprep.mubr.f32.mxu0 0.0
        %921 = vmatmul.mubr.f32.gmra.mxu0 %v854
        %v922 = vpop.f32.mrf.mxu0
        %v923 = vadd.f32 0.0, %v922
        %v924 = vpop.f32.mrf.mxu0
        %v925 = vadd.f32 0.0, %v924
        %926 = vdwg.mxu0
        %927 = vmatprep.subr.mxu0 0.0
        %928 = vmatpush1.msra.mxu0 0.0
        %929 = vmatprep.subr.mxu0 0.0
        %930 = vmatpush1.msra.mxu0 0.0
        %931 = vmatprep.subr.mxu0 0.0
        %932 = vmatpush1.msra.mxu0 0.0
        %933 = vmatprep.subr.mxu0 0.0
        %934 = vmatpush1.msra.mxu0 0.0
        %935 = vmatprep.subr.mxu0 0.0
        %936 = vmatpush1.msra.mxu0 0.0
        %937 = vmatprep.subr.mxu0 0.0
        %938 = vmatpush1.msra.mxu0 0.0
        %939 = vmatprep.subr.mxu0 0.0
        %940 = vmatpush1.msra.mxu0 0.0
        %941 = vmatprep.subr.mxu0 0.0
        %942 = vmatpush1.msra.mxu0 %v847
        %943 = vmatprep.subr.mxu0 0.0
        %944 = vmatpush1.msra.mxu0 %v836
        %945 = vmatprep.subr.mxu0 0.0
        %946 = vmatpush1.msra.mxu0 %v825
        %947 = vmatprep.subr.mxu0 0.0
        %948 = vmatpush1.msra.mxu0 %v814
        %949 = vmatprep.subr.mxu0 0.0
        %950 = vmatpush1.msra.mxu0 %v803
        %951 = vmatprep.subr.mxu0 0.0
        %952 = vmatpush1.msra.mxu0 %v792
        %953 = vmatprep.subr.mxu0 0.0
        %954 = vmatpush1.msra.mxu0 %v781
        %955 = vmatprep.subr.mxu0 0.0
        %956 = vmatpush1.msra.mxu0 %v770
        %957 = vmatprep.subr.mxu0 0.0
        %958 = vmatpush1.msra.mxu0 %v762
        %959 = vmatprep.subr.mxu0 0.0
        %960 = vmatpush2.msra.mxu0 0.0
        %961 = vmatprep.subr.mxu0 0.0
        %962 = vmatpush2.msra.mxu0 0.0
        %963 = vmatprep.subr.mxu0 0.0
        %964 = vmatpush2.msra.mxu0 0.0
        %965 = vmatprep.subr.mxu0 0.0
        %966 = vmatpush2.msra.mxu0 0.0
        %967 = vmatprep.subr.mxu0 0.0
        %968 = vmatpush2.msra.mxu0 0.0
        %969 = vmatprep.subr.mxu0 0.0
        %970 = vmatpush2.msra.mxu0 0.0
        %971 = vmatprep.subr.mxu0 0.0
        %972 = vmatpush2.msra.mxu0 0.0
        %973 = vmatprep.subr.mxu0 0.0
        %974 = vmatpush2.msra.mxu0 0.0
        %975 = vmatprep.subr.mxu0 0.0
        %976 = vmatpush2.msra.mxu0 0.0
        %977 = vmatprep.subr.mxu0 0.0
        %978 = vmatpush2.msra.mxu0 0.0
        %979 = vmatprep.subr.mxu0 0.0
        %980 = vmatpush2.msra.mxu0 0.0
        %981 = vmatprep.subr.mxu0 0.0
        %982 = vmatpush2.msra.mxu0 0.0
        %983 = vmatprep.subr.mxu0 0.0
        %984 = vmatpush2.msra.mxu0 0.0
        %985 = vmatprep.subr.mxu0 0.0
        %986 = vmatpush2.msra.mxu0 0.0
        %987 = vmatprep.subr.mxu0 0.0
        %988 = vmatpush2.msra.mxu0 0.0
        %989 = vmatprep.subr.mxu0 0.0
        %990 = vmatpush2.msra.mxu0 0.0
        %991 = vmatprep.mubr.f32.mxu0 0.0
        %992 = vmatmul.mubr.f32.gmra.mxu0 %v854
        %v993 = vpop.f32.mrf.mxu0
        %v994 = vadd.f32 0.0, %v993
        %v995 = vpop.f32.mrf.mxu0
        %996 = vdwg.mxu0
        %v997 = vld [vmem:[#allocation9] sm:$0xff]
        %v998 = vld [vmem:[%s6] sm:$0xff]
        %1000 = vset.pattern.permute.xlu0 0
        %1001 = vperm.xlu0 %1000, %v997
        %v1002 = vpop.permute.xlu0 %1001
        %v1004 = vmul.f32 %v923, %v1002
        %v1005 = vmul.f32 %v925, %v1002
        %v1006 = vmul.f32 %v994, %v1002
        %1008 = vset.pattern.permute.xlu0 0
        %1009 = vperm.xlu0 %1008, %v998
        %v1010 = vpop.permute.xlu0 %1009
        %v1012 = vadd.f32 %v1004, %v1010
        %v1013 = vadd.f32 %v1005, %v1010
        %v1014 = vadd.f32 %v1006, %v1010
        %vm1015 = vcmp.ge.f32.partialorder %v1012, 0.0
        %vm1016 = vcmp.ge.f32.partialorder %v1013, 0.0
        %vm1017 = vcmp.ge.f32.partialorder %v1014, 0.0
        %v1018 = vmul.f32 %v1012, 0.2
        %v1019 = vmul.f32 %v1013, 0.2
        %v1020 = vmul.f32 %v1014, 0.2
        %v1021 = vsel %vm1015, %v1012, %v1018
        %v1022 = vsel %vm1016, %v1013, %v1019
        %v1023 = vsel %vm1017, %v1014, %v1020
        %v1024 = vmul.f32 %v1021, %v731
        %v1025 = vmul.f32 %v1022, %v735
        %v1026 = vmul.f32 %v1023, %v739
        %1027 = vst [vmem:[%s429] sm:$0xff] %v1024
        %1028 = vst [vmem:[%s429 + $0x8] sm:$0xff] %v1025
        %vm1029 = vcmask 556032
        %1030 = vst.msk [vmem:[%s429 + $0x10] sm:$0xff] %vm1029, %v1026
        %1034 = vrot.lane.b32.xlu0 %v1024, 1
        %v1035 = vpop.permute.xlu0 %1034
        %1036 = vrot.lane.b32.xlu0 %v1025, 1
        %v1037 = vpop.permute.xlu0 %1036
        %1038 = vrot.lane.b32.xlu0 %v1026, 1
        %v1039 = vpop.permute.xlu0 %1038
        %vm1040 = vcmask 7168
        %v1041 = vsel %vm1040, %v1035, %v1037
        %v1042 = vsel %vm1040, %v1037, %v1039
        %v1045 = vsel %vm1040, 0.0, %v1035
        %vm1046 = vcmask 564224
        %v1047 = vsel %vm1046, %v1042, 0.0
        %1050 = vrot.lane.b32.xlu0 %v1045, 126
        %v1051 = vpop.permute.xlu0 %1050
        %1052 = vrot.lane.b32.xlu0 %v1041, 126
        %v1053 = vpop.permute.xlu0 %1052
        %1054 = vrot.lane.b32.xlu0 %v1047, 126
        %v1055 = vpop.permute.xlu0 %1054
        %v1056 = vsel %vm477, %v1051, %v1053
        %v1057 = vsel %vm477, %v1053, %v1055
        %v1061 = vmax.f32 %v1024, %v1056
        %v1062 = vmax.f32 %v1025, %v1057
        %v1063 = vmax.f32 %v1026, %v1055
        %1067 = vrot.lane.b32.xlu0 %v1061, 18
        %v1068 = vpop.permute.xlu0 %1067
        %1069 = vrot.lane.b32.xlu0 %v1062, 18
        %v1070 = vpop.permute.xlu0 %1069
        %1071 = vrot.lane.b32.xlu0 %v1063, 18
        %v1072 = vpop.permute.xlu0 %1071
        %vm1073 = vcmask 146432
        %v1074 = vsel %vm1073, %v1068, %v1070
        %v1075 = vsel %vm1073, %v1070, %v1072
        %v1078 = vsel %vm1073, 0.0, %v1068
        %vm1079 = vcmask 703488
        %v1080 = vsel %vm1079, %v1075, 0.0
        %1083 = vrot.lane.b32.xlu0 %v1078, 92
        %v1084 = vpop.permute.xlu0 %1083
        %1085 = vrot.lane.b32.xlu0 %v1074, 92
        %v1086 = vpop.permute.xlu0 %1085
        %1087 = vrot.lane.b32.xlu0 %v1080, 92
        %v1088 = vpop.permute.xlu0 %1087
        %v1089 = vsel %vm525, %v1084, %v1086
        %v1090 = vsel %vm525, %v1086, %v1088
        %v1094 = vmax.f32 %v1061, %v1089
        %v1095 = vmax.f32 %v1062, %v1090
        %v1096 = vmax.f32 %v1063, %v1088
        %v1097 = vld [vmem:[%s8] sm:$0xff]
        %v1098 = vld [vmem:[%s8 + $0x8] sm:$0xff]
        %v1099 = vld [vmem:[%s8 + $0x10] sm:$0xff]
        %v1100 = vld [vmem:[%s8 + $0x18] sm:$0xff]
        %v1101 = vld [vmem:[%s8 + $0x20] sm:$0xff]
        %v1102 = vld [vmem:[%s8 + $0x28] sm:$0xff]
        %v1103 = vld [vmem:[%s8 + $0x30] sm:$0xff]
        %v1104 = vld [vmem:[%s8 + $0x38] sm:$0xff]
        %v1105 = vld [vmem:[%s8 + $0x40] sm:$0xff]
        %v1106 = vld [vmem:[%s8 + $0x48] sm:$0xff]
        %v1107 = vld [vmem:[%s8 + $0x50] sm:$0xff]
        %v1108 = vld [vmem:[%s8 + $0x58] sm:$0xff]
        %v1109 = vld [vmem:[%s8 + $0x60] sm:$0xff]
        %v1110 = vld [vmem:[%s8 + $0x68] sm:$0xff]
        %v1111 = vld [vmem:[%s8 + $0x70] sm:$0xff]
        %v1112 = vld [vmem:[%s8 + $0x78] sm:$0xff]
        %v1113 = vld [vmem:[%s8 + $0x80] sm:$0xff]
        %v1114 = vld [vmem:[%s8 + $0x88] sm:$0xff]
        %v1115 = vld [vmem:[%s8 + $0x90] sm:$0xff]
        %v1116 = vld [vmem:[%s8 + $0x98] sm:$0xff]
        %v1117 = vld [vmem:[%s8 + $0xa0] sm:$0xff]
        %v1118 = vld [vmem:[%s8 + $0xa8] sm:$0xff]
        %v1119 = vld [vmem:[%s8 + $0xb0] sm:$0xff]
        %v1120 = vld [vmem:[%s8 + $0xb8] sm:$0xff]
        %v1121 = vld [vmem:[%s8 + $0xc0] sm:$0xff]
        %v1122 = vld [vmem:[%s8 + $0xc8] sm:$0xff]
        %v1123 = vld [vmem:[%s8 + $0xd0] sm:$0xff]
        %v1124 = vld [vmem:[%s8 + $0xd8] sm:$0xff]
        %v1125 = vld [vmem:[%s8 + $0xe0] sm:$0xff]
        %v1126 = vld [vmem:[%s8 + $0xe8] sm:$0xff]
        %v1127 = vld [vmem:[%s8 + $0xf0] sm:$0xff]
        %v1128 = vld [vmem:[%s8 + $0xf8] sm:$0xff]
        %v1129 = vld [vmem:[%s8 + $0x100] sm:$0xff]
        %v1130 = vld [vmem:[%s8 + $0x108] sm:$0xff]
        %v1131 = vld [vmem:[%s8 + $0x110] sm:$0xff]
        %v1132 = vld [vmem:[%s8 + $0x118] sm:$0xff]
        %v1133 = vld [vmem:[%s8 + $0x120] sm:$0xff]
        %v1134 = vld [vmem:[%s8 + $0x128] sm:$0xff]
        %v1135 = vld [vmem:[%s8 + $0x130] sm:$0xff]
        %v1136 = vld [vmem:[%s8 + $0x138] sm:$0xff]
        %v1137 = vld [vmem:[%s8 + $0x140] sm:$0xf]
        %v1139 = vsel %vm1029, %v1096, 0
        %vm1141 = vcmask 1043456
        %v1143 = vsel %vm1141, %v1137, 0
        %1145 = vmatprep.subr.mxu0 0.0
        %1146 = vmatpush1.msra.mxu0 %v1112
        %1147 = vmatprep.subr.mxu0 0.0
        %1148 = vmatpush1.msra.mxu0 %v1111
        %1149 = vmatprep.subr.mxu0 0.0
        %1150 = vmatpush1.msra.mxu0 %v1110
        %1151 = vmatprep.subr.mxu0 0.0
        %1152 = vmatpush1.msra.mxu0 %v1109
        %1153 = vmatprep.subr.mxu0 0.0
        %1154 = vmatpush1.msra.mxu0 %v1108
        %1155 = vmatprep.subr.mxu0 0.0
        %1156 = vmatpush1.msra.mxu0 %v1107
        %1157 = vmatprep.subr.mxu0 0.0
        %1158 = vmatpush1.msra.mxu0 %v1106
        %1159 = vmatprep.subr.mxu0 0.0
        %1160 = vmatpush1.msra.mxu0 %v1105
        %1161 = vmatprep.subr.mxu0 0.0
        %1162 = vmatpush1.msra.mxu0 %v1104
        %1163 = vmatprep.subr.mxu0 0.0
        %1164 = vmatpush1.msra.mxu0 %v1103
        %1165 = vmatprep.subr.mxu0 0.0
        %1166 = vmatpush1.msra.mxu0 %v1102
        %1167 = vmatprep.subr.mxu0 0.0
        %1168 = vmatpush1.msra.mxu0 %v1101
        %1169 = vmatprep.subr.mxu0 0.0
        %1170 = vmatpush1.msra.mxu0 %v1100
        %1171 = vmatprep.subr.mxu0 0.0
        %1172 = vmatpush1.msra.mxu0 %v1099
        %1173 = vmatprep.subr.mxu0 0.0
        %1174 = vmatpush1.msra.mxu0 %v1098
        %1175 = vmatprep.subr.mxu0 0.0
        %1176 = vmatpush1.msra.mxu0 %v1097
        %1177 = vmatprep.subr.mxu0 0.0
        %1178 = vmatpush2.msra.mxu0 %v1128
        %1179 = vmatprep.subr.mxu0 0.0
        %1180 = vmatpush2.msra.mxu0 %v1127
        %1181 = vmatprep.subr.mxu0 0.0
        %1182 = vmatpush2.msra.mxu0 %v1126
        %1183 = vmatprep.subr.mxu0 0.0
        %1184 = vmatpush2.msra.mxu0 %v1125
        %1185 = vmatprep.subr.mxu0 0.0
        %1186 = vmatpush2.msra.mxu0 %v1124
        %1187 = vmatprep.subr.mxu0 0.0
        %1188 = vmatpush2.msra.mxu0 %v1123
        %1189 = vmatprep.subr.mxu0 0.0
        %1190 = vmatpush2.msra.mxu0 %v1122
        %1191 = vmatprep.subr.mxu0 0.0
        %1192 = vmatpush2.msra.mxu0 %v1121
        %1193 = vmatprep.subr.mxu0 0.0
        %1194 = vmatpush2.msra.mxu0 %v1120
        %1195 = vmatprep.subr.mxu0 0.0
        %1196 = vmatpush2.msra.mxu0 %v1119
        %1197 = vmatprep.subr.mxu0 0.0
        %1198 = vmatpush2.msra.mxu0 %v1118
        %1199 = vmatprep.subr.mxu0 0.0
        %1200 = vmatpush2.msra.mxu0 %v1117
        %1201 = vmatprep.subr.mxu0 0.0
        %1202 = vmatpush2.msra.mxu0 %v1116
        %1203 = vmatprep.subr.mxu0 0.0
        %1204 = vmatpush2.msra.mxu0 %v1115
        %1205 = vmatprep.subr.mxu0 0.0
        %1206 = vmatpush2.msra.mxu0 %v1114
        %1207 = vmatprep.subr.mxu0 0.0
        %1208 = vmatpush2.msra.mxu0 %v1113
        %1209 = vmatprep.mubr.f32.mxu0 %v1095
        %1210 = vmatmul.mubr.f32.gmra.mxu0 %v1094
        %v1211 = vpop.f32.mrf.mxu0
        %v1212 = vadd.f32 0.0, %v1211
        %v1213 = vpop.f32.mrf.mxu0
        %1214 = vdwg.mxu0
        %1215 = vmatprep.subr.mxu0 0.0
        %1216 = vmatpush1.msra.mxu0 0.0
        %1217 = vmatprep.subr.mxu0 0.0
        %1218 = vmatpush1.msra.mxu0 0.0
        %1219 = vmatprep.subr.mxu0 0.0
        %1220 = vmatpush1.msra.mxu0 0.0
        %1221 = vmatprep.subr.mxu0 0.0
        %1222 = vmatpush1.msra.mxu0 0.0
        %1223 = vmatprep.subr.mxu0 0.0
        %1224 = vmatpush1.msra.mxu0 0.0
        %1225 = vmatprep.subr.mxu0 0.0
        %1226 = vmatpush1.msra.mxu0 0.0
        %1227 = vmatprep.subr.mxu0 0.0
        %1228 = vmatpush1.msra.mxu0 0.0
        %1229 = vmatprep.subr.mxu0 0.0
        %1230 = vmatpush1.msra.mxu0 %v1143
        %1231 = vmatprep.subr.mxu0 0.0
        %1232 = vmatpush1.msra.mxu0 %v1136
        %1233 = vmatprep.subr.mxu0 0.0
        %1234 = vmatpush1.msra.mxu0 %v1135
        %1235 = vmatprep.subr.mxu0 0.0
        %1236 = vmatpush1.msra.mxu0 %v1134
        %1237 = vmatprep.subr.mxu0 0.0
        %1238 = vmatpush1.msra.mxu0 %v1133
        %1239 = vmatprep.subr.mxu0 0.0
        %1240 = vmatpush1.msra.mxu0 %v1132
        %1241 = vmatprep.subr.mxu0 0.0
        %1242 = vmatpush1.msra.mxu0 %v1131
        %1243 = vmatprep.subr.mxu0 0.0
        %1244 = vmatpush1.msra.mxu0 %v1130
        %1245 = vmatprep.subr.mxu0 0.0
        %1246 = vmatpush1.msra.mxu0 %v1129
        %1247 = vmatprep.subr.mxu0 0.0
        %1248 = vmatpush2.msra.mxu0 0.0
        %1249 = vmatprep.subr.mxu0 0.0
        %1250 = vmatpush2.msra.mxu0 0.0
        %1251 = vmatprep.subr.mxu0 0.0
        %1252 = vmatpush2.msra.mxu0 0.0
        %1253 = vmatprep.subr.mxu0 0.0
        %1254 = vmatpush2.msra.mxu0 0.0
        %1255 = vmatprep.subr.mxu0 0.0
        %1256 = vmatpush2.msra.mxu0 0.0
        %1257 = vmatprep.subr.mxu0 0.0
        %1258 = vmatpush2.msra.mxu0 0.0
        %1259 = vmatprep.subr.mxu0 0.0
        %1260 = vmatpush2.msra.mxu0 0.0
        %1261 = vmatprep.subr.mxu0 0.0
        %1262 = vmatpush2.msra.mxu0 0.0
        %1263 = vmatprep.subr.mxu0 0.0
        %1264 = vmatpush2.msra.mxu0 0.0
        %1265 = vmatprep.subr.mxu0 0.0
        %1266 = vmatpush2.msra.mxu0 0.0
        %1267 = vmatprep.subr.mxu0 0.0
        %1268 = vmatpush2.msra.mxu0 0.0
        %1269 = vmatprep.subr.mxu0 0.0
        %1270 = vmatpush2.msra.mxu0 0.0
        %1271 = vmatprep.subr.mxu0 0.0
        %1272 = vmatpush2.msra.mxu0 0.0
        %1273 = vmatprep.subr.mxu0 0.0
        %1274 = vmatpush2.msra.mxu0 0.0
        %1275 = vmatprep.subr.mxu0 0.0
        %1276 = vmatpush2.msra.mxu0 0.0
        %1277 = vmatprep.subr.mxu0 0.0
        %1278 = vmatpush2.msra.mxu0 0.0
        %1279 = vmatprep.mubr.f32.mxu0 0.0
        %1280 = vmatmul.mubr.f32.gmra.mxu0 %v1139
        %v1281 = vpop.f32.mrf.mxu0
        %v1282 = vadd.f32 %v1212, %v1281
        %v1283 = vpop.f32.mrf.mxu0
        %1284 = vdwg.mxu0
        %vm1285 = vcmask 818176
        %1286 = vst.msk [vmem:[%s433] sm:$0xff] %vm1285, %v1282
        %p1287 = scmp.lt.s32.totalorder %s25, 1
        %s1288 = scalar_select %p1287, %s25, 1
        %s1289 = smul.addr %s1288, 3
        %s1290 = smul.addr %s1289, 8
        %s1291 = scalar_lea.vmem %s9, %s1290
        %p1292 = scmp.lt.s32.totalorder %s25, 1
        %s1293 = scalar_select %p1292, %s25, 1
        %s1294 = smul.addr %s1293, 8
        %s1295 = scalar_lea.vmem %s10, %s1294
        // Predicated region
        $region77: #{_lambda_.4} parent=55 // pred_check
          %p1296 = pneg %p237
        $region78: #{_lambda_.4} parent=55 // pred_check_branch
          %1298 = sbr.rel (%p1296) target = $region80
        $region79: #{_lambda_.4} parent=55 // pred_region
          _
        $region80: #{_lambda_.4} parent=55 // pred_fallthru
          _
        // Predicated region
        $region81: #{_lambda_.4} parent=55 // pred_check
          %p1299 = pneg %p263
        $region82: #{_lambda_.4} parent=55 // pred_check_branch
          %1301 = sbr.rel (%p1299) target = $region84
        $region83: #{_lambda_.4} parent=55 // pred_region
          _
        $region84: #{_lambda_.4} parent=55 // pred_fallthru
          _
      $region56: #{_lambda_.4} parent=5 // pred_fallthru
        _
      %p1302 = scmp.le.s32.totalorder 2, %s20
      // Predicated region
      $region85: #{_lambda_.4} parent=5 // pred_check
        %p1303 = pneg %p1302
      $region86: #{_lambda_.4} parent=5 // pred_check_branch
        %1305 = sbr.rel (%p1303) target = $region88
      $region87: #{_lambda_.4} parent=5 // pred_region
        %s1306 = ssub.s32 %s20, 2
        // Predicated region
        $region89: #{_lambda_.4} parent=87 // pred_check
          %p1307 = pneg %p243
        $region90: #{_lambda_.4} parent=87 // pred_check_branch
          %1309 = sbr.rel (%p1307) target = $region92
        $region91: #{_lambda_.4} parent=87 // pred_region
          %p1310 = scmp.lt.s32.totalorder %s26, 1
          %s1311 = scalar_select %p1310, %s26, 1
          %s1312 = smul.addr %s1311, 3
          %s1313 = smul.addr %s1312, 8
          %s1314 = scalar_lea.vmem %s9, %s1313
        $region92: #{_lambda_.4} parent=87 // pred_fallthru
          _
        // Predicated region
        $region93: #{_lambda_.4} parent=87 // pred_check
          %p1315 = pneg %p269
        $region94: #{_lambda_.4} parent=87 // pred_check_branch
          %1317 = sbr.rel (%p1315) target = $region96
        $region95: #{_lambda_.4} parent=87 // pred_region
          %p1318 = scmp.lt.s32.totalorder %s26, 1
          %s1319 = scalar_select %p1318, %s26, 1
          %s1320 = smul.addr %s1319, 8
          %s1321 = scalar_lea.vmem %s10, %s1320
        $region96: #{_lambda_.4} parent=87 // pred_fallthru
          _
      $region88: #{_lambda_.4} parent=5 // pred_fallthru
        _
    $region6: #{_lambda_.4} parent=1 // loop_footer
      %s24 = sadd.s32 1, %s20
    $region7: #{_lambda_.4} parent=1 // loop_footer_branch
      %19 = sbr.rel target = $region3
    $region8: #{_lambda_.4} parent=1 // loop_exit
      _
    %1322 = vsyncpa [#allocation3], 1
    %s1323 = scalar_lea.sflag [#allocation3], 1
    %1324 = vsyncpa %s1323, 1
    %1325 = vsyncpa [#allocation5], 1
    %1326 = vsyncpa [#allocation8], 1

// kernel: _lambda_.6
$region0: #{_lambda_.6}
  #allocation0 [shape = 'u32[]', space=smem, size = 0x4, offset = 0x4, fixed_abs, tag = 'smem constant byte address 0x4 - core index']
  #allocation1 [shape = 'u32[144,128]{1,0:T(1,128)}', space=vmem, size = 0x12000, scoped, tag = 'internal scratch']
  %s0 = inlined_call_operand.vmem [shape: f32[2,16,100], index: 0, kind: input, shape index: {}]
  %s1 = inlined_call_operand.hbm [shape: f32[4,8,64], index: 1, kind: input, shape index: {}]
  %s2 = inlined_call_operand.hbm [shape: f32[8,1], index: 2, kind: input, shape index: {}]
  %s3 = inlined_call_operand.vmem [shape: f32[400,324], index: 3, kind: input, shape index: {}]
  %s4 = inlined_call_operand.vmem [shape: f32[1,324], index: 4, kind: input, shape index: {}]
  %s5 = inlined_call_operand.vmem [shape: f32[2,8,324], index: 5, kind: output, shape index: {}]
  %s6 = sld [smem:[#allocation0]]
  $region61: #{_lambda_.6} parent=0
    _
  %s8 = ssub.s32 1, %s6
  %s9 = scalar_select 0, %s8, %s6
  $region1: #{_lambda_.6} parent=0
    #allocation2 [shape = 'u8[16384]{0}', space=vmem, size = 0x4000, scoped, tag = 'input window, operand 1, single buffered']
    #allocation3 [shape = 's32[2]{0}', space=sflag, size = 0x8, scoped, tag = 'scoped memory for _lambda_.6']
    #allocation4 [shape = 'u8[4096]{0}', space=vmem, size = 0x1000, scoped, tag = 'input window, operand 2, single buffered']
    #allocation5 [shape = 's32[1]{0}', space=sflag, size = 0x4, scoped, tag = 'scoped memory for _lambda_.6']
    %10 = vsyncpa [#allocation3], 0
    %11 = vsyncpa [#allocation5], 0
    loop: start=0, step=1, limit=4
    $region2: #{_lambda_.6} parent=1 // loop_pre_header
      _
    $region3: #{_lambda_.6} parent=1 // loop_header
      %s13 = sphi 0, %s17
      %p14 = scmp.ge.s32.totalorder %s13, 4
      %s23 = sphi 0, %s25
      %s26 = sphi 0, %s23
      %s27 = sphi 0, %s26
      %s43 = sphi 0, %s27
      %s47 = sphi 0, %s47
      %s49 = sphi 0, %s47
      %s50 = sphi 0, %s49
      %s64 = sphi 0, %s50
      %s68 = sphi 0, %s68
      %s70 = sphi 0, %s68
      %s71 = sphi 0, %s70
      %s85 = sphi 0, %s71
      %s89 = sphi 0, %s89
      %s91 = sphi 0, %s89
      %s92 = sphi 0, %s91
      %s106 = sphi 0, %s92
      %s110 = sphi 0, %s110
      %s112 = sphi 0, %s110
      %s113 = sphi 0, %s112
      %s127 = sphi 0, %s113
      %s133 = sphi 0, %s135
      %s136 = sphi 0, %s133
      %s137 = sphi 0, %s136
      %s153 = sphi 0, %s137
    $region4: #{_lambda_.6} parent=1 // loop_header_branch
      %16 = sbr.rel (%p14) target = $region8
    $region5: #{_lambda_.6} parent=1 // loop_body
      %s18 = ssub.s32 %s13, 1
      %s19 = ssub.s32 %s13, 2
      %s20 = sadd.s32 %s13, 1
      %s21 = ssub.s32 %s13, %s20
      %p22 = scmp.eq.s32.totalorder %s21, 0
      %s24 = sadd.s32 %s23, 1
      %s25 = scalar_select %p22, %s23, %s24
      %p28 = pneg %p22
      %p29 = scmp.eq.s32.totalorder %s13, 1
      %p30 = por %p28, %p29
      %p31 = scmp.ne.s32.totalorder %s23, %s26
      %p32 = scmp.eq.s32.totalorder %s13, 0
      %p33 = por %p31, %p32
      %p34 = scmp.ne.s32.totalorder %s23, %s26
      %p35 = scmp.eq.s32.totalorder %s18, 1
      %p36 = por %p34, %p35
      %p37 = scmp.ne.s32.totalorder %s26, %s27
      %p38 = scmp.eq.s32.totalorder %s18, 0
      %p39 = por %p37, %p38
      %p40 = scmp.ne.s32.totalorder %s26, %s27
      %p41 = scmp.eq.s32.totalorder %s19, 1
      %p42 = por %p40, %p41
      %p44 = scmp.ne.s32.totalorder %s27, %s43
      %p45 = scmp.eq.s32.totalorder %s19, 0
      %p46 = por %p44, %p45
      %s48 = sadd.s32 %s47, 1
      %p51 = scmp.eq.s32.totalorder %s13, 1
      %p52 = scmp.ne.s32.totalorder %s47, %s49
      %p53 = scmp.eq.s32.totalorder %s13, 0
      %p54 = por %p52, %p53
      %p55 = scmp.ne.s32.totalorder %s47, %s49
      %p56 = scmp.eq.s32.totalorder %s18, 1
      %p57 = por %p55, %p56
      %p58 = scmp.ne.s32.totalorder %s49, %s50
      %p59 = scmp.eq.s32.totalorder %s18, 0
      %p60 = por %p58, %p59
      %p61 = scmp.ne.s32.totalorder %s49, %s50
      %p62 = scmp.eq.s32.totalorder %s19, 1
      %p63 = por %p61, %p62
      %p65 = scmp.ne.s32.totalorder %s50, %s64
      %p66 = scmp.eq.s32.totalorder %s19, 0
      %p67 = por %p65, %p66
      %s69 = sadd.s32 %s68, 1
      %p72 = scmp.eq.s32.totalorder %s13, 1
      %p73 = scmp.ne.s32.totalorder %s68, %s70
      %p74 = scmp.eq.s32.totalorder %s13, 0
      %p75 = por %p73, %p74
      %p76 = scmp.ne.s32.totalorder %s68, %s70
      %p77 = scmp.eq.s32.totalorder %s18, 1
      %p78 = por %p76, %p77
      %p79 = scmp.ne.s32.totalorder %s70, %s71
      %p80 = scmp.eq.s32.totalorder %s18, 0
      %p81 = por %p79, %p80
      %p82 = scmp.ne.s32.totalorder %s70, %s71
      %p83 = scmp.eq.s32.totalorder %s19, 1
      %p84 = por %p82, %p83
      %p86 = scmp.ne.s32.totalorder %s71, %s85
      %p87 = scmp.eq.s32.totalorder %s19, 0
      %p88 = por %p86, %p87
      %s90 = sadd.s32 %s89, 1
      %p93 = scmp.eq.s32.totalorder %s13, 1
      %p94 = scmp.ne.s32.totalorder %s89, %s91
      %p95 = scmp.eq.s32.totalorder %s13, 0
      %p96 = por %p94, %p95
      %p97 = scmp.ne.s32.totalorder %s89, %s91
      %p98 = scmp.eq.s32.totalorder %s18, 1
      %p99 = por %p97, %p98
      %p100 = scmp.ne.s32.totalorder %s91, %s92
      %p101 = scmp.eq.s32.totalorder %s18, 0
      %p102 = por %p100, %p101
      %p103 = scmp.ne.s32.totalorder %s91, %s92
      %p104 = scmp.eq.s32.totalorder %s19, 1
      %p105 = por %p103, %p104
      %p107 = scmp.ne.s32.totalorder %s92, %s106
      %p108 = scmp.eq.s32.totalorder %s19, 0
      %p109 = por %p107, %p108
      %s111 = sadd.s32 %s110, 1
      %p114 = scmp.eq.s32.totalorder %s13, 1
      %p115 = scmp.ne.s32.totalorder %s110, %s112
      %p116 = scmp.eq.s32.totalorder %s13, 0
      %p117 = por %p115, %p116
      %p118 = scmp.ne.s32.totalorder %s110, %s112
      %p119 = scmp.eq.s32.totalorder %s18, 1
      %p120 = por %p118, %p119
      %p121 = scmp.ne.s32.totalorder %s112, %s113
      %p122 = scmp.eq.s32.totalorder %s18, 0
      %p123 = por %p121, %p122
      %p124 = scmp.ne.s32.totalorder %s112, %s113
      %p125 = scmp.eq.s32.totalorder %s19, 1
      %p126 = por %p124, %p125
      %p128 = scmp.ne.s32.totalorder %s113, %s127
      %p129 = scmp.eq.s32.totalorder %s19, 0
      %p130 = por %p128, %p129
      %s131 = ssub.s32 %s13, %s20
      %p132 = scmp.eq.s32.totalorder %s131, 0
      %s134 = sadd.s32 %s133, 1
      %s135 = scalar_select %p132, %s133, %s134
      %p138 = pneg %p132
      %p139 = scmp.eq.s32.totalorder %s13, 1
      %p140 = por %p138, %p139
      %p141 = scmp.ne.s32.totalorder %s133, %s136
      %p142 = scmp.eq.s32.totalorder %s13, 0
      %p143 = por %p141, %p142
      %p144 = scmp.ne.s32.totalorder %s133, %s136
      %p145 = scmp.eq.s32.totalorder %s18, 1
      %p146 = por %p144, %p145
      %p147 = scmp.ne.s32.totalorder %s136, %s137
      %p148 = scmp.eq.s32.totalorder %s18, 0
      %p149 = por %p147, %p148
      %p150 = scmp.ne.s32.totalorder %s136, %s137
      %p151 = scmp.eq.s32.totalorder %s19, 1
      %p152 = por %p150, %p151
      %p154 = scmp.ne.s32.totalorder %s137, %s153
      %p155 = scmp.eq.s32.totalorder %s19, 0
      %p156 = por %p154, %p155
      %p157 = scmp.le.s32.totalorder 1, %s13
      %p158 = scmp.lt.s32.totalorder %s13, 3
      %p159 = pnand %p157, %p158
      %p160 = pneg %p159
      // Predicated region
      $region9: #{_lambda_.6} parent=5 // pred_check
        _
      $region10: #{_lambda_.6} parent=5 // pred_check_branch
        %162 = sbr.rel (%p159) target = $region12
      $region11: #{_lambda_.6} parent=5 // pred_region
        %s163 = ssub.s32 %s13, 1
        // Predicated region
        $region13: #{_lambda_.6} parent=11 // pred_check
          %p164 = pneg %p60
        $region14: #{_lambda_.6} parent=11 // pred_check_branch
          %166 = sbr.rel (%p164) target = $region16
        $region15: #{_lambda_.6} parent=11 // pred_region
          %s168 = ssub.s32 512, 512
          %169 = vsyncadd [#allocation3], %s168
          %s170 = sshll.u32 [#allocation2], 4
          %s171 = int_to_ptr.vmem [resolvable:$true] %s170
          %176 = dma.hbm_to_vmem [thread:$0]  %s1, 512, %s171, [#allocation3], 128, 128, 8
        $region16: #{_lambda_.6} parent=11 // pred_fallthru
          _
        // Predicated region
        $region17: #{_lambda_.6} parent=11 // pred_check
          %p177 = pneg %p81
        $region18: #{_lambda_.6} parent=11 // pred_check_branch
          %179 = sbr.rel (%p177) target = $region20
        $region19: #{_lambda_.6} parent=11 // pred_region
          %s181 = ssub.s32 128, 128
          %182 = vsyncadd [#allocation5], %s181
          %s184 = sshll.u32 [#allocation4], 4
          %s185 = int_to_ptr.vmem [resolvable:$true] %s184
          %187 = dma.hbm_to_vmem [thread:$0]  %s2, 128, %s185, [#allocation5]
        $region20: #{_lambda_.6} parent=11 // pred_fallthru
          _
        // Predicated region
        $region21: #{_lambda_.6} parent=11 // pred_check
          %p188 = pneg %p102
        $region22: #{_lambda_.6} parent=11 // pred_check_branch
          %190 = sbr.rel (%p188) target = $region24
        $region23: #{_lambda_.6} parent=11 // pred_region
          _
        $region24: #{_lambda_.6} parent=11 // pred_fallthru
          _
        // Predicated region
        $region25: #{_lambda_.6} parent=11 // pred_check
          %p191 = pneg %p123
        $region26: #{_lambda_.6} parent=11 // pred_check_branch
          %193 = sbr.rel (%p191) target = $region28
        $region27: #{_lambda_.6} parent=11 // pred_region
          _
        $region28: #{_lambda_.6} parent=11 // pred_fallthru
          _
      $region12: #{_lambda_.6} parent=5 // pred_fallthru
        _
      %p194 = scmp.lt.s32.totalorder %s13, 2
      // Predicated region
      $region29: #{_lambda_.6} parent=5 // pred_check
        %p195 = pneg %p194
      $region30: #{_lambda_.6} parent=5 // pred_check_branch
        %197 = sbr.rel (%p195) target = $region32
      $region31: #{_lambda_.6} parent=5 // pred_region
        // Predicated region
        $region33: #{_lambda_.6} parent=31 // pred_check
          %p198 = pneg %p33
        $region34: #{_lambda_.6} parent=31 // pred_check_branch
          %200 = sbr.rel (%p198) target = $region36
        $region35: #{_lambda_.6} parent=31 // pred_region
          %p201 = scmp.lt.s32.totalorder %s13, 1
          %s202 = scalar_select %p201, %s13, 1
          %s203 = smul.addr %s202, 2
          %s204 = smul.addr %s203, 8
          %s205 = scalar_lea.vmem %s0, %s204
        $region36: #{_lambda_.6} parent=31 // pred_fallthru
          _
      $region32: #{_lambda_.6} parent=5 // pred_fallthru
        _
      %p206 = scmp.le.s32.totalorder 1, %s13
      %p207 = scmp.lt.s32.totalorder %s13, 3
      %p208 = pnand %p206, %p207
      %p209 = pneg %p208
      // Predicated region
      $region37: #{_lambda_.6} parent=5 // pred_check
        _
      $region38: #{_lambda_.6} parent=5 // pred_check_branch
        %211 = sbr.rel (%p208) target = $region40
      $region39: #{_lambda_.6} parent=5 // pred_region
        %s212 = ssub.s32 %s13, 1
        // Predicated region
        $region41: #{_lambda_.6} parent=39 // pred_check
          %p213 = pneg %p60
        $region42: #{_lambda_.6} parent=39 // pred_check_branch
          %215 = sbr.rel (%p213) target = $region44
        $region43: #{_lambda_.6} parent=39 // pred_region
          %216 = dma.done [#allocation3], 512
        $region44: #{_lambda_.6} parent=39 // pred_fallthru
          _
        // Predicated region
        $region45: #{_lambda_.6} parent=39 // pred_check
          %p217 = pneg %p81
        $region46: #{_lambda_.6} parent=39 // pred_check_branch
          %219 = sbr.rel (%p217) target = $region48
        $region47: #{_lambda_.6} parent=39 // pred_region
          %220 = dma.done [#allocation5], 128
        $region48: #{_lambda_.6} parent=39 // pred_fallthru
          _
        %p221 = scmp.lt.s32.totalorder %s18, 1
        %s222 = scalar_select %p221, %s18, 1
        %s223 = smul.addr %s222, 2
        %s224 = smul.addr %s223, 8
        %s225 = scalar_lea.vmem %s0, %s224
        %p226 = pneg %p39
        %p227 = pneg %p36
        %p228 = pneg %p60
        %p229 = pneg %p57
        %p230 = pneg %p81
        %p231 = pneg %p78
        %p232 = pneg %p102
        %p233 = pneg %p99
        %p234 = pneg %p123
        %p235 = pneg %p120
        %p236 = pneg %p149
        %p237 = pneg %p146
        %p238 = scmp.lt.s32.totalorder %s18, 1
        %s239 = scalar_select %p238, %s18, 1
        %s240 = smul.addr %s239, 3
        %s241 = smul.addr %s240, 8
        %s242 = scalar_lea.vmem %s5, %s241
        %p243 = scmp.lt.s32.totalorder %s18, 1
        %s244 = scalar_select %p243, %s18, 1
        %s245 = smul.addr %s244, 2
        %s246 = smul.addr %s245, 8
        %s247 = scalar_lea.vmem %s0, %s246
        %p248 = scmp.lt.s32.totalorder %s18, 1
        %s249 = scalar_select %p248, %s18, 1
        %s250 = smul.addr %s249, 3
        %s251 = smul.addr %s250, 8
        %s252 = scalar_lea.vmem %s5, %s251
        %v253 = vld [vmem:[%s247] sm:$0xff]
        %v254 = vld [vmem:[%s247 + $0x8] sm:$0xff]
        %257 = vrot.lane.b32.xlu0 %v253, 11
        %v258 = vpop.permute.xlu0 %257
        %259 = vrot.lane.b32.xlu0 %v254, 11
        %v260 = vpop.permute.xlu0 %259
        %vm263 = vcmask 89088
        %v264 = vsel %vm263, 0.0, %v258
        %v265 = vsel %vm263, 0.0, %v260
        %vm266 = vcmask 908288
        %v267 = vsel %vm266, %v264, 0.0
        %v268 = vsel %vm266, %v265, 0.0
        %271 = vrot.lane.b32.xlu0 %v267, 127
        %v272 = vpop.permute.xlu0 %271
        %273 = vrot.lane.b32.xlu0 %v268, 127
        %v274 = vpop.permute.xlu0 %273
        %277 = vrot.lane.b32.xlu0 %v267, 118
        %v278 = vpop.permute.xlu0 %277
        %279 = vrot.lane.b32.xlu0 %v268, 118
        %v280 = vpop.permute.xlu0 %279
        %283 = vrot.lane.b32.xlu0 %v267, 117
        %v284 = vpop.permute.xlu0 %283
        %285 = vrot.lane.b32.xlu0 %v268, 117
        %v286 = vpop.permute.xlu0 %285
        %v289 = vld [vmem:[#allocation2] sm:$0xff]
        %vm290 = vcmask 523264
        %v292 = vsel %vm290, %v289, 0
        %294 = vmatprep.subr.mxu0 0.0
        %295 = vmatpush1.msra.mxu0 0.0
        %296 = vmatprep.subr.mxu0 0.0
        %297 = vmatpush1.msra.mxu0 0.0
        %298 = vmatprep.subr.mxu0 0.0
        %299 = vmatpush1.msra.mxu0 0.0
        %300 = vmatprep.subr.mxu0 0.0
        %301 = vmatpush1.msra.mxu0 0.0
        %302 = vmatprep.subr.mxu0 0.0
        %303 = vmatpush1.msra.mxu0 0.0
        %304 = vmatprep.subr.mxu0 0.0
        %305 = vmatpush1.msra.mxu0 0.0
        %306 = vmatprep.subr.mxu0 0.0
        %307 = vmatpush1.msra.mxu0 0.0
        %308 = vmatprep.subr.mxu0 0.0
        %309 = vmatpush1.msra.mxu0 0.0
        %310 = vmatprep.subr.mxu0 0.0
        %311 = vmatpush1.msra.mxu0 %v286
        %312 = vmatprep.subr.mxu0 0.0
        %313 = vmatpush1.msra.mxu0 %v284
        %314 = vmatprep.subr.mxu0 0.0
        %315 = vmatpush1.msra.mxu0 %v280
        %316 = vmatprep.subr.mxu0 0.0
        %317 = vmatpush1.msra.mxu0 %v278
        %318 = vmatprep.subr.mxu0 0.0
        %319 = vmatpush1.msra.mxu0 %v274
        %320 = vmatprep.subr.mxu0 0.0
        %321 = vmatpush1.msra.mxu0 %v272
        %322 = vmatprep.subr.mxu0 0.0
        %323 = vmatpush1.msra.mxu0 %v268
        %324 = vmatprep.subr.mxu0 0.0
        %325 = vmatpush1.msra.mxu0 %v267
        %326 = vmatprep.subr.mxu0 0.0
        %327 = vmatpush2.msra.mxu0 0.0
        %328 = vmatprep.subr.mxu0 0.0
        %329 = vmatpush2.msra.mxu0 0.0
        %330 = vmatprep.subr.mxu0 0.0
        %331 = vmatpush2.msra.mxu0 0.0
        %332 = vmatprep.subr.mxu0 0.0
        %333 = vmatpush2.msra.mxu0 0.0
        %334 = vmatprep.subr.mxu0 0.0
        %335 = vmatpush2.msra.mxu0 0.0
        %336 = vmatprep.subr.mxu0 0.0
        %337 = vmatpush2.msra.mxu0 0.0
        %338 = vmatprep.subr.mxu0 0.0
        %339 = vmatpush2.msra.mxu0 0.0
        %340 = vmatprep.subr.mxu0 0.0
        %341 = vmatpush2.msra.mxu0 0.0
        %342 = vmatprep.subr.mxu0 0.0
        %343 = vmatpush2.msra.mxu0 0.0
        %344 = vmatprep.subr.mxu0 0.0
        %345 = vmatpush2.msra.mxu0 0.0
        %346 = vmatprep.subr.mxu0 0.0
        %347 = vmatpush2.msra.mxu0 0.0
        %348 = vmatprep.subr.mxu0 0.0
        %349 = vmatpush2.msra.mxu0 0.0
        %350 = vmatprep.subr.mxu0 0.0
        %351 = vmatpush2.msra.mxu0 0.0
        %352 = vmatprep.subr.mxu0 0.0
        %353 = vmatpush2.msra.mxu0 0.0
        %354 = vmatprep.subr.mxu0 0.0
        %355 = vmatpush2.msra.mxu0 0.0
        %356 = vmatprep.subr.mxu0 0.0
        %357 = vmatpush2.msra.mxu0 0.0
        %358 = vmatprep.mubr.f32.mxu0 0.0
        %359 = vmatmul.mubr.f32.gmra.mxu0 %v292
        %v360 = vpop.f32.mrf.mxu0
        %v361 = vadd.f32 0.0, %v360
        %v362 = vpop.f32.mrf.mxu0
        %363 = vdwg.mxu0
        %364 = vrot.lane.b32.xlu0 %v253, 10
        %v365 = vpop.permute.xlu0 %364
        %366 = vrot.lane.b32.xlu0 %v254, 10
        %v367 = vpop.permute.xlu0 %366
        %vm370 = vcmask 80896
        %v371 = vsel %vm370, 0.0, %v365
        %v372 = vsel %vm370, 0.0, %v367
        %vm373 = vcmask 900096
        %v374 = vsel %vm373, %v371, 0.0
        %v375 = vsel %vm373, %v372, 0.0
        %378 = vrot.lane.b32.xlu0 %v374, 127
        %v379 = vpop.permute.xlu0 %378
        %380 = vrot.lane.b32.xlu0 %v375, 127
        %v381 = vpop.permute.xlu0 %380
        %384 = vrot.lane.b32.xlu0 %v374, 118
        %v385 = vpop.permute.xlu0 %384
        %386 = vrot.lane.b32.xlu0 %v375, 118
        %v387 = vpop.permute.xlu0 %386
        %390 = vrot.lane.b32.xlu0 %v374, 117
        %v391 = vpop.permute.xlu0 %390
        %392 = vrot.lane.b32.xlu0 %v375, 117
        %v393 = vpop.permute.xlu0 %392
        %s396 = scalar_lea.vmem [#allocation2], 8
        %v397 = vld [vmem:[%s396] sm:$0xff]
        %v399 = vsel %vm290, %v397, 0
        %401 = vmatprep.subr.mxu0 0.0
        %402 = vmatpush1.msra.mxu0 0.0
        %403 = vmatprep.subr.mxu0 0.0
        %404 = vmatpush1.msra.mxu0 0.0
        %405 = vmatprep.subr.mxu0 0.0
        %406 = vmatpush1.msra.mxu0 0.0
        %407 = vmatprep.subr.mxu0 0.0
        %408 = vmatpush1.msra.mxu0 0.0
        %409 = vmatprep.subr.mxu0 0.0
        %410 = vmatpush1.msra.mxu0 0.0
        %411 = vmatprep.subr.mxu0 0.0
        %412 = vmatpush1.msra.mxu0 0.0
        %413 = vmatprep.subr.mxu0 0.0
        %414 = vmatpush1.msra.mxu0 0.0
        %415 = vmatprep.subr.mxu0 0.0
        %416 = vmatpush1.msra.mxu0 0.0
        %417 = vmatprep.subr.mxu0 0.0
        %418 = vmatpush1.msra.mxu0 %v393
        %419 = vmatprep.subr.mxu0 0.0
        %420 = vmatpush1.msra.mxu0 %v391
        %421 = vmatprep.subr.mxu0 0.0
        %422 = vmatpush1.msra.mxu0 %v387
        %423 = vmatprep.subr.mxu0 0.0
        %424 = vmatpush1.msra.mxu0 %v385
        %425 = vmatprep.subr.mxu0 0.0
        %426 = vmatpush1.msra.mxu0 %v381
        %427 = vmatprep.subr.mxu0 0.0
        %428 = vmatpush1.msra.mxu0 %v379
        %429 = vmatprep.subr.mxu0 0.0
        %430 = vmatpush1.msra.mxu0 %v375
        %431 = vmatprep.subr.mxu0 0.0
        %432 = vmatpush1.msra.mxu0 %v374
        %433 = vmatprep.subr.mxu0 0.0
        %434 = vmatpush2.msra.mxu0 0.0
        %435 = vmatprep.subr.mxu0 0.0
        %436 = vmatpush2.msra.mxu0 0.0
        %437 = vmatprep.subr.mxu0 0.0
        %438 = vmatpush2.msra.mxu0 0.0
        %439 = vmatprep.subr.mxu0 0.0
        %440 = vmatpush2.msra.mxu0 0.0
        %441 = vmatprep.subr.mxu0 0.0
        %442 = vmatpush2.msra.mxu0 0.0
        %443 = vmatprep.subr.mxu0 0.0
        %444 = vmatpush2.msra.mxu0 0.0
        %445 = vmatprep.subr.mxu0 0.0
        %446 = vmatpush2.msra.mxu0 0.0
        %447 = vmatprep.subr.mxu0 0.0
        %448 = vmatpush2.msra.mxu0 0.0
        %449 = vmatprep.subr.mxu0 0.0
        %450 = vmatpush2.msra.mxu0 0.0
        %451 = vmatprep.subr.mxu0 0.0
        %452 = vmatpush2.msra.mxu0 0.0
        %453 = vmatprep.subr.mxu0 0.0
        %454 = vmatpush2.msra.mxu0 0.0
        %455 = vmatprep.subr.mxu0 0.0
        %456 = vmatpush2.msra.mxu0 0.0
        %457 = vmatprep.subr.mxu0 0.0
        %458 = vmatpush2.msra.mxu0 0.0
        %459 = vmatprep.subr.mxu0 0.0
        %460 = vmatpush2.msra.mxu0 0.0
        %461 = vmatprep.subr.mxu0 0.0
        %462 = vmatpush2.msra.mxu0 0.0
        %463 = vmatprep.subr.mxu0 0.0
        %464 = vmatpush2.msra.mxu0 0.0
        %465 = vmatprep.mubr.f32.mxu0 0.0
        %466 = vmatmul.mubr.f32.gmra.mxu0 %v399
        %v467 = vpop.f32.mrf.mxu0
        %v468 = vadd.f32 0.0, %v467
        %v469 = vpop.f32.mrf.mxu0
        %470 = vdwg.mxu0
        %s471 = scalar_lea.vmem [#allocation2], 16
        %v472 = vld [vmem:[%s471] sm:$0xff]
        %473 = vrot.lane.b32.xlu0 %v374, 119
        %v474 = vpop.permute.xlu0 %473
        %475 = vrot.lane.b32.xlu0 %v375, 119
        %v476 = vpop.permute.xlu0 %475
        %477 = vrot.lane.b32.xlu0 %v379, 119
        %v478 = vpop.permute.xlu0 %477
        %479 = vrot.lane.b32.xlu0 %v381, 119
        %v480 = vpop.permute.xlu0 %479
        %481 = vrot.lane.b32.xlu0 %v385, 119
        %v482 = vpop.permute.xlu0 %481
        %483 = vrot.lane.b32.xlu0 %v387, 119
        %v484 = vpop.permute.xlu0 %483
        %485 = vrot.lane.b32.xlu0 %v391, 119
        %v486 = vpop.permute.xlu0 %485
        %487 = vrot.lane.b32.xlu0 %v393, 119
        %v488 = vpop.permute.xlu0 %487
        %v498 = vsel %vm290, %v472, 0
        %500 = vmatprep.subr.mxu0 0.0
        %501 = vmatpush1.msra.mxu0 0.0
        %502 = vmatprep.subr.mxu0 0.0
        %503 = vmatpush1.msra.mxu0 0.0
        %504 = vmatprep.subr.mxu0 0.0
        %505 = vmatpush1.msra.mxu0 0.0
        %506 = vmatprep.subr.mxu0 0.0
        %507 = vmatpush1.msra.mxu0 0.0
        %508 = vmatprep.subr.mxu0 0.0
        %509 = vmatpush1.msra.mxu0 0.0
        %510 = vmatprep.subr.mxu0 0.0
        %511 = vmatpush1.msra.mxu0 0.0
        %512 = vmatprep.subr.mxu0 0.0
        %513 = vmatpush1.msra.mxu0 0.0
        %514 = vmatprep.subr.mxu0 0.0
        %515 = vmatpush1.msra.mxu0 0.0
        %516 = vmatprep.subr.mxu0 0.0
        %517 = vmatpush1.msra.mxu0 %v488
        %518 = vmatprep.subr.mxu0 0.0
        %519 = vmatpush1.msra.mxu0 %v486
        %520 = vmatprep.subr.mxu0 0.0
        %521 = vmatpush1.msra.mxu0 %v484
        %522 = vmatprep.subr.mxu0 0.0
        %523 = vmatpush1.msra.mxu0 %v482
        %524 = vmatprep.subr.mxu0 0.0
        %525 = vmatpush1.msra.mxu0 %v480
        %526 = vmatprep.subr.mxu0 0.0
        %527 = vmatpush1.msra.mxu0 %v478
        %528 = vmatprep.subr.mxu0 0.0
        %529 = vmatpush1.msra.mxu0 %v476
        %530 = vmatprep.subr.mxu0 0.0
        %531 = vmatpush1.msra.mxu0 %v474
        %532 = vmatprep.subr.mxu0 0.0
        %533 = vmatpush2.msra.mxu0 0.0
        %534 = vmatprep.subr.mxu0 0.0
        %535 = vmatpush2.msra.mxu0 0.0
        %536 = vmatprep.subr.mxu0 0.0
        %537 = vmatpush2.msra.mxu0 0.0
        %538 = vmatprep.subr.mxu0 0.0
        %539 = vmatpush2.msra.mxu0 0.0
        %540 = vmatprep.subr.mxu0 0.0
        %541 = vmatpush2.msra.mxu0 0.0
        %542 = vmatprep.subr.mxu0 0.0
        %543 = vmatpush2.msra.mxu0 0.0
        %544 = vmatprep.subr.mxu0 0.0
        %545 = vmatpush2.msra.mxu0 0.0
        %546 = vmatprep.subr.mxu0 0.0
        %547 = vmatpush2.msra.mxu0 0.0
        %548 = vmatprep.subr.mxu0 0.0
        %549 = vmatpush2.msra.mxu0 0.0
        %550 = vmatprep.subr.mxu0 0.0
        %551 = vmatpush2.msra.mxu0 0.0
        %552 = vmatprep.subr.mxu0 0.0
        %553 = vmatpush2.msra.mxu0 0.0
        %554 = vmatprep.subr.mxu0 0.0
        %555 = vmatpush2.msra.mxu0 0.0
        %556 = vmatprep.subr.mxu0 0.0
        %557 = vmatpush2.msra.mxu0 0.0
        %558 = vmatprep.subr.mxu0 0.0
        %559 = vmatpush2.msra.mxu0 0.0
        %560 = vmatprep.subr.mxu0 0.0
        %561 = vmatpush2.msra.mxu0 0.0
        %562 = vmatprep.subr.mxu0 0.0
        %563 = vmatpush2.msra.mxu0 0.0
        %564 = vmatprep.mubr.f32.mxu0 0.0
        %565 = vmatmul.mubr.f32.gmra.mxu0 %v498
        %v566 = vpop.f32.mrf.mxu0
        %v567 = vadd.f32 0.0, %v566
        %v568 = vpop.f32.mrf.mxu0
        %569 = vdwg.mxu0
        %s570 = scalar_lea.vmem [#allocation2], 24
        %v571 = vld [vmem:[%s570] sm:$0xff]
        %572 = vrot.lane.b32.xlu0 %v272, 117
        %v573 = vpop.permute.xlu0 %572
        %574 = vrot.lane.b32.xlu0 %v274, 117
        %v575 = vpop.permute.xlu0 %574
        %576 = vrot.lane.b32.xlu0 %v278, 117
        %v577 = vpop.permute.xlu0 %576
        %578 = vrot.lane.b32.xlu0 %v280, 117
        %v579 = vpop.permute.xlu0 %578
        %580 = vrot.lane.b32.xlu0 %v284, 117
        %v581 = vpop.permute.xlu0 %580
        %582 = vrot.lane.b32.xlu0 %v286, 117
        %v583 = vpop.permute.xlu0 %582
        %v591 = vsel %vm290, %v571, 0
        %593 = vmatprep.subr.mxu0 0.0
        %594 = vmatpush1.msra.mxu0 0.0
        %595 = vmatprep.subr.mxu0 0.0
        %596 = vmatpush1.msra.mxu0 0.0
        %597 = vmatprep.subr.mxu0 0.0
        %598 = vmatpush1.msra.mxu0 0.0
        %599 = vmatprep.subr.mxu0 0.0
        %600 = vmatpush1.msra.mxu0 0.0
        %601 = vmatprep.subr.mxu0 0.0
        %602 = vmatpush1.msra.mxu0 0.0
        %603 = vmatprep.subr.mxu0 0.0
        %604 = vmatpush1.msra.mxu0 0.0
        %605 = vmatprep.subr.mxu0 0.0
        %606 = vmatpush1.msra.mxu0 0.0
        %607 = vmatprep.subr.mxu0 0.0
        %608 = vmatpush1.msra.mxu0 0.0
        %609 = vmatprep.subr.mxu0 0.0
        %610 = vmatpush1.msra.mxu0 %v583
        %611 = vmatprep.subr.mxu0 0.0
        %612 = vmatpush1.msra.mxu0 %v581
        %613 = vmatprep.subr.mxu0 0.0
        %614 = vmatpush1.msra.mxu0 %v579
        %615 = vmatprep.subr.mxu0 0.0
        %616 = vmatpush1.msra.mxu0 %v577
        %617 = vmatprep.subr.mxu0 0.0
        %618 = vmatpush1.msra.mxu0 %v575
        %619 = vmatprep.subr.mxu0 0.0
        %620 = vmatpush1.msra.mxu0 %v573
        %621 = vmatprep.subr.mxu0 0.0
        %622 = vmatpush1.msra.mxu0 %v286
        %623 = vmatprep.subr.mxu0 0.0
        %624 = vmatpush1.msra.mxu0 %v284
        %625 = vmatprep.subr.mxu0 0.0
        %626 = vmatpush2.msra.mxu0 0.0
        %627 = vmatprep.subr.mxu0 0.0
        %628 = vmatpush2.msra.mxu0 0.0
        %629 = vmatprep.subr.mxu0 0.0
        %630 = vmatpush2.msra.mxu0 0.0
        %631 = vmatprep.subr.mxu0 0.0
        %632 = vmatpush2.msra.mxu0 0.0
        %633 = vmatprep.subr.mxu0 0.0
        %634 = vmatpush2.msra.mxu0 0.0
        %635 = vmatprep.subr.mxu0 0.0
        %636 = vmatpush2.msra.mxu0 0.0
        %637 = vmatprep.subr.mxu0 0.0
        %638 = vmatpush2.msra.mxu0 0.0
        %639 = vmatprep.subr.mxu0 0.0
        %640 = vmatpush2.msra.mxu0 0.0
        %641 = vmatprep.subr.mxu0 0.0
        %642 = vmatpush2.msra.mxu0 0.0
        %643 = vmatprep.subr.mxu0 0.0
        %644 = vmatpush2.msra.mxu0 0.0
        %645 = vmatprep.subr.mxu0 0.0
        %646 = vmatpush2.msra.mxu0 0.0
        %647 = vmatprep.subr.mxu0 0.0
        %648 = vmatpush2.msra.mxu0 0.0
        %649 = vmatprep.subr.mxu0 0.0
        %650 = vmatpush2.msra.mxu0 0.0
        %651 = vmatprep.subr.mxu0 0.0
        %652 = vmatpush2.msra.mxu0 0.0
        %653 = vmatprep.subr.mxu0 0.0
        %654 = vmatpush2.msra.mxu0 0.0
        %655 = vmatprep.subr.mxu0 0.0
        %656 = vmatpush2.msra.mxu0 0.0
        %657 = vmatprep.mubr.f32.mxu0 0.0
        %658 = vmatmul.mubr.f32.gmra.mxu0 %v591
        %v659 = vpop.f32.mrf.mxu0
        %v660 = vadd.f32 0.0, %v659
        %v661 = vpop.f32.mrf.mxu0
        %662 = vdwg.mxu0
        %664 = vrot.lane.b32.xlu0 %v468, 100
        %v665 = vpop.permute.xlu0 %664
        %668 = vrot.lane.b32.xlu0 %v567, 72
        %v669 = vpop.permute.xlu0 %668
        %672 = vrot.lane.b32.xlu0 %v660, 44
        %v673 = vpop.permute.xlu0 %672
        %vm675 = vcmask 818176
        %v676 = vsel %vm675, %v361, %v665
        %vm677 = vcmask 588800
        %v678 = vsel %vm677, %v665, %v669
        %vm679 = vcmask 359424
        %v680 = vsel %vm679, %v669, %v673
        %v681 = vld [vmem:[%s3] sm:$0xff]
        %v682 = vld [vmem:[%s3 + $0x8] sm:$0xff]
        %v683 = vld [vmem:[%s3 + $0x10] sm:$0xff]
        %v684 = vld [vmem:[%s3 + $0x18] sm:$0xff]
        %v685 = vld [vmem:[%s3 + $0x20] sm:$0xff]
        %v686 = vld [vmem:[%s3 + $0x28] sm:$0xff]
        %v687 = vld [vmem:[%s3 + $0x30] sm:$0xff]
        %v688 = vld [vmem:[%s3 + $0x38] sm:$0xff]
        %v689 = vld [vmem:[%s3 + $0x40] sm:$0xff]
        %v690 = vld [vmem:[%s3 + $0x48] sm:$0xff]
        %v691 = vld [vmem:[%s3 + $0x50] sm:$0xff]
        %v692 = vld [vmem:[%s3 + $0x58] sm:$0xff]
        %v693 = vld [vmem:[%s3 + $0x60] sm:$0xff]
        %v694 = vld [vmem:[%s3 + $0x68] sm:$0xff]
        %v695 = vld [vmem:[%s3 + $0x70] sm:$0xff]
        %v696 = vld [vmem:[%s3 + $0x78] sm:$0xff]
        %v697 = vld [vmem:[%s3 + $0x80] sm:$0xff]
        %v698 = vld [vmem:[%s3 + $0x88] sm:$0xff]
        %v699 = vld [vmem:[%s3 + $0x90] sm:$0xff]
        %v700 = vld [vmem:[%s3 + $0x98] sm:$0xff]
        %v701 = vld [vmem:[%s3 + $0xa0] sm:$0xff]
        %v702 = vld [vmem:[%s3 + $0xa8] sm:$0xff]
        %v703 = vld [vmem:[%s3 + $0xb0] sm:$0xff]
        %v704 = vld [vmem:[%s3 + $0xb8] sm:$0xff]
        %v705 = vld [vmem:[%s3 + $0xc0] sm:$0xff]
        %v706 = vld [vmem:[%s3 + $0xc8] sm:$0xff]
        %v707 = vld [vmem:[%s3 + $0xd0] sm:$0xff]
        %v708 = vld [vmem:[%s3 + $0xd8] sm:$0xff]
        %v709 = vld [vmem:[%s3 + $0xe0] sm:$0xff]
        %v710 = vld [vmem:[%s3 + $0xe8] sm:$0xff]
        %v711 = vld [vmem:[%s3 + $0xf0] sm:$0xff]
        %v712 = vld [vmem:[%s3 + $0xf8] sm:$0xff]
        %v713 = vld [vmem:[%s3 + $0x100] sm:$0xff]
        %v714 = vld [vmem:[%s3 + $0x108] sm:$0xff]
        %v715 = vld [vmem:[%s3 + $0x110] sm:$0xff]
        %v716 = vld [vmem:[%s3 + $0x118] sm:$0xff]
        %v717 = vld [vmem:[%s3 + $0x120] sm:$0xff]
        %v718 = vld [vmem:[%s3 + $0x128] sm:$0xff]
        %v719 = vld [vmem:[%s3 + $0x130] sm:$0xff]
        %v720 = vld [vmem:[%s3 + $0x138] sm:$0xff]
        %v721 = vld [vmem:[%s3 + $0x140] sm:$0xff]
        %v722 = vld [vmem:[%s3 + $0x148] sm:$0xff]
        %v723 = vld [vmem:[%s3 + $0x150] sm:$0xff]
        %v724 = vld [vmem:[%s3 + $0x158] sm:$0xff]
        %v725 = vld [vmem:[%s3 + $0x160] sm:$0xff]
        %v726 = vld [vmem:[%s3 + $0x168] sm:$0xff]
        %v727 = vld [vmem:[%s3 + $0x170] sm:$0xff]
        %v728 = vld [vmem:[%s3 + $0x178] sm:$0xff]
        %v729 = vld [vmem:[%s3 + $0x180] sm:$0xff]
        %v730 = vld [vmem:[%s3 + $0x188] sm:$0xff]
        %v731 = vld [vmem:[%s3 + $0x190] sm:$0xff]
        %v732 = vld [vmem:[%s3 + $0x198] sm:$0xff]
        %v733 = vld [vmem:[%s3 + $0x1a0] sm:$0xff]
        %v734 = vld [vmem:[%s3 + $0x1a8] sm:$0xff]
        %v735 = vld [vmem:[%s3 + $0x1b0] sm:$0xff]
        %v736 = vld [vmem:[%s3 + $0x1b8] sm:$0xff]
        %v737 = vld [vmem:[%s3 + $0x1c0] sm:$0xff]
        %v738 = vld [vmem:[%s3 + $0x1c8] sm:$0xff]
        %v739 = vld [vmem:[%s3 + $0x1d0] sm:$0xff]
        %v740 = vld [vmem:[%s3 + $0x1d8] sm:$0xff]
        %v741 = vld [vmem:[%s3 + $0x1e0] sm:$0xff]
        %v742 = vld [vmem:[%s3 + $0x1e8] sm:$0xff]
        %v743 = vld [vmem:[%s3 + $0x1f0] sm:$0xff]
        %v744 = vld [vmem:[%s3 + $0x1f8] sm:$0xff]
        %v745 = vld [vmem:[%s3 + $0x200] sm:$0xff]
        %v746 = vld [vmem:[%s3 + $0x208] sm:$0xff]
        %v747 = vld [vmem:[%s3 + $0x210] sm:$0xff]
        %v748 = vld [vmem:[%s3 + $0x218] sm:$0xff]
        %v749 = vld [vmem:[%s3 + $0x220] sm:$0xff]
        %v750 = vld [vmem:[%s3 + $0x228] sm:$0xff]
        %v751 = vld [vmem:[%s3 + $0x230] sm:$0xff]
        %v752 = vld [vmem:[%s3 + $0x238] sm:$0xff]
        %v753 = vld [vmem:[%s3 + $0x240] sm:$0xff]
        %v754 = vld [vmem:[%s3 + $0x248] sm:$0xff]
        %v755 = vld [vmem:[%s3 + $0x250] sm:$0xff]
        %v756 = vld [vmem:[%s3 + $0x258] sm:$0xff]
        %v757 = vld [vmem:[%s3 + $0x260] sm:$0xff]
        %v758 = vld [vmem:[%s3 + $0x268] sm:$0xff]
        %v759 = vld [vmem:[%s3 + $0x270] sm:$0xff]
        %v760 = vld [vmem:[%s3 + $0x278] sm:$0xff]
        %v761 = vld [vmem:[%s3 + $0x280] sm:$0xff]
        %v762 = vld [vmem:[%s3 + $0x288] sm:$0xff]
        %v763 = vld [vmem:[%s3 + $0x290] sm:$0xff]
        %v764 = vld [vmem:[%s3 + $0x298] sm:$0xff]
        %v765 = vld [vmem:[%s3 + $0x2a0] sm:$0xff]
        %v766 = vld [vmem:[%s3 + $0x2a8] sm:$0xff]
        %v767 = vld [vmem:[%s3 + $0x2b0] sm:$0xff]
        %v768 = vld [vmem:[%s3 + $0x2b8] sm:$0xff]
        %v769 = vld [vmem:[%s3 + $0x2c0] sm:$0xff]
        %v770 = vld [vmem:[%s3 + $0x2c8] sm:$0xff]
        %v771 = vld [vmem:[%s3 + $0x2d0] sm:$0xff]
        %v772 = vld [vmem:[%s3 + $0x2d8] sm:$0xff]
        %v773 = vld [vmem:[%s3 + $0x2e0] sm:$0xff]
        %v774 = vld [vmem:[%s3 + $0x2e8] sm:$0xff]
        %v775 = vld [vmem:[%s3 + $0x2f0] sm:$0xff]
        %v776 = vld [vmem:[%s3 + $0x2f8] sm:$0xff]
        %v777 = vld [vmem:[%s3 + $0x300] sm:$0xff]
        %v778 = vld [vmem:[%s3 + $0x308] sm:$0xff]
        %v779 = vld [vmem:[%s3 + $0x310] sm:$0xff]
        %v780 = vld [vmem:[%s3 + $0x318] sm:$0xff]
        %v781 = vld [vmem:[%s3 + $0x320] sm:$0xff]
        %v782 = vld [vmem:[%s3 + $0x328] sm:$0xff]
        %v783 = vld [vmem:[%s3 + $0x330] sm:$0xff]
        %v784 = vld [vmem:[%s3 + $0x338] sm:$0xff]
        %v785 = vld [vmem:[%s3 + $0x340] sm:$0xff]
        %v786 = vld [vmem:[%s3 + $0x348] sm:$0xff]
        %v787 = vld [vmem:[%s3 + $0x350] sm:$0xff]
        %v788 = vld [vmem:[%s3 + $0x358] sm:$0xff]
        %v789 = vld [vmem:[%s3 + $0x360] sm:$0xff]
        %v790 = vld [vmem:[%s3 + $0x368] sm:$0xff]
        %v791 = vld [vmem:[%s3 + $0x370] sm:$0xff]
        %v792 = vld [vmem:[%s3 + $0x378] sm:$0xff]
        %v793 = vld [vmem:[%s3 + $0x380] sm:$0xff]
        %v794 = vld [vmem:[%s3 + $0x388] sm:$0xff]
        %v795 = vld [vmem:[%s3 + $0x390] sm:$0xff]
        %v796 = vld [vmem:[%s3 + $0x398] sm:$0xff]
        %v797 = vld [vmem:[%s3 + $0x3a0] sm:$0xff]
        %v798 = vld [vmem:[%s3 + $0x3a8] sm:$0xff]
        %v799 = vld [vmem:[%s3 + $0x3b0] sm:$0xff]
        %v800 = vld [vmem:[%s3 + $0x3b8] sm:$0xff]
        %v801 = vld [vmem:[%s3 + $0x3c0] sm:$0xff]
        %v802 = vld [vmem:[%s3 + $0x3c8] sm:$0xff]
        %v803 = vld [vmem:[%s3 + $0x3d0] sm:$0xff]
        %v804 = vld [vmem:[%s3 + $0x3d8] sm:$0xff]
        %v805 = vld [vmem:[%s3 + $0x3e0] sm:$0xff]
        %v806 = vld [vmem:[%s3 + $0x3e8] sm:$0xff]
        %v807 = vld [vmem:[%s3 + $0x3f0] sm:$0xff]
        %v808 = vld [vmem:[%s3 + $0x3f8] sm:$0xff]
        %v809 = vld [vmem:[%s3 + $0x400] sm:$0xff]
        %v810 = vld [vmem:[%s3 + $0x408] sm:$0xff]
        %v811 = vld [vmem:[%s3 + $0x410] sm:$0xff]
        %v812 = vld [vmem:[%s3 + $0x418] sm:$0xff]
        %v813 = vld [vmem:[%s3 + $0x420] sm:$0xff]
        %v814 = vld [vmem:[%s3 + $0x428] sm:$0xff]
        %v815 = vld [vmem:[%s3 + $0x430] sm:$0xff]
        %v816 = vld [vmem:[%s3 + $0x438] sm:$0xff]
        %v817 = vld [vmem:[%s3 + $0x440] sm:$0xff]
        %v818 = vld [vmem:[%s3 + $0x448] sm:$0xff]
        %v819 = vld [vmem:[%s3 + $0x450] sm:$0xff]
        %v820 = vld [vmem:[%s3 + $0x458] sm:$0xff]
        %v821 = vld [vmem:[%s3 + $0x460] sm:$0xff]
        %v822 = vld [vmem:[%s3 + $0x468] sm:$0xff]
        %v823 = vld [vmem:[%s3 + $0x470] sm:$0xff]
        %v824 = vld [vmem:[%s3 + $0x478] sm:$0xff]
        %v825 = vld [vmem:[%s3 + $0x480] sm:$0xff]
        %v826 = vld [vmem:[%s3 + $0x488] sm:$0xff]
        %v827 = vld [vmem:[%s3 + $0x490] sm:$0xff]
        %v828 = vld [vmem:[%s3 + $0x498] sm:$0xff]
        %v829 = vld [vmem:[%s3 + $0x4a0] sm:$0xff]
        %v830 = vld [vmem:[%s3 + $0x4a8] sm:$0xff]
        %v831 = vld [vmem:[#allocation4] sm:$0xff]
        %833 = vset.pattern.permute.xlu0 0
        %834 = vperm.xlu0 %833, %v831
        %v835 = vpop.permute.xlu0 %834
        %vm837 = vcmask 130048
        %v838 = vsel %vm837, %v673, 0
        %840 = vmatprep.subr.mxu0 %v727
        %841 = vmatpush1.msra.mxu0 %v726
        %842 = vmatprep.subr.mxu0 %v724
        %843 = vmatpush1.msra.mxu0 %v723
        %844 = vmatprep.subr.mxu0 %v721
        %845 = vmatpush1.msra.mxu0 %v720
        %846 = vmatprep.subr.mxu0 %v718
        %847 = vmatpush1.msra.mxu0 %v717
        %848 = vmatprep.subr.mxu0 %v715
        %849 = vmatpush1.msra.mxu0 %v714
        %850 = vmatprep.subr.mxu0 %v712
        %851 = vmatpush1.msra.mxu0 %v711
        %852 = vmatprep.subr.mxu0 %v709
        %853 = vmatpush1.msra.mxu0 %v708
        %854 = vmatprep.subr.mxu0 %v706
        %855 = vmatpush1.msra.mxu0 %v705
        %856 = vmatprep.subr.mxu0 %v703
        %857 = vmatpush1.msra.mxu0 %v702
        %858 = vmatprep.subr.mxu0 %v700
        %859 = vmatpush1.msra.mxu0 %v699
        %860 = vmatprep.subr.mxu0 %v697
        %861 = vmatpush1.msra.mxu0 %v696
        %862 = vmatprep.subr.mxu0 %v694
        %863 = vmatpush1.msra.mxu0 %v693
        %864 = vmatprep.subr.mxu0 %v691
        %865 = vmatpush1.msra.mxu0 %v690
        %866 = vmatprep.subr.mxu0 %v688
        %867 = vmatpush1.msra.mxu0 %v687
        %868 = vmatprep.subr.mxu0 %v685
        %869 = vmatpush1.msra.mxu0 %v684
        %870 = vmatprep.subr.mxu0 %v682
        %871 = vmatpush1.msra.mxu0 %v681
        %872 = vmatprep.subr.mxu0 %v775
        %873 = vmatpush2.msra.mxu0 %v774
        %874 = vmatprep.subr.mxu0 %v772
        %875 = vmatpush2.msra.mxu0 %v771
        %876 = vmatprep.subr.mxu0 %v769
        %877 = vmatpush2.msra.mxu0 %v768
        %878 = vmatprep.subr.mxu0 %v766
        %879 = vmatpush2.msra.mxu0 %v765
        %880 = vmatprep.subr.mxu0 %v763
        %881 = vmatpush2.msra.mxu0 %v762
        %882 = vmatprep.subr.mxu0 %v760
        %883 = vmatpush2.msra.mxu0 %v759
        %884 = vmatprep.subr.mxu0 %v757
        %885 = vmatpush2.msra.mxu0 %v756
        %886 = vmatprep.subr.mxu0 %v754
        %887 = vmatpush2.msra.mxu0 %v753
        %888 = vmatprep.subr.mxu0 %v751
        %889 = vmatpush2.msra.mxu0 %v750
        %890 = vmatprep.subr.mxu0 %v748
        %891 = vmatpush2.msra.mxu0 %v747
        %892 = vmatprep.subr.mxu0 %v745
        %893 = vmatpush2.msra.mxu0 %v744
        %894 = vmatprep.subr.mxu0 %v742
        %895 = vmatpush2.msra.mxu0 %v741
        %896 = vmatprep.subr.mxu0 %v739
        %897 = vmatpush2.msra.mxu0 %v738
        %898 = vmatprep.subr.mxu0 %v736
        %899 = vmatpush2.msra.mxu0 %v735
        %900 = vmatprep.subr.mxu0 %v733
        %901 = vmatpush2.msra.mxu0 %v732
        %902 = vmatprep.subr.mxu0 %v730
        %903 = vmatpush2.msra.mxu0 %v729
        %904 = vmatprep.mubr.f32.mxu0 %v678
        %905 = vmatmul.mubr.f32.gmra.mxu0 %v676
        %v906 = vpop.f32.mrf.mxu0
        %v907 = vadd.f32 %v835, %v906
        %v908 = vpop.f32.mrf.mxu0
        %v909 = vadd.f32 %v835, %v908
        %910 = vdwg.mxu0
        %911 = vmatprep.subr.mxu0 %v823
        %912 = vmatpush1.msra.mxu0 %v822
        %913 = vmatprep.subr.mxu0 %v820
        %914 = vmatpush1.msra.mxu0 %v819
        %915 = vmatprep.subr.mxu0 %v817
        %916 = vmatpush1.msra.mxu0 %v816
        %917 = vmatprep.subr.mxu0 %v814
        %918 = vmatpush1.msra.mxu0 %v813
        %919 = vmatprep.subr.mxu0 %v811
        %920 = vmatpush1.msra.mxu0 %v810
        %921 = vmatprep.subr.mxu0 %v808
        %922 = vmatpush1.msra.mxu0 %v807
        %923 = vmatprep.subr.mxu0 %v805
        %924 = vmatpush1.msra.mxu0 %v804
        %925 = vmatprep.subr.mxu0 %v802
        %926 = vmatpush1.msra.mxu0 %v801
        %927 = vmatprep.subr.mxu0 %v799
        %928 = vmatpush1.msra.mxu0 %v798
        %929 = vmatprep.subr.mxu0 %v796
        %930 = vmatpush1.msra.mxu0 %v795
        %931 = vmatprep.subr.mxu0 %v793
        %932 = vmatpush1.msra.mxu0 %v792
        %933 = vmatprep.subr.mxu0 %v790
        %934 = vmatpush1.msra.mxu0 %v789
        %935 = vmatprep.subr.mxu0 %v787
        %936 = vmatpush1.msra.mxu0 %v786
        %937 = vmatprep.subr.mxu0 %v784
        %938 = vmatpush1.msra.mxu0 %v783
        %939 = vmatprep.subr.mxu0 %v781
        %940 = vmatpush1.msra.mxu0 %v780
        %941 = vmatprep.subr.mxu0 %v778
        %942 = vmatpush1.msra.mxu0 %v777
        %943 = vmatprep.subr.mxu0 0.0
        %944 = vmatpush2.msra.mxu0 0.0
        %945 = vmatprep.subr.mxu0 0.0
        %946 = vmatpush2.msra.mxu0 0.0
        %947 = vmatprep.subr.mxu0 0.0
        %948 = vmatpush2.msra.mxu0 0.0
        %949 = vmatprep.subr.mxu0 0.0
        %950 = vmatpush2.msra.mxu0 0.0
        %951 = vmatprep.subr.mxu0 0.0
        %952 = vmatpush2.msra.mxu0 0.0
        %953 = vmatprep.subr.mxu0 0.0
        %954 = vmatpush2.msra.mxu0 0.0
        %955 = vmatprep.subr.mxu0 0.0
        %956 = vmatpush2.msra.mxu0 0.0
        %957 = vmatprep.subr.mxu0 0.0
        %958 = vmatpush2.msra.mxu0 0.0
        %959 = vmatprep.subr.mxu0 0.0
        %960 = vmatpush2.msra.mxu0 0.0
        %961 = vmatprep.subr.mxu0 0.0
        %962 = vmatpush2.msra.mxu0 0.0
        %963 = vmatprep.subr.mxu0 0.0
        %964 = vmatpush2.msra.mxu0 0.0
        %965 = vmatprep.subr.mxu0 0.0
        %966 = vmatpush2.msra.mxu0 0.0
        %967 = vmatprep.subr.mxu0 0.0
        %968 = vmatpush2.msra.mxu0 0.0
        %969 = vmatprep.subr.mxu0 0.0
        %970 = vmatpush2.msra.mxu0 0.0
        %971 = vmatprep.subr.mxu0 %v829
        %972 = vmatpush2.msra.mxu0 %v828
        %973 = vmatprep.subr.mxu0 %v826
        %974 = vmatpush2.msra.mxu0 %v825
        %975 = vmatprep.mubr.f32.mxu0 %v838
        %976 = vmatmul.mubr.f32.gmra.mxu0 %v680
        %v977 = vpop.f32.mrf.mxu0
        %v978 = vadd.f32 %v907, %v977
        %v979 = vpop.f32.mrf.mxu0
        %v980 = vadd.f32 %v909, %v979
        %981 = vdwg.mxu0
        %982 = vmatprep.subr.mxu0 0.0
        %983 = vmatpush1.msra.mxu0 %v728
        %984 = vmatprep.subr.mxu0 0.0
        %985 = vmatpush1.msra.mxu0 %v725
        %986 = vmatprep.subr.mxu0 0.0
        %987 = vmatpush1.msra.mxu0 %v722
        %988 = vmatprep.subr.mxu0 0.0
        %989 = vmatpush1.msra.mxu0 %v719
        %990 = vmatprep.subr.mxu0 0.0
        %991 = vmatpush1.msra.mxu0 %v716
        %992 = vmatprep.subr.mxu0 0.0
        %993 = vmatpush1.msra.mxu0 %v713
        %994 = vmatprep.subr.mxu0 0.0
        %995 = vmatpush1.msra.mxu0 %v710
        %996 = vmatprep.subr.mxu0 0.0
        %997 = vmatpush1.msra.mxu0 %v707
        %998 = vmatprep.subr.mxu0 0.0
        %999 = vmatpush1.msra.mxu0 %v704
        %1000 = vmatprep.subr.mxu0 0.0
        %1001 = vmatpush1.msra.mxu0 %v701
        %1002 = vmatprep.subr.mxu0 0.0
        %1003 = vmatpush1.msra.mxu0 %v698
        %1004 = vmatprep.subr.mxu0 0.0
        %1005 = vmatpush1.msra.mxu0 %v695
        %1006 = vmatprep.subr.mxu0 0.0
        %1007 = vmatpush1.msra.mxu0 %v692
        %1008 = vmatprep.subr.mxu0 0.0
        %1009 = vmatpush1.msra.mxu0 %v689
        %1010 = vmatprep.subr.mxu0 0.0
        %1011 = vmatpush1.msra.mxu0 %v686
        %1012 = vmatprep.subr.mxu0 0.0
        %1013 = vmatpush1.msra.mxu0 %v683
        %1014 = vmatprep.subr.mxu0 0.0
        %1015 = vmatpush2.msra.mxu0 %v776
        %1016 = vmatprep.subr.mxu0 0.0
        %1017 = vmatpush2.msra.mxu0 %v773
        %1018 = vmatprep.subr.mxu0 0.0
        %1019 = vmatpush2.msra.mxu0 %v770
        %1020 = vmatprep.subr.mxu0 0.0
        %1021 = vmatpush2.msra.mxu0 %v767
        %1022 = vmatprep.subr.mxu0 0.0
        %1023 = vmatpush2.msra.mxu0 %v764
        %1024 = vmatprep.subr.mxu0 0.0
        %1025 = vmatpush2.msra.mxu0 %v761
        %1026 = vmatprep.subr.mxu0 0.0
        %1027 = vmatpush2.msra.mxu0 %v758
        %1028 = vmatprep.subr.mxu0 0.0
        %1029 = vmatpush2.msra.mxu0 %v755
        %1030 = vmatprep.subr.mxu0 0.0
        %1031 = vmatpush2.msra.mxu0 %v752
        %1032 = vmatprep.subr.mxu0 0.0
        %1033 = vmatpush2.msra.mxu0 %v749
        %1034 = vmatprep.subr.mxu0 0.0
        %1035 = vmatpush2.msra.mxu0 %v746
        %1036 = vmatprep.subr.mxu0 0.0
        %1037 = vmatpush2.msra.mxu0 %v743
        %1038 = vmatprep.subr.mxu0 0.0
        %1039 = vmatpush2.msra.mxu0 %v740
        %1040 = vmatprep.subr.mxu0 0.0
        %1041 = vmatpush2.msra.mxu0 %v737
        %1042 = vmatprep.subr.mxu0 0.0
        %1043 = vmatpush2.msra.mxu0 %v734
        %1044 = vmatprep.subr.mxu0 0.0
        %1045 = vmatpush2.msra.mxu0 %v731
        %1046 = vmatprep.mubr.f32.mxu0 %v678
        %1047 = vmatmul.mubr.f32.gmra.mxu0 %v676
        %v1048 = vpop.f32.mrf.mxu0
        %v1049 = vadd.f32 %v835, %v1048
        %v1050 = vpop.f32.mrf.mxu0
        %1051 = vdwg.mxu0
        %1052 = vmatprep.subr.mxu0 0.0
        %1053 = vmatpush1.msra.mxu0 %v824
        %1054 = vmatprep.subr.mxu0 0.0
        %1055 = vmatpush1.msra.mxu0 %v821
        %1056 = vmatprep.subr.mxu0 0.0
        %1057 = vmatpush1.msra.mxu0 %v818
        %1058 = vmatprep.subr.mxu0 0.0
        %1059 = vmatpush1.msra.mxu0 %v815
        %1060 = vmatprep.subr.mxu0 0.0
        %1061 = vmatpush1.msra.mxu0 %v812
        %1062 = vmatprep.subr.mxu0 0.0
        %1063 = vmatpush1.msra.mxu0 %v809
        %1064 = vmatprep.subr.mxu0 0.0
        %1065 = vmatpush1.msra.mxu0 %v806
        %1066 = vmatprep.subr.mxu0 0.0
        %1067 = vmatpush1.msra.mxu0 %v803
        %1068 = vmatprep.subr.mxu0 0.0
        %1069 = vmatpush1.msra.mxu0 %v800
        %1070 = vmatprep.subr.mxu0 0.0
        %1071 = vmatpush1.msra.mxu0 %v797
        %1072 = vmatprep.subr.mxu0 0.0
        %1073 = vmatpush1.msra.mxu0 %v794
        %1074 = vmatprep.subr.mxu0 0.0
        %1075 = vmatpush1.msra.mxu0 %v791
        %1076 = vmatprep.subr.mxu0 0.0
        %1077 = vmatpush1.msra.mxu0 %v788
        %1078 = vmatprep.subr.mxu0 0.0
        %1079 = vmatpush1.msra.mxu0 %v785
        %1080 = vmatprep.subr.mxu0 0.0
        %1081 = vmatpush1.msra.mxu0 %v782
        %1082 = vmatprep.subr.mxu0 0.0
        %1083 = vmatpush1.msra.mxu0 %v779
        %1084 = vmatprep.subr.mxu0 0.0
        %1085 = vmatpush2.msra.mxu0 0.0
        %1086 = vmatprep.subr.mxu0 0.0
        %1087 = vmatpush2.msra.mxu0 0.0
        %1088 = vmatprep.subr.mxu0 0.0
        %1089 = vmatpush2.msra.mxu0 0.0
        %1090 = vmatprep.subr.mxu0 0.0
        %1091 = vmatpush2.msra.mxu0 0.0
        %1092 = vmatprep.subr.mxu0 0.0
        %1093 = vmatpush2.msra.mxu0 0.0
        %1094 = vmatprep.subr.mxu0 0.0
        %1095 = vmatpush2.msra.mxu0 0.0
        %1096 = vmatprep.subr.mxu0 0.0
        %1097 = vmatpush2.msra.mxu0 0.0
        %1098 = vmatprep.subr.mxu0 0.0
        %1099 = vmatpush2.msra.mxu0 0.0
        %1100 = vmatprep.subr.mxu0 0.0
        %1101 = vmatpush2.msra.mxu0 0.0
        %1102 = vmatprep.subr.mxu0 0.0
        %1103 = vmatpush2.msra.mxu0 0.0
        %1104 = vmatprep.subr.mxu0 0.0
        %1105 = vmatpush2.msra.mxu0 0.0
        %1106 = vmatprep.subr.mxu0 0.0
        %1107 = vmatpush2.msra.mxu0 0.0
        %1108 = vmatprep.subr.mxu0 0.0
        %1109 = vmatpush2.msra.mxu0 0.0
        %1110 = vmatprep.subr.mxu0 0.0
        %1111 = vmatpush2.msra.mxu0 0.0
        %1112 = vmatprep.subr.mxu0 0.0
        %1113 = vmatpush2.msra.mxu0 %v830
        %1114 = vmatprep.subr.mxu0 0.0
        %1115 = vmatpush2.msra.mxu0 %v827
        %1116 = vmatprep.mubr.f32.mxu0 %v838
        %1117 = vmatmul.mubr.f32.gmra.mxu0 %v680
        %v1118 = vpop.f32.mrf.mxu0
        %v1119 = vadd.f32 %v1049, %v1118
        %v1120 = vpop.f32.mrf.mxu0
        %1121 = vdwg.mxu0
        %v1122 = vld [vmem:[%s4] sm:$0x7]
        %v1124 = vlaneseq
        %v1125 = vshrl.u32 %v1124, 7
        %v1126 = vsub.s32 0, %v1125
        %v1127 = vrot.slane %v1122, %v1126
        %v1128 = vlaneseq
        %v1129 = vshrl.u32 %v1128, 7
        %v1130 = vsub.s32 1, %v1129
        %v1131 = vrot.slane %v1122, %v1130
        %v1132 = vlaneseq
        %v1133 = vshrl.u32 %v1132, 7
        %v1134 = vsub.s32 2, %v1133
        %v1135 = vrot.slane %v1122, %v1134
        %v1139 = vmul.f32 %v978, %v1127
        %v1140 = vmul.f32 %v980, %v1131
        %v1141 = vmul.f32 %v1119, %v1135
        %1142 = vst [vmem:[%s252] sm:$0xff] %v1139
        %1143 = vst [vmem:[%s252 + $0x8] sm:$0xff] %v1140
        %vm1144 = vcmask 556032
        %1145 = vst.msk [vmem:[%s252 + $0x10] sm:$0xff] %vm1144, %v1141
        %p1146 = scmp.lt.s32.totalorder %s18, 1
        %s1147 = scalar_select %p1146, %s18, 1
        %s1148 = smul.addr %s1147, 3
        %s1149 = smul.addr %s1148, 8
        %s1150 = scalar_lea.vmem %s5, %s1149
        // Predicated region
        $region49: #{_lambda_.6} parent=39 // pred_check
          %p1151 = pneg %p146
        $region50: #{_lambda_.6} parent=39 // pred_check_branch
          %1153 = sbr.rel (%p1151) target = $region52
        $region51: #{_lambda_.6} parent=39 // pred_region
          _
        $region52: #{_lambda_.6} parent=39 // pred_fallthru
          _
      $region40: #{_lambda_.6} parent=5 // pred_fallthru
        _
      %p1154 = scmp.le.s32.totalorder 2, %s13
      // Predicated region
      $region53: #{_lambda_.6} parent=5 // pred_check
        %p1155 = pneg %p1154
      $region54: #{_lambda_.6} parent=5 // pred_check_branch
        %1157 = sbr.rel (%p1155) target = $region56
      $region55: #{_lambda_.6} parent=5 // pred_region
        %s1158 = ssub.s32 %s13, 2
        // Predicated region
        $region57: #{_lambda_.6} parent=55 // pred_check
          %p1159 = pneg %p152
        $region58: #{_lambda_.6} parent=55 // pred_check_branch
          %1161 = sbr.rel (%p1159) target = $region60
        $region59: #{_lambda_.6} parent=55 // pred_region
          %p1162 = scmp.lt.s32.totalorder %s19, 1
          %s1163 = scalar_select %p1162, %s19, 1
          %s1164 = smul.addr %s1163, 3
          %s1165 = smul.addr %s1164, 8
          %s1166 = scalar_lea.vmem %s5, %s1165
        $region60: #{_lambda_.6} parent=55 // pred_fallthru
          _
      $region56: #{_lambda_.6} parent=5 // pred_fallthru
        _
    $region6: #{_lambda_.6} parent=1 // loop_footer
      %s17 = sadd.s32 1, %s13
    $region7: #{_lambda_.6} parent=1 // loop_footer_branch
      %12 = sbr.rel target = $region3
    $region8: #{_lambda_.6} parent=1 // loop_exit
      _
    %1167 = vsyncpa [#allocation3], 1
    %s1168 = scalar_lea.sflag [#allocation3], 1
    %1169 = vsyncpa %s1168, 1
    %1170 = vsyncpa [#allocation5], 1

// kernel: _lambda_.7
$region0: #{_lambda_.7}
  #allocation0 [shape = 'u32[]', space=smem, size = 0x4, offset = 0x4, fixed_abs, tag = 'smem constant byte address 0x4 - core index']
  #allocation1 [shape = 'u32[144,128]{1,0:T(1,128)}', space=vmem, size = 0x12000, scoped, tag = 'internal scratch']
  %s0 = inlined_call_operand.vmem [shape: f32[2,8,324], index: 0, kind: input, shape index: {}]
  %s1 = inlined_call_operand.vmem [shape: f32[2,8,324], index: 1, kind: input, shape index: {}]
  %s2 = inlined_call_operand.vmem [shape: f32[8,72], index: 2, kind: input, shape index: {}]
  %s3 = inlined_call_operand.vmem [shape: f32[8,72], index: 3, kind: input, shape index: {}]
  %s4 = inlined_call_operand.vmem [shape: f32[8,1], index: 4, kind: input, shape index: {}]
  %s5 = inlined_call_operand.vmem [shape: f32[8,1], index: 5, kind: input, shape index: {}]
  %s6 = inlined_call_operand.vmem [shape: f32[8,72], index: 6, kind: input, shape index: {}]
  %s7 = inlined_call_operand.vmem [shape: f32[8,1], index: 7, kind: input, shape index: {}]
  %s8 = inlined_call_operand.vmem [shape: f32[8,1], index: 8, kind: input, shape index: {}]
  %s9 = inlined_call_operand.vmem [shape: f32[1,324], index: 9, kind: input, shape index: {}]
  %s10 = inlined_call_operand.vmem [shape: f32[2,8,324], index: 10, kind: output, shape index: {}]
  %s11 = sld [smem:[#allocation0]]
  $region73: #{_lambda_.7} parent=0
    _
  %s13 = ssub.s32 1, %s11
  %s14 = scalar_select 0, %s13, %s11
  loop: start=0, step=1, limit=4
  $region2: #{_lambda_.7} parent=0 // loop_pre_header
    _
  $region3: #{_lambda_.7} parent=0 // loop_header
    %s16 = sphi 0, %s20
    %p17 = scmp.ge.s32.totalorder %s16, 4
    %s26 = sphi 0, %s28
    %s29 = sphi 0, %s26
    %s30 = sphi 0, %s29
    %s46 = sphi 0, %s30
    %s52 = sphi 0, %s54
    %s55 = sphi 0, %s52
    %s56 = sphi 0, %s55
    %s72 = sphi 0, %s56
    %s76 = sphi 0, %s76
    %s78 = sphi 0, %s76
    %s79 = sphi 0, %s78
    %s93 = sphi 0, %s79
    %s97 = sphi 0, %s97
    %s99 = sphi 0, %s97
    %s100 = sphi 0, %s99
    %s114 = sphi 0, %s100
    %s118 = sphi 0, %s118
    %s120 = sphi 0, %s118
    %s121 = sphi 0, %s120
    %s135 = sphi 0, %s121
    %s139 = sphi 0, %s139
    %s141 = sphi 0, %s139
    %s142 = sphi 0, %s141
    %s156 = sphi 0, %s142
    %s160 = sphi 0, %s160
    %s162 = sphi 0, %s160
    %s163 = sphi 0, %s162
    %s177 = sphi 0, %s163
    %s181 = sphi 0, %s181
    %s183 = sphi 0, %s181
    %s184 = sphi 0, %s183
    %s198 = sphi 0, %s184
    %s202 = sphi 0, %s202
    %s204 = sphi 0, %s202
    %s205 = sphi 0, %s204
    %s219 = sphi 0, %s205
    %s223 = sphi 0, %s223
    %s225 = sphi 0, %s223
    %s226 = sphi 0, %s225
    %s240 = sphi 0, %s226
    %s246 = sphi 0, %s248
    %s249 = sphi 0, %s246
    %s250 = sphi 0, %s249
    %s266 = sphi 0, %s250
  $region4: #{_lambda_.7} parent=0 // loop_header_branch
    %19 = sbr.rel (%p17) target = $region8
  $region5: #{_lambda_.7} parent=0 // loop_body
    %s21 = ssub.s32 %s16, 1
    %s22 = ssub.s32 %s16, 2
    %s23 = sadd.s32 %s16, 1
    %s24 = ssub.s32 %s16, %s23
    %p25 = scmp.eq.s32.totalorder %s24, 0
    %s27 = sadd.s32 %s26, 1
    %s28 = scalar_select %p25, %s26, %s27
    %p31 = pneg %p25
    %p32 = scmp.eq.s32.totalorder %s16, 1
    %p33 = por %p31, %p32
    %p34 = scmp.ne.s32.totalorder %s26, %s29
    %p35 = scmp.eq.s32.totalorder %s16, 0
    %p36 = por %p34, %p35
    %p37 = scmp.ne.s32.totalorder %s26, %s29
    %p38 = scmp.eq.s32.totalorder %s21, 1
    %p39 = por %p37, %p38
    %p40 = scmp.ne.s32.totalorder %s29, %s30
    %p41 = scmp.eq.s32.totalorder %s21, 0
    %p42 = por %p40, %p41
    %p43 = scmp.ne.s32.totalorder %s29, %s30
    %p44 = scmp.eq.s32.totalorder %s22, 1
    %p45 = por %p43, %p44
    %p47 = scmp.ne.s32.totalorder %s30, %s46
    %p48 = scmp.eq.s32.totalorder %s22, 0
    %p49 = por %p47, %p48
    %s50 = ssub.s32 %s16, %s23
    %p51 = scmp.eq.s32.totalorder %s50, 0
    %s53 = sadd.s32 %s52, 1
    %s54 = scalar_select %p51, %s52, %s53
    %p57 = pneg %p51
    %p58 = scmp.eq.s32.totalorder %s16, 1
    %p59 = por %p57, %p58
    %p60 = scmp.ne.s32.totalorder %s52, %s55
    %p61 = scmp.eq.s32.totalorder %s16, 0
    %p62 = por %p60, %p61
    %p63 = scmp.ne.s32.totalorder %s52, %s55
    %p64 = scmp.eq.s32.totalorder %s21, 1
    %p65 = por %p63, %p64
    %p66 = scmp.ne.s32.totalorder %s55, %s56
    %p67 = scmp.eq.s32.totalorder %s21, 0
    %p68 = por %p66, %p67
    %p69 = scmp.ne.s32.totalorder %s55, %s56
    %p70 = scmp.eq.s32.totalorder %s22, 1
    %p71 = por %p69, %p70
    %p73 = scmp.ne.s32.totalorder %s56, %s72
    %p74 = scmp.eq.s32.totalorder %s22, 0
    %p75 = por %p73, %p74
    %s77 = sadd.s32 %s76, 1
    %p80 = scmp.eq.s32.totalorder %s16, 1
    %p81 = scmp.ne.s32.totalorder %s76, %s78
    %p82 = scmp.eq.s32.totalorder %s16, 0
    %p83 = por %p81, %p82
    %p84 = scmp.ne.s32.totalorder %s76, %s78
    %p85 = scmp.eq.s32.totalorder %s21, 1
    %p86 = por %p84, %p85
    %p87 = scmp.ne.s32.totalorder %s78, %s79
    %p88 = scmp.eq.s32.totalorder %s21, 0
    %p89 = por %p87, %p88
    %p90 = scmp.ne.s32.totalorder %s78, %s79
    %p91 = scmp.eq.s32.totalorder %s22, 1
    %p92 = por %p90, %p91
    %p94 = scmp.ne.s32.totalorder %s79, %s93
    %p95 = scmp.eq.s32.totalorder %s22, 0
    %p96 = por %p94, %p95
    %s98 = sadd.s32 %s97, 1
    %p101 = scmp.eq.s32.totalorder %s16, 1
    %p102 = scmp.ne.s32.totalorder %s97, %s99
    %p103 = scmp.eq.s32.totalorder %s16, 0
    %p104 = por %p102, %p103
    %p105 = scmp.ne.s32.totalorder %s97, %s99
    %p106 = scmp.eq.s32.totalorder %s21, 1
    %p107 = por %p105, %p106
    %p108 = scmp.ne.s32.totalorder %s99, %s100
    %p109 = scmp.eq.s32.totalorder %s21, 0
    %p110 = por %p108, %p109
    %p111 = scmp.ne.s32.totalorder %s99, %s100
    %p112 = scmp.eq.s32.totalorder %s22, 1
    %p113 = por %p111, %p112
    %p115 = scmp.ne.s32.totalorder %s100, %s114
    %p116 = scmp.eq.s32.totalorder %s22, 0
    %p117 = por %p115, %p116
    %s119 = sadd.s32 %s118, 1
    %p122 = scmp.eq.s32.totalorder %s16, 1
    %p123 = scmp.ne.s32.totalorder %s118, %s120
    %p124 = scmp.eq.s32.totalorder %s16, 0
    %p125 = por %p123, %p124
    %p126 = scmp.ne.s32.totalorder %s118, %s120
    %p127 = scmp.eq.s32.totalorder %s21, 1
    %p128 = por %p126, %p127
    %p129 = scmp.ne.s32.totalorder %s120, %s121
    %p130 = scmp.eq.s32.totalorder %s21, 0
    %p131 = por %p129, %p130
    %p132 = scmp.ne.s32.totalorder %s120, %s121
    %p133 = scmp.eq.s32.totalorder %s22, 1
    %p134 = por %p132, %p133
    %p136 = scmp.ne.s32.totalorder %s121, %s135
    %p137 = scmp.eq.s32.totalorder %s22, 0
    %p138 = por %p136, %p137
    %s140 = sadd.s32 %s139, 1
    %p143 = scmp.eq.s32.totalorder %s16, 1
    %p144 = scmp.ne.s32.totalorder %s139, %s141
    %p145 = scmp.eq.s32.totalorder %s16, 0
    %p146 = por %p144, %p145
    %p147 = scmp.ne.s32.totalorder %s139, %s141
    %p148 = scmp.eq.s32.totalorder %s21, 1
    %p149 = por %p147, %p148
    %p150 = scmp.ne.s32.totalorder %s141, %s142
    %p151 = scmp.eq.s32.totalorder %s21, 0
    %p152 = por %p150, %p151
    %p153 = scmp.ne.s32.totalorder %s141, %s142
    %p154 = scmp.eq.s32.totalorder %s22, 1
    %p155 = por %p153, %p154
    %p157 = scmp.ne.s32.totalorder %s142, %s156
    %p158 = scmp.eq.s32.totalorder %s22, 0
    %p159 = por %p157, %p158
    %s161 = sadd.s32 %s160, 1
    %p164 = scmp.eq.s32.totalorder %s16, 1
    %p165 = scmp.ne.s32.totalorder %s160, %s162
    %p166 = scmp.eq.s32.totalorder %s16, 0
    %p167 = por %p165, %p166
    %p168 = scmp.ne.s32.totalorder %s160, %s162
    %p169 = scmp.eq.s32.totalorder %s21, 1
    %p170 = por %p168, %p169
    %p171 = scmp.ne.s32.totalorder %s162, %s163
    %p172 = scmp.eq.s32.totalorder %s21, 0
    %p173 = por %p171, %p172
    %p174 = scmp.ne.s32.totalorder %s162, %s163
    %p175 = scmp.eq.s32.totalorder %s22, 1
    %p176 = por %p174, %p175
    %p178 = scmp.ne.s32.totalorder %s163, %s177
    %p179 = scmp.eq.s32.totalorder %s22, 0
    %p180 = por %p178, %p179
    %s182 = sadd.s32 %s181, 1
    %p185 = scmp.eq.s32.totalorder %s16, 1
    %p186 = scmp.ne.s32.totalorder %s181, %s183
    %p187 = scmp.eq.s32.totalorder %s16, 0
    %p188 = por %p186, %p187
    %p189 = scmp.ne.s32.totalorder %s181, %s183
    %p190 = scmp.eq.s32.totalorder %s21, 1
    %p191 = por %p189, %p190
    %p192 = scmp.ne.s32.totalorder %s183, %s184
    %p193 = scmp.eq.s32.totalorder %s21, 0
    %p194 = por %p192, %p193
    %p195 = scmp.ne.s32.totalorder %s183, %s184
    %p196 = scmp.eq.s32.totalorder %s22, 1
    %p197 = por %p195, %p196
    %p199 = scmp.ne.s32.totalorder %s184, %s198
    %p200 = scmp.eq.s32.totalorder %s22, 0
    %p201 = por %p199, %p200
    %s203 = sadd.s32 %s202, 1
    %p206 = scmp.eq.s32.totalorder %s16, 1
    %p207 = scmp.ne.s32.totalorder %s202, %s204
    %p208 = scmp.eq.s32.totalorder %s16, 0
    %p209 = por %p207, %p208
    %p210 = scmp.ne.s32.totalorder %s202, %s204
    %p211 = scmp.eq.s32.totalorder %s21, 1
    %p212 = por %p210, %p211
    %p213 = scmp.ne.s32.totalorder %s204, %s205
    %p214 = scmp.eq.s32.totalorder %s21, 0
    %p215 = por %p213, %p214
    %p216 = scmp.ne.s32.totalorder %s204, %s205
    %p217 = scmp.eq.s32.totalorder %s22, 1
    %p218 = por %p216, %p217
    %p220 = scmp.ne.s32.totalorder %s205, %s219
    %p221 = scmp.eq.s32.totalorder %s22, 0
    %p222 = por %p220, %p221
    %s224 = sadd.s32 %s223, 1
    %p227 = scmp.eq.s32.totalorder %s16, 1
    %p228 = scmp.ne.s32.totalorder %s223, %s225
    %p229 = scmp.eq.s32.totalorder %s16, 0
    %p230 = por %p228, %p229
    %p231 = scmp.ne.s32.totalorder %s223, %s225
    %p232 = scmp.eq.s32.totalorder %s21, 1
    %p233 = por %p231, %p232
    %p234 = scmp.ne.s32.totalorder %s225, %s226
    %p235 = scmp.eq.s32.totalorder %s21, 0
    %p236 = por %p234, %p235
    %p237 = scmp.ne.s32.totalorder %s225, %s226
    %p238 = scmp.eq.s32.totalorder %s22, 1
    %p239 = por %p237, %p238
    %p241 = scmp.ne.s32.totalorder %s226, %s240
    %p242 = scmp.eq.s32.totalorder %s22, 0
    %p243 = por %p241, %p242
    %s244 = ssub.s32 %s16, %s23
    %p245 = scmp.eq.s32.totalorder %s244, 0
    %s247 = sadd.s32 %s246, 1
    %s248 = scalar_select %p245, %s246, %s247
    %p251 = pneg %p245
    %p252 = scmp.eq.s32.totalorder %s16, 1
    %p253 = por %p251, %p252
    %p254 = scmp.ne.s32.totalorder %s246, %s249
    %p255 = scmp.eq.s32.totalorder %s16, 0
    %p256 = por %p254, %p255
    %p257 = scmp.ne.s32.totalorder %s246, %s249
    %p258 = scmp.eq.s32.totalorder %s21, 1
    %p259 = por %p257, %p258
    %p260 = scmp.ne.s32.totalorder %s249, %s250
    %p261 = scmp.eq.s32.totalorder %s21, 0
    %p262 = por %p260, %p261
    %p263 = scmp.ne.s32.totalorder %s249, %s250
    %p264 = scmp.eq.s32.totalorder %s22, 1
    %p265 = por %p263, %p264
    %p267 = scmp.ne.s32.totalorder %s250, %s266
    %p268 = scmp.eq.s32.totalorder %s22, 0
    %p269 = por %p267, %p268
    %p270 = scmp.le.s32.totalorder 1, %s16
    %p271 = scmp.lt.s32.totalorder %s16, 3
    %p272 = pnand %p270, %p271
    %p273 = pneg %p272
    // Predicated region
    $region9: #{_lambda_.7} parent=5 // pred_check
      _
    $region10: #{_lambda_.7} parent=5 // pred_check_branch
      %275 = sbr.rel (%p272) target = $region12
    $region11: #{_lambda_.7} parent=5 // pred_region
      %s276 = ssub.s32 %s16, 1
      // Predicated region
      $region13: #{_lambda_.7} parent=11 // pred_check
        %p277 = pneg %p89
      $region14: #{_lambda_.7} parent=11 // pred_check_branch
        %279 = sbr.rel (%p277) target = $region16
      $region15: #{_lambda_.7} parent=11 // pred_region
        _
      $region16: #{_lambda_.7} parent=11 // pred_fallthru
        _
      // Predicated region
      $region17: #{_lambda_.7} parent=11 // pred_check
        %p280 = pneg %p110
      $region18: #{_lambda_.7} parent=11 // pred_check_branch
        %282 = sbr.rel (%p280) target = $region20
      $region19: #{_lambda_.7} parent=11 // pred_region
        _
      $region20: #{_lambda_.7} parent=11 // pred_fallthru
        _
      // Predicated region
      $region21: #{_lambda_.7} parent=11 // pred_check
        %p283 = pneg %p131
      $region22: #{_lambda_.7} parent=11 // pred_check_branch
        %285 = sbr.rel (%p283) target = $region24
      $region23: #{_lambda_.7} parent=11 // pred_region
        _
      $region24: #{_lambda_.7} parent=11 // pred_fallthru
        _
      // Predicated region
      $region25: #{_lambda_.7} parent=11 // pred_check
        %p286 = pneg %p152
      $region26: #{_lambda_.7} parent=11 // pred_check_branch
        %288 = sbr.rel (%p286) target = $region28
      $region27: #{_lambda_.7} parent=11 // pred_region
        _
      $region28: #{_lambda_.7} parent=11 // pred_fallthru
        _
      // Predicated region
      $region29: #{_lambda_.7} parent=11 // pred_check
        %p289 = pneg %p173
      $region30: #{_lambda_.7} parent=11 // pred_check_branch
        %291 = sbr.rel (%p289) target = $region32
      $region31: #{_lambda_.7} parent=11 // pred_region
        _
      $region32: #{_lambda_.7} parent=11 // pred_fallthru
        _
      // Predicated region
      $region33: #{_lambda_.7} parent=11 // pred_check
        %p292 = pneg %p194
      $region34: #{_lambda_.7} parent=11 // pred_check_branch
        %294 = sbr.rel (%p292) target = $region36
      $region35: #{_lambda_.7} parent=11 // pred_region
        _
      $region36: #{_lambda_.7} parent=11 // pred_fallthru
        _
      // Predicated region
      $region37: #{_lambda_.7} parent=11 // pred_check
        %p295 = pneg %p215
      $region38: #{_lambda_.7} parent=11 // pred_check_branch
        %297 = sbr.rel (%p295) target = $region40
      $region39: #{_lambda_.7} parent=11 // pred_region
        _
      $region40: #{_lambda_.7} parent=11 // pred_fallthru
        _
      // Predicated region
      $region41: #{_lambda_.7} parent=11 // pred_check
        %p298 = pneg %p236
      $region42: #{_lambda_.7} parent=11 // pred_check_branch
        %300 = sbr.rel (%p298) target = $region44
      $region43: #{_lambda_.7} parent=11 // pred_region
        _
      $region44: #{_lambda_.7} parent=11 // pred_fallthru
        _
    $region12: #{_lambda_.7} parent=5 // pred_fallthru
      _
    %p301 = scmp.lt.s32.totalorder %s16, 2
    // Predicated region
    $region45: #{_lambda_.7} parent=5 // pred_check
      %p302 = pneg %p301
    $region46: #{_lambda_.7} parent=5 // pred_check_branch
      %304 = sbr.rel (%p302) target = $region48
    $region47: #{_lambda_.7} parent=5 // pred_region
      // Predicated region
      $region49: #{_lambda_.7} parent=47 // pred_check
        %p305 = pneg %p36
      $region50: #{_lambda_.7} parent=47 // pred_check_branch
        %307 = sbr.rel (%p305) target = $region52
      $region51: #{_lambda_.7} parent=47 // pred_region
        %p308 = scmp.lt.s32.totalorder %s16, 1
        %s309 = scalar_select %p308, %s16, 1
        %s310 = smul.addr %s309, 3
        %s311 = smul.addr %s310, 8
        %s312 = scalar_lea.vmem %s0, %s311
      $region52: #{_lambda_.7} parent=47 // pred_fallthru
        _
      // Predicated region
      $region53: #{_lambda_.7} parent=47 // pred_check
        %p313 = pneg %p62
      $region54: #{_lambda_.7} parent=47 // pred_check_branch
        %315 = sbr.rel (%p313) target = $region56
      $region55: #{_lambda_.7} parent=47 // pred_region
        %p316 = scmp.lt.s32.totalorder %s16, 1
        %s317 = scalar_select %p316, %s16, 1
        %s318 = smul.addr %s317, 3
        %s319 = smul.addr %s318, 8
        %s320 = scalar_lea.vmem %s1, %s319
      $region56: #{_lambda_.7} parent=47 // pred_fallthru
        _
    $region48: #{_lambda_.7} parent=5 // pred_fallthru
      _
    %p321 = scmp.le.s32.totalorder 1, %s16
    %p322 = scmp.lt.s32.totalorder %s16, 3
    %p323 = pnand %p321, %p322
    %p324 = pneg %p323
    // Predicated region
    $region57: #{_lambda_.7} parent=5 // pred_check
      _
    $region58: #{_lambda_.7} parent=5 // pred_check_branch
      %326 = sbr.rel (%p323) target = $region60
    $region59: #{_lambda_.7} parent=5 // pred_region
      %s327 = ssub.s32 %s16, 1
      %p328 = scmp.lt.s32.totalorder %s21, 1
      %s329 = scalar_select %p328, %s21, 1
      %s330 = smul.addr %s329, 3
      %s331 = smul.addr %s330, 8
      %s332 = scalar_lea.vmem %s0, %s331
      %p333 = pneg %p42
      %p334 = pneg %p39
      %p335 = scmp.lt.s32.totalorder %s21, 1
      %s336 = scalar_select %p335, %s21, 1
      %s337 = smul.addr %s336, 3
      %s338 = smul.addr %s337, 8
      %s339 = scalar_lea.vmem %s1, %s338
      %p340 = pneg %p68
      %p341 = pneg %p65
      %p342 = pneg %p89
      %p343 = pneg %p86
      %p344 = pneg %p110
      %p345 = pneg %p107
      %p346 = pneg %p131
      %p347 = pneg %p128
      %p348 = pneg %p152
      %p349 = pneg %p149
      %p350 = pneg %p173
      %p351 = pneg %p170
      %p352 = pneg %p194
      %p353 = pneg %p191
      %p354 = pneg %p215
      %p355 = pneg %p212
      %p356 = pneg %p236
      %p357 = pneg %p233
      %p358 = pneg %p262
      %p359 = pneg %p259
      %p360 = scmp.lt.s32.totalorder %s21, 1
      %s361 = scalar_select %p360, %s21, 1
      %s362 = smul.addr %s361, 3
      %s363 = smul.addr %s362, 8
      %s364 = scalar_lea.vmem %s10, %s363
      %p365 = scmp.lt.s32.totalorder %s21, 1
      %s366 = scalar_select %p365, %s21, 1
      %s367 = smul.addr %s366, 3
      %s368 = smul.addr %s367, 8
      %s369 = scalar_lea.vmem %s0, %s368
      %p370 = scmp.lt.s32.totalorder %s21, 1
      %s371 = scalar_select %p370, %s21, 1
      %s372 = smul.addr %s371, 3
      %s373 = smul.addr %s372, 8
      %s374 = scalar_lea.vmem %s1, %s373
      %p375 = scmp.lt.s32.totalorder %s21, 1
      %s376 = scalar_select %p375, %s21, 1
      %s377 = smul.addr %s376, 3
      %s378 = smul.addr %s377, 8
      %s379 = scalar_lea.vmem %s10, %s378
      %v380 = vld [vmem:[%s369] sm:$0xff]
      %v381 = vld [vmem:[%s369 + $0x8] sm:$0xff]
      %v382 = vld [vmem:[%s369 + $0x10] sm:$0xff]
      %v383 = vld [vmem:[%s374] sm:$0xff]
      %v384 = vld [vmem:[%s374 + $0x8] sm:$0xff]
      %v385 = vld [vmem:[%s374 + $0x10] sm:$0xff]
      %v386 = vld [vmem:[%s9] sm:$0x7]
      %v387 = vld [vmem:[%s2] sm:$0xff]
      %391 = vrot.lane.b32.xlu0 %v380, 19
      %v392 = vpop.permute.xlu0 %391
      %393 = vrot.lane.b32.xlu0 %v381, 19
      %v394 = vpop.permute.xlu0 %393
      %395 = vrot.lane.b32.xlu0 %v382, 19
      %v396 = vpop.permute.xlu0 %395
      %vm397 = vcmask 154624
      %v398 = vsel %vm397, %v392, %v394
      %v399 = vsel %vm397, %v394, %v396
      %v403 = vsel %vm397, 0.0, %v392
      %vm404 = vcmask 711680
      %v405 = vsel %vm404, %v399, 0.0
      %408 = vrot.lane.b32.xlu0 %v403, 127
      %v409 = vpop.permute.xlu0 %408
      %410 = vrot.lane.b32.xlu0 %v398, 127
      %v411 = vpop.permute.xlu0 %410
      %412 = vrot.lane.b32.xlu0 %v405, 127
      %v413 = vpop.permute.xlu0 %412
      %vm414 = vcmask 1039360
      %v415 = vsel %vm414, %v409, %v411
      %v416 = vsel %vm414, %v411, %v413
      %420 = vrot.lane.b32.xlu0 %v403, 126
      %v421 = vpop.permute.xlu0 %420
      %422 = vrot.lane.b32.xlu0 %v398, 126
      %v423 = vpop.permute.xlu0 %422
      %424 = vrot.lane.b32.xlu0 %v405, 126
      %v425 = vpop.permute.xlu0 %424
      %vm426 = vcmask 1031168
      %v427 = vsel %vm426, %v421, %v423
      %v428 = vsel %vm426, %v423, %v425
      %432 = vrot.lane.b32.xlu0 %v403, 110
      %v433 = vpop.permute.xlu0 %432
      %434 = vrot.lane.b32.xlu0 %v398, 110
      %v435 = vpop.permute.xlu0 %434
      %436 = vrot.lane.b32.xlu0 %v405, 110
      %v437 = vpop.permute.xlu0 %436
      %vm438 = vcmask 900096
      %v439 = vsel %vm438, %v433, %v435
      %v440 = vsel %vm438, %v435, %v437
      %444 = vrot.lane.b32.xlu0 %v403, 109
      %v445 = vpop.permute.xlu0 %444
      %446 = vrot.lane.b32.xlu0 %v398, 109
      %v447 = vpop.permute.xlu0 %446
      %448 = vrot.lane.b32.xlu0 %v405, 109
      %v449 = vpop.permute.xlu0 %448
      %vm450 = vcmask 891904
      %v451 = vsel %vm450, %v445, %v447
      %v452 = vsel %vm450, %v447, %v449
      %456 = vrot.lane.b32.xlu0 %v403, 108
      %v457 = vpop.permute.xlu0 %456
      %458 = vrot.lane.b32.xlu0 %v398, 108
      %v459 = vpop.permute.xlu0 %458
      %460 = vrot.lane.b32.xlu0 %v405, 108
      %v461 = vpop.permute.xlu0 %460
      %vm462 = vcmask 883712
      %v463 = vsel %vm462, %v457, %v459
      %v464 = vsel %vm462, %v459, %v461
      %468 = vrot.lane.b32.xlu0 %v403, 92
      %v469 = vpop.permute.xlu0 %468
      %470 = vrot.lane.b32.xlu0 %v398, 92
      %v471 = vpop.permute.xlu0 %470
      %472 = vrot.lane.b32.xlu0 %v405, 92
      %v473 = vpop.permute.xlu0 %472
      %vm474 = vcmask 752640
      %v475 = vsel %vm474, %v469, %v471
      %v476 = vsel %vm474, %v471, %v473
      %480 = vrot.lane.b32.xlu0 %v403, 91
      %v481 = vpop.permute.xlu0 %480
      %482 = vrot.lane.b32.xlu0 %v398, 91
      %v483 = vpop.permute.xlu0 %482
      %484 = vrot.lane.b32.xlu0 %v405, 91
      %v485 = vpop.permute.xlu0 %484
      %vm486 = vcmask 744448
      %v487 = vsel %vm486, %v481, %v483
      %v488 = vsel %vm486, %v483, %v485
      %492 = vrot.lane.b32.xlu0 %v403, 90
      %v493 = vpop.permute.xlu0 %492
      %494 = vrot.lane.b32.xlu0 %v398, 90
      %v495 = vpop.permute.xlu0 %494
      %496 = vrot.lane.b32.xlu0 %v405, 90
      %v497 = vpop.permute.xlu0 %496
      %vm498 = vcmask 736256
      %v499 = vsel %vm498, %v493, %v495
      %v500 = vsel %vm498, %v495, %v497
      %v504 = vld [vmem:[%s3] sm:$0xff]
      %508 = vrot.lane.b32.xlu0 %v383, 19
      %v509 = vpop.permute.xlu0 %508
      %510 = vrot.lane.b32.xlu0 %v384, 19
      %v511 = vpop.permute.xlu0 %510
      %512 = vrot.lane.b32.xlu0 %v385, 19
      %v513 = vpop.permute.xlu0 %512
      %v514 = vsel %vm397, %v509, %v511
      %v515 = vsel %vm397, %v511, %v513
      %v519 = vsel %vm397, 0.0, %v509
      %v520 = vsel %vm404, %v515, 0.0
      %523 = vrot.lane.b32.xlu0 %v519, 127
      %v524 = vpop.permute.xlu0 %523
      %525 = vrot.lane.b32.xlu0 %v514, 127
      %v526 = vpop.permute.xlu0 %525
      %527 = vrot.lane.b32.xlu0 %v520, 127
      %v528 = vpop.permute.xlu0 %527
      %v529 = vsel %vm414, %v524, %v526
      %v530 = vsel %vm414, %v526, %v528
      %534 = vrot.lane.b32.xlu0 %v519, 126
      %v535 = vpop.permute.xlu0 %534
      %536 = vrot.lane.b32.xlu0 %v514, 126
      %v537 = vpop.permute.xlu0 %536
      %538 = vrot.lane.b32.xlu0 %v520, 126
      %v539 = vpop.permute.xlu0 %538
      %v540 = vsel %vm426, %v535, %v537
      %v541 = vsel %vm426, %v537, %v539
      %545 = vrot.lane.b32.xlu0 %v519, 110
      %v546 = vpop.permute.xlu0 %545
      %547 = vrot.lane.b32.xlu0 %v514, 110
      %v548 = vpop.permute.xlu0 %547
      %549 = vrot.lane.b32.xlu0 %v520, 110
      %v550 = vpop.permute.xlu0 %549
      %v551 = vsel %vm438, %v546, %v548
      %v552 = vsel %vm438, %v548, %v550
      %556 = vrot.lane.b32.xlu0 %v519, 109
      %v557 = vpop.permute.xlu0 %556
      %558 = vrot.lane.b32.xlu0 %v514, 109
      %v559 = vpop.permute.xlu0 %558
      %560 = vrot.lane.b32.xlu0 %v520, 109
      %v561 = vpop.permute.xlu0 %560
      %v562 = vsel %vm450, %v557, %v559
      %v563 = vsel %vm450, %v559, %v561
      %567 = vrot.lane.b32.xlu0 %v519, 108
      %v568 = vpop.permute.xlu0 %567
      %569 = vrot.lane.b32.xlu0 %v514, 108
      %v570 = vpop.permute.xlu0 %569
      %571 = vrot.lane.b32.xlu0 %v520, 108
      %v572 = vpop.permute.xlu0 %571
      %v573 = vsel %vm462, %v568, %v570
      %v574 = vsel %vm462, %v570, %v572
      %578 = vrot.lane.b32.xlu0 %v519, 92
      %v579 = vpop.permute.xlu0 %578
      %580 = vrot.lane.b32.xlu0 %v514, 92
      %v581 = vpop.permute.xlu0 %580
      %582 = vrot.lane.b32.xlu0 %v520, 92
      %v583 = vpop.permute.xlu0 %582
      %v584 = vsel %vm474, %v579, %v581
      %v585 = vsel %vm474, %v581, %v583
      %589 = vrot.lane.b32.xlu0 %v519, 91
      %v590 = vpop.permute.xlu0 %589
      %591 = vrot.lane.b32.xlu0 %v514, 91
      %v592 = vpop.permute.xlu0 %591
      %593 = vrot.lane.b32.xlu0 %v520, 91
      %v594 = vpop.permute.xlu0 %593
      %v595 = vsel %vm486, %v590, %v592
      %v596 = vsel %vm486, %v592, %v594
      %600 = vrot.lane.b32.xlu0 %v519, 90
      %v601 = vpop.permute.xlu0 %600
      %602 = vrot.lane.b32.xlu0 %v514, 90
      %v603 = vpop.permute.xlu0 %602
      %604 = vrot.lane.b32.xlu0 %v520, 90
      %v605 = vpop.permute.xlu0 %604
      %v606 = vsel %vm498, %v601, %v603
      %v607 = vsel %vm498, %v603, %v605
      %vm611 = vcmask 588800
      %v613 = vsel %vm611, %v504, 0
      %615 = vmatprep.subr.mxu0 0.0
      %616 = vmatpush1.msra.mxu0 0.0
      %617 = vmatprep.subr.mxu0 0.0
      %618 = vmatpush1.msra.mxu0 0.0
      %619 = vmatprep.subr.mxu0 0.0
      %620 = vmatpush1.msra.mxu0 0.0
      %621 = vmatprep.subr.mxu0 0.0
      %622 = vmatpush1.msra.mxu0 0.0
      %623 = vmatprep.subr.mxu0 0.0
      %624 = vmatpush1.msra.mxu0 0.0
      %625 = vmatprep.subr.mxu0 0.0
      %626 = vmatpush1.msra.mxu0 0.0
      %627 = vmatprep.subr.mxu0 0.0
      %628 = vmatpush1.msra.mxu0 0.0
      %629 = vmatprep.subr.mxu0 %v607
      %630 = vmatpush1.msra.mxu0 %v606
      %631 = vmatprep.subr.mxu0 %v596
      %632 = vmatpush1.msra.mxu0 %v595
      %633 = vmatprep.subr.mxu0 %v585
      %634 = vmatpush1.msra.mxu0 %v584
      %635 = vmatprep.subr.mxu0 %v574
      %636 = vmatpush1.msra.mxu0 %v573
      %637 = vmatprep.subr.mxu0 %v563
      %638 = vmatpush1.msra.mxu0 %v562
      %639 = vmatprep.subr.mxu0 %v552
      %640 = vmatpush1.msra.mxu0 %v551
      %641 = vmatprep.subr.mxu0 %v541
      %642 = vmatpush1.msra.mxu0 %v540
      %643 = vmatprep.subr.mxu0 %v530
      %644 = vmatpush1.msra.mxu0 %v529
      %645 = vmatprep.subr.mxu0 %v514
      %646 = vmatpush1.msra.mxu0 %v519
      %647 = vmatprep.subr.mxu0 0.0
      %648 = vmatpush2.msra.mxu0 0.0
      %649 = vmatprep.subr.mxu0 0.0
      %650 = vmatpush2.msra.mxu0 0.0
      %651 = vmatprep.subr.mxu0 0.0
      %652 = vmatpush2.msra.mxu0 0.0
      %653 = vmatprep.subr.mxu0 0.0
      %654 = vmatpush2.msra.mxu0 0.0
      %655 = vmatprep.subr.mxu0 0.0
      %656 = vmatpush2.msra.mxu0 0.0
      %657 = vmatprep.subr.mxu0 0.0
      %658 = vmatpush2.msra.mxu0 0.0
      %659 = vmatprep.subr.mxu0 0.0
      %660 = vmatpush2.msra.mxu0 0.0
      %661 = vmatprep.subr.mxu0 0.0
      %662 = vmatpush2.msra.mxu0 0.0
      %663 = vmatprep.subr.mxu0 0.0
      %664 = vmatpush2.msra.mxu0 0.0
      %665 = vmatprep.subr.mxu0 0.0
      %666 = vmatpush2.msra.mxu0 0.0
      %667 = vmatprep.subr.mxu0 0.0
      %668 = vmatpush2.msra.mxu0 0.0
      %669 = vmatprep.subr.mxu0 0.0
      %670 = vmatpush2.msra.mxu0 0.0
      %671 = vmatprep.subr.mxu0 0.0
      %672 = vmatpush2.msra.mxu0 0.0
      %673 = vmatprep.subr.mxu0 0.0
      %674 = vmatpush2.msra.mxu0 0.0
      %675 = vmatprep.subr.mxu0 0.0
      %676 = vmatpush2.msra.mxu0 0.0
      %677 = vmatprep.subr.mxu0 0.0
      %678 = vmatpush2.msra.mxu0 0.0
      %679 = vmatprep.mubr.f32.mxu0 0.0
      %680 = vmatmul.mubr.f32.gmra.mxu0 %v613
      %v681 = vpop.f32.mrf.mxu0
      %v682 = vadd.f32 0.0, %v681
      %v683 = vpop.f32.mrf.mxu0
      %v684 = vadd.f32 0.0, %v683
      %685 = vdwg.mxu0
      %686 = vmatprep.subr.mxu0 0.0
      %687 = vmatpush1.msra.mxu0 0.0
      %688 = vmatprep.subr.mxu0 0.0
      %689 = vmatpush1.msra.mxu0 0.0
      %690 = vmatprep.subr.mxu0 0.0
      %691 = vmatpush1.msra.mxu0 0.0
      %692 = vmatprep.subr.mxu0 0.0
      %693 = vmatpush1.msra.mxu0 0.0
      %694 = vmatprep.subr.mxu0 0.0
      %695 = vmatpush1.msra.mxu0 0.0
      %696 = vmatprep.subr.mxu0 0.0
      %697 = vmatpush1.msra.mxu0 0.0
      %698 = vmatprep.subr.mxu0 0.0
      %699 = vmatpush1.msra.mxu0 0.0
      %700 = vmatprep.subr.mxu0 0.0
      %701 = vmatpush1.msra.mxu0 %v605
      %702 = vmatprep.subr.mxu0 0.0
      %703 = vmatpush1.msra.mxu0 %v594
      %704 = vmatprep.subr.mxu0 0.0
      %705 = vmatpush1.msra.mxu0 %v583
      %706 = vmatprep.subr.mxu0 0.0
      %707 = vmatpush1.msra.mxu0 %v572
      %708 = vmatprep.subr.mxu0 0.0
      %709 = vmatpush1.msra.mxu0 %v561
      %710 = vmatprep.subr.mxu0 0.0
      %711 = vmatpush1.msra.mxu0 %v550
      %712 = vmatprep.subr.mxu0 0.0
      %713 = vmatpush1.msra.mxu0 %v539
      %714 = vmatprep.subr.mxu0 0.0
      %715 = vmatpush1.msra.mxu0 %v528
      %716 = vmatprep.subr.mxu0 0.0
      %717 = vmatpush1.msra.mxu0 %v520
      %718 = vmatprep.subr.mxu0 0.0
      %719 = vmatpush2.msra.mxu0 0.0
      %720 = vmatprep.subr.mxu0 0.0
      %721 = vmatpush2.msra.mxu0 0.0
      %722 = vmatprep.subr.mxu0 0.0
      %723 = vmatpush2.msra.mxu0 0.0
      %724 = vmatprep.subr.mxu0 0.0
      %725 = vmatpush2.msra.mxu0 0.0
      %726 = vmatprep.subr.mxu0 0.0
      %727 = vmatpush2.msra.mxu0 0.0
      %728 = vmatprep.subr.mxu0 0.0
      %729 = vmatpush2.msra.mxu0 0.0
      %730 = vmatprep.subr.mxu0 0.0
      %731 = vmatpush2.msra.mxu0 0.0
      %732 = vmatprep.subr.mxu0 0.0
      %733 = vmatpush2.msra.mxu0 0.0
      %734 = vmatprep.subr.mxu0 0.0
      %735 = vmatpush2.msra.mxu0 0.0
      %736 = vmatprep.subr.mxu0 0.0
      %737 = vmatpush2.msra.mxu0 0.0
      %738 = vmatprep.subr.mxu0 0.0
      %739 = vmatpush2.msra.mxu0 0.0
      %740 = vmatprep.subr.mxu0 0.0
      %741 = vmatpush2.msra.mxu0 0.0
      %742 = vmatprep.subr.mxu0 0.0
      %743 = vmatpush2.msra.mxu0 0.0
      %744 = vmatprep.subr.mxu0 0.0
      %745 = vmatpush2.msra.mxu0 0.0
      %746 = vmatprep.subr.mxu0 0.0
      %747 = vmatpush2.msra.mxu0 0.0
      %748 = vmatprep.subr.mxu0 0.0
      %749 = vmatpush2.msra.mxu0 0.0
      %750 = vmatprep.mubr.f32.mxu0 0.0
      %751 = vmatmul.mubr.f32.gmra.mxu0 %v613
      %v752 = vpop.f32.mrf.mxu0
      %v753 = vadd.f32 0.0, %v752
      %v754 = vpop.f32.mrf.mxu0
      %755 = vdwg.mxu0
      %v757 = vsel %vm611, %v387, 0
      %759 = vmatprep.subr.mxu0 0.0
      %760 = vmatpush1.msra.mxu0 0.0
      %761 = vmatprep.subr.mxu0 0.0
      %762 = vmatpush1.msra.mxu0 0.0
      %763 = vmatprep.subr.mxu0 0.0
      %764 = vmatpush1.msra.mxu0 0.0
      %765 = vmatprep.subr.mxu0 0.0
      %766 = vmatpush1.msra.mxu0 0.0
      %767 = vmatprep.subr.mxu0 0.0
      %768 = vmatpush1.msra.mxu0 0.0
      %769 = vmatprep.subr.mxu0 0.0
      %770 = vmatpush1.msra.mxu0 0.0
      %771 = vmatprep.subr.mxu0 0.0
      %772 = vmatpush1.msra.mxu0 0.0
      %773 = vmatprep.subr.mxu0 %v500
      %774 = vmatpush1.msra.mxu0 %v499
      %775 = vmatprep.subr.mxu0 %v488
      %776 = vmatpush1.msra.mxu0 %v487
      %777 = vmatprep.subr.mxu0 %v476
      %778 = vmatpush1.msra.mxu0 %v475
      %779 = vmatprep.subr.mxu0 %v464
      %780 = vmatpush1.msra.mxu0 %v463
      %781 = vmatprep.subr.mxu0 %v452
      %782 = vmatpush1.msra.mxu0 %v451
      %783 = vmatprep.subr.mxu0 %v440
      %784 = vmatpush1.msra.mxu0 %v439
      %785 = vmatprep.subr.mxu0 %v428
      %786 = vmatpush1.msra.mxu0 %v427
      %787 = vmatprep.subr.mxu0 %v416
      %788 = vmatpush1.msra.mxu0 %v415
      %789 = vmatprep.subr.mxu0 %v398
      %790 = vmatpush1.msra.mxu0 %v403
      %791 = vmatprep.subr.mxu0 0.0
      %792 = vmatpush2.msra.mxu0 0.0
      %793 = vmatprep.subr.mxu0 0.0
      %794 = vmatpush2.msra.mxu0 0.0
      %795 = vmatprep.subr.mxu0 0.0
      %796 = vmatpush2.msra.mxu0 0.0
      %797 = vmatprep.subr.mxu0 0.0
      %798 = vmatpush2.msra.mxu0 0.0
      %799 = vmatprep.subr.mxu0 0.0
      %800 = vmatpush2.msra.mxu0 0.0
      %801 = vmatprep.subr.mxu0 0.0
      %802 = vmatpush2.msra.mxu0 0.0
      %803 = vmatprep.subr.mxu0 0.0
      %804 = vmatpush2.msra.mxu0 0.0
      %805 = vmatprep.subr.mxu0 0.0
      %806 = vmatpush2.msra.mxu0 0.0
      %807 = vmatprep.subr.mxu0 0.0
      %808 = vmatpush2.msra.mxu0 0.0
      %809 = vmatprep.subr.mxu0 0.0
      %810 = vmatpush2.msra.mxu0 0.0
      %811 = vmatprep.subr.mxu0 0.0
      %812 = vmatpush2.msra.mxu0 0.0
      %813 = vmatprep.subr.mxu0 0.0
      %814 = vmatpush2.msra.mxu0 0.0
      %815 = vmatprep.subr.mxu0 0.0
      %816 = vmatpush2.msra.mxu0 0.0
      %817 = vmatprep.subr.mxu0 0.0
      %818 = vmatpush2.msra.mxu0 0.0
      %819 = vmatprep.subr.mxu0 0.0
      %820 = vmatpush2.msra.mxu0 0.0
      %821 = vmatprep.subr.mxu0 0.0
      %822 = vmatpush2.msra.mxu0 0.0
      %823 = vmatprep.mubr.f32.mxu0 0.0
      %824 = vmatmul.mubr.f32.gmra.mxu0 %v757
      %v825 = vpop.f32.mrf.mxu0
      %v826 = vadd.f32 %v682, %v825
      %v827 = vpop.f32.mrf.mxu0
      %v828 = vadd.f32 %v684, %v827
      %829 = vdwg.mxu0
      %830 = vmatprep.subr.mxu0 0.0
      %831 = vmatpush1.msra.mxu0 0.0
      %832 = vmatprep.subr.mxu0 0.0
      %833 = vmatpush1.msra.mxu0 0.0
      %834 = vmatprep.subr.mxu0 0.0
      %835 = vmatpush1.msra.mxu0 0.0
      %836 = vmatprep.subr.mxu0 0.0
      %837 = vmatpush1.msra.mxu0 0.0
      %838 = vmatprep.subr.mxu0 0.0
      %839 = vmatpush1.msra.mxu0 0.0
      %840 = vmatprep.subr.mxu0 0.0
      %841 = vmatpush1.msra.mxu0 0.0
      %842 = vmatprep.subr.mxu0 0.0
      %843 = vmatpush1.msra.mxu0 0.0
      %844 = vmatprep.subr.mxu0 0.0
      %845 = vmatpush1.msra.mxu0 %v497
      %846 = vmatprep.subr.mxu0 0.0
      %847 = vmatpush1.msra.mxu0 %v485
      %848 = vmatprep.subr.mxu0 0.0
      %849 = vmatpush1.msra.mxu0 %v473
      %850 = vmatprep.subr.mxu0 0.0
      %851 = vmatpush1.msra.mxu0 %v461
      %852 = vmatprep.subr.mxu0 0.0
      %853 = vmatpush1.msra.mxu0 %v449
      %854 = vmatprep.subr.mxu0 0.0
      %855 = vmatpush1.msra.mxu0 %v437
      %856 = vmatprep.subr.mxu0 0.0
      %857 = vmatpush1.msra.mxu0 %v425
      %858 = vmatprep.subr.mxu0 0.0
      %859 = vmatpush1.msra.mxu0 %v413
      %860 = vmatprep.subr.mxu0 0.0
      %861 = vmatpush1.msra.mxu0 %v405
      %862 = vmatprep.subr.mxu0 0.0
      %863 = vmatpush2.msra.mxu0 0.0
      %864 = vmatprep.subr.mxu0 0.0
      %865 = vmatpush2.msra.mxu0 0.0
      %866 = vmatprep.subr.mxu0 0.0
      %867 = vmatpush2.msra.mxu0 0.0
      %868 = vmatprep.subr.mxu0 0.0
      %869 = vmatpush2.msra.mxu0 0.0
      %870 = vmatprep.subr.mxu0 0.0
      %871 = vmatpush2.msra.mxu0 0.0
      %872 = vmatprep.subr.mxu0 0.0
      %873 = vmatpush2.msra.mxu0 0.0
      %874 = vmatprep.subr.mxu0 0.0
      %875 = vmatpush2.msra.mxu0 0.0
      %876 = vmatprep.subr.mxu0 0.0
      %877 = vmatpush2.msra.mxu0 0.0
      %878 = vmatprep.subr.mxu0 0.0
      %879 = vmatpush2.msra.mxu0 0.0
      %880 = vmatprep.subr.mxu0 0.0
      %881 = vmatpush2.msra.mxu0 0.0
      %882 = vmatprep.subr.mxu0 0.0
      %883 = vmatpush2.msra.mxu0 0.0
      %884 = vmatprep.subr.mxu0 0.0
      %885 = vmatpush2.msra.mxu0 0.0
      %886 = vmatprep.subr.mxu0 0.0
      %887 = vmatpush2.msra.mxu0 0.0
      %888 = vmatprep.subr.mxu0 0.0
      %889 = vmatpush2.msra.mxu0 0.0
      %890 = vmatprep.subr.mxu0 0.0
      %891 = vmatpush2.msra.mxu0 0.0
      %892 = vmatprep.subr.mxu0 0.0
      %893 = vmatpush2.msra.mxu0 0.0
      %894 = vmatprep.mubr.f32.mxu0 0.0
      %895 = vmatmul.mubr.f32.gmra.mxu0 %v757
      %v896 = vpop.f32.mrf.mxu0
      %v897 = vadd.f32 %v753, %v896
      %v898 = vpop.f32.mrf.mxu0
      %899 = vdwg.mxu0
      %v900 = vld [vmem:[%s4] sm:$0xff]
      %v901 = vld [vmem:[%s5] sm:$0xff]
      %903 = vset.pattern.permute.xlu0 0
      %904 = vperm.xlu0 %903, %v900
      %v905 = vpop.permute.xlu0 %904
      %v907 = vmul.f32 %v826, %v905
      %v908 = vmul.f32 %v828, %v905
      %v909 = vmul.f32 %v897, %v905
      %911 = vset.pattern.permute.xlu0 0
      %912 = vperm.xlu0 %911, %v901
      %v913 = vpop.permute.xlu0 %912
      %v915 = vadd.f32 %v907, %v913
      %v916 = vadd.f32 %v908, %v913
      %v917 = vadd.f32 %v909, %v913
      %v918 = vmax.f32 %v915, 0.0
      %v919 = vmax.f32 %v916, 0.0
      %v920 = vmax.f32 %v917, 0.0
      %v922 = vlaneseq
      %v923 = vshrl.u32 %v922, 7
      %v924 = vsub.s32 0, %v923
      %v925 = vrot.slane %v386, %v924
      %v926 = vlaneseq
      %v927 = vshrl.u32 %v926, 7
      %v928 = vsub.s32 1, %v927
      %v929 = vrot.slane %v386, %v928
      %v930 = vlaneseq
      %v931 = vshrl.u32 %v930, 7
      %v932 = vsub.s32 2, %v931
      %v933 = vrot.slane %v386, %v932
      %v937 = vmul.f32 %v918, %v925
      %v938 = vmul.f32 %v919, %v929
      %v939 = vmul.f32 %v920, %v933
      %v940 = vld [vmem:[%s6] sm:$0xff]
      %944 = vrot.lane.b32.xlu0 %v937, 19
      %v945 = vpop.permute.xlu0 %944
      %946 = vrot.lane.b32.xlu0 %v938, 19
      %v947 = vpop.permute.xlu0 %946
      %948 = vrot.lane.b32.xlu0 %v939, 19
      %v949 = vpop.permute.xlu0 %948
      %v950 = vsel %vm397, %v945, %v947
      %v951 = vsel %vm397, %v947, %v949
      %v955 = vsel %vm397, 0.0, %v945
      %v956 = vsel %vm404, %v951, 0.0
      %959 = vrot.lane.b32.xlu0 %v955, 127
      %v960 = vpop.permute.xlu0 %959
      %961 = vrot.lane.b32.xlu0 %v950, 127
      %v962 = vpop.permute.xlu0 %961
      %963 = vrot.lane.b32.xlu0 %v956, 127
      %v964 = vpop.permute.xlu0 %963
      %v965 = vsel %vm414, %v960, %v962
      %v966 = vsel %vm414, %v962, %v964
      %970 = vrot.lane.b32.xlu0 %v955, 126
      %v971 = vpop.permute.xlu0 %970
      %972 = vrot.lane.b32.xlu0 %v950, 126
      %v973 = vpop.permute.xlu0 %972
      %974 = vrot.lane.b32.xlu0 %v956, 126
      %v975 = vpop.permute.xlu0 %974
      %v976 = vsel %vm426, %v971, %v973
      %v977 = vsel %vm426, %v973, %v975
      %981 = vrot.lane.b32.xlu0 %v955, 110
      %v982 = vpop.permute.xlu0 %981
      %983 = vrot.lane.b32.xlu0 %v950, 110
      %v984 = vpop.permute.xlu0 %983
      %985 = vrot.lane.b32.xlu0 %v956, 110
      %v986 = vpop.permute.xlu0 %985
      %v987 = vsel %vm438, %v982, %v984
      %v988 = vsel %vm438, %v984, %v986
      %992 = vrot.lane.b32.xlu0 %v955, 109
      %v993 = vpop.permute.xlu0 %992
      %994 = vrot.lane.b32.xlu0 %v950, 109
      %v995 = vpop.permute.xlu0 %994
      %996 = vrot.lane.b32.xlu0 %v956, 109
      %v997 = vpop.permute.xlu0 %996
      %v998 = vsel %vm450, %v993, %v995
      %v999 = vsel %vm450, %v995, %v997
      %1003 = vrot.lane.b32.xlu0 %v955, 108
      %v1004 = vpop.permute.xlu0 %1003
      %1005 = vrot.lane.b32.xlu0 %v950, 108
      %v1006 = vpop.permute.xlu0 %1005
      %1007 = vrot.lane.b32.xlu0 %v956, 108
      %v1008 = vpop.permute.xlu0 %1007
      %v1009 = vsel %vm462, %v1004, %v1006
      %v1010 = vsel %vm462, %v1006, %v1008
      %1014 = vrot.lane.b32.xlu0 %v955, 92
      %v1015 = vpop.permute.xlu0 %1014
      %1016 = vrot.lane.b32.xlu0 %v950, 92
      %v1017 = vpop.permute.xlu0 %1016
      %1018 = vrot.lane.b32.xlu0 %v956, 92
      %v1019 = vpop.permute.xlu0 %1018
      %v1020 = vsel %vm474, %v1015, %v1017
      %v1021 = vsel %vm474, %v1017, %v1019
      %1025 = vrot.lane.b32.xlu0 %v955, 91
      %v1026 = vpop.permute.xlu0 %1025
      %1027 = vrot.lane.b32.xlu0 %v950, 91
      %v1028 = vpop.permute.xlu0 %1027
      %1029 = vrot.lane.b32.xlu0 %v956, 91
      %v1030 = vpop.permute.xlu0 %1029
      %v1031 = vsel %vm486, %v1026, %v1028
      %v1032 = vsel %vm486, %v1028, %v1030
      %1036 = vrot.lane.b32.xlu0 %v955, 90
      %v1037 = vpop.permute.xlu0 %1036
      %1038 = vrot.lane.b32.xlu0 %v950, 90
      %v1039 = vpop.permute.xlu0 %1038
      %1040 = vrot.lane.b32.xlu0 %v956, 90
      %v1041 = vpop.permute.xlu0 %1040
      %v1042 = vsel %vm498, %v1037, %v1039
      %v1043 = vsel %vm498, %v1039, %v1041
      %v1048 = vsel %vm611, %v940, 0
      %1050 = vmatprep.subr.mxu0 0.0
      %1051 = vmatpush1.msra.mxu0 0.0
      %1052 = vmatprep.subr.mxu0 0.0
      %1053 = vmatpush1.msra.mxu0 0.0
      %1054 = vmatprep.subr.mxu0 0.0
      %1055 = vmatpush1.msra.mxu0 0.0
      %1056 = vmatprep.subr.mxu0 0.0
      %1057 = vmatpush1.msra.mxu0 0.0
      %1058 = vmatprep.subr.mxu0 0.0
      %1059 = vmatpush1.msra.mxu0 0.0
      %1060 = vmatprep.subr.mxu0 0.0
      %1061 = vmatpush1.msra.mxu0 0.0
      %1062 = vmatprep.subr.mxu0 0.0
      %1063 = vmatpush1.msra.mxu0 0.0
      %1064 = vmatprep.subr.mxu0 %v1043
      %1065 = vmatpush1.msra.mxu0 %v1042
      %1066 = vmatprep.subr.mxu0 %v1032
      %1067 = vmatpush1.msra.mxu0 %v1031
      %1068 = vmatprep.subr.mxu0 %v1021
      %1069 = vmatpush1.msra.mxu0 %v1020
      %1070 = vmatprep.subr.mxu0 %v1010
      %1071 = vmatpush1.msra.mxu0 %v1009
      %1072 = vmatprep.subr.mxu0 %v999
      %1073 = vmatpush1.msra.mxu0 %v998
      %1074 = vmatprep.subr.mxu0 %v988
      %1075 = vmatpush1.msra.mxu0 %v987
      %1076 = vmatprep.subr.mxu0 %v977
      %1077 = vmatpush1.msra.mxu0 %v976
      %1078 = vmatprep.subr.mxu0 %v966
      %1079 = vmatpush1.msra.mxu0 %v965
      %1080 = vmatprep.subr.mxu0 %v950
      %1081 = vmatpush1.msra.mxu0 %v955
      %1082 = vmatprep.subr.mxu0 0.0
      %1083 = vmatpush2.msra.mxu0 0.0
      %1084 = vmatprep.subr.mxu0 0.0
      %1085 = vmatpush2.msra.mxu0 0.0
      %1086 = vmatprep.subr.mxu0 0.0
      %1087 = vmatpush2.msra.mxu0 0.0
      %1088 = vmatprep.subr.mxu0 0.0
      %1089 = vmatpush2.msra.mxu0 0.0
      %1090 = vmatprep.subr.mxu0 0.0
      %1091 = vmatpush2.msra.mxu0 0.0
      %1092 = vmatprep.subr.mxu0 0.0
      %1093 = vmatpush2.msra.mxu0 0.0
      %1094 = vmatprep.subr.mxu0 0.0
      %1095 = vmatpush2.msra.mxu0 0.0
      %1096 = vmatprep.subr.mxu0 0.0
      %1097 = vmatpush2.msra.mxu0 0.0
      %1098 = vmatprep.subr.mxu0 0.0
      %1099 = vmatpush2.msra.mxu0 0.0
      %1100 = vmatprep.subr.mxu0 0.0
      %1101 = vmatpush2.msra.mxu0 0.0
      %1102 = vmatprep.subr.mxu0 0.0
      %1103 = vmatpush2.msra.mxu0 0.0
      %1104 = vmatprep.subr.mxu0 0.0
      %1105 = vmatpush2.msra.mxu0 0.0
      %1106 = vmatprep.subr.mxu0 0.0
      %1107 = vmatpush2.msra.mxu0 0.0
      %1108 = vmatprep.subr.mxu0 0.0
      %1109 = vmatpush2.msra.mxu0 0.0
      %1110 = vmatprep.subr.mxu0 0.0
      %1111 = vmatpush2.msra.mxu0 0.0
      %1112 = vmatprep.subr.mxu0 0.0
      %1113 = vmatpush2.msra.mxu0 0.0
      %1114 = vmatprep.mubr.f32.mxu0 0.0
      %1115 = vmatmul.mubr.f32.gmra.mxu0 %v1048
      %v1116 = vpop.f32.mrf.mxu0
      %v1117 = vadd.f32 0.0, %v1116
      %v1118 = vpop.f32.mrf.mxu0
      %v1119 = vadd.f32 0.0, %v1118
      %1120 = vdwg.mxu0
      %1121 = vmatprep.subr.mxu0 0.0
      %1122 = vmatpush1.msra.mxu0 0.0
      %1123 = vmatprep.subr.mxu0 0.0
      %1124 = vmatpush1.msra.mxu0 0.0
      %1125 = vmatprep.subr.mxu0 0.0
      %1126 = vmatpush1.msra.mxu0 0.0
      %1127 = vmatprep.subr.mxu0 0.0
      %1128 = vmatpush1.msra.mxu0 0.0
      %1129 = vmatprep.subr.mxu0 0.0
      %1130 = vmatpush1.msra.mxu0 0.0
      %1131 = vmatprep.subr.mxu0 0.0
      %1132 = vmatpush1.msra.mxu0 0.0
      %1133 = vmatprep.subr.mxu0 0.0
      %1134 = vmatpush1.msra.mxu0 0.0
      %1135 = vmatprep.subr.mxu0 0.0
      %1136 = vmatpush1.msra.mxu0 %v1041
      %1137 = vmatprep.subr.mxu0 0.0
      %1138 = vmatpush1.msra.mxu0 %v1030
      %1139 = vmatprep.subr.mxu0 0.0
      %1140 = vmatpush1.msra.mxu0 %v1019
      %1141 = vmatprep.subr.mxu0 0.0
      %1142 = vmatpush1.msra.mxu0 %v1008
      %1143 = vmatprep.subr.mxu0 0.0
      %1144 = vmatpush1.msra.mxu0 %v997
      %1145 = vmatprep.subr.mxu0 0.0
      %1146 = vmatpush1.msra.mxu0 %v986
      %1147 = vmatprep.subr.mxu0 0.0
      %1148 = vmatpush1.msra.mxu0 %v975
      %1149 = vmatprep.subr.mxu0 0.0
      %1150 = vmatpush1.msra.mxu0 %v964
      %1151 = vmatprep.subr.mxu0 0.0
      %1152 = vmatpush1.msra.mxu0 %v956
      %1153 = vmatprep.subr.mxu0 0.0
      %1154 = vmatpush2.msra.mxu0 0.0
      %1155 = vmatprep.subr.mxu0 0.0
      %1156 = vmatpush2.msra.mxu0 0.0
      %1157 = vmatprep.subr.mxu0 0.0
      %1158 = vmatpush2.msra.mxu0 0.0
      %1159 = vmatprep.subr.mxu0 0.0
      %1160 = vmatpush2.msra.mxu0 0.0
      %1161 = vmatprep.subr.mxu0 0.0
      %1162 = vmatpush2.msra.mxu0 0.0
      %1163 = vmatprep.subr.mxu0 0.0
      %1164 = vmatpush2.msra.mxu0 0.0
      %1165 = vmatprep.subr.mxu0 0.0
      %1166 = vmatpush2.msra.mxu0 0.0
      %1167 = vmatprep.subr.mxu0 0.0
      %1168 = vmatpush2.msra.mxu0 0.0
      %1169 = vmatprep.subr.mxu0 0.0
      %1170 = vmatpush2.msra.mxu0 0.0
      %1171 = vmatprep.subr.mxu0 0.0
      %1172 = vmatpush2.msra.mxu0 0.0
      %1173 = vmatprep.subr.mxu0 0.0
      %1174 = vmatpush2.msra.mxu0 0.0
      %1175 = vmatprep.subr.mxu0 0.0
      %1176 = vmatpush2.msra.mxu0 0.0
      %1177 = vmatprep.subr.mxu0 0.0
      %1178 = vmatpush2.msra.mxu0 0.0
      %1179 = vmatprep.subr.mxu0 0.0
      %1180 = vmatpush2.msra.mxu0 0.0
      %1181 = vmatprep.subr.mxu0 0.0
      %1182 = vmatpush2.msra.mxu0 0.0
      %1183 = vmatprep.subr.mxu0 0.0
      %1184 = vmatpush2.msra.mxu0 0.0
      %1185 = vmatprep.mubr.f32.mxu0 0.0
      %1186 = vmatmul.mubr.f32.gmra.mxu0 %v1048
      %v1187 = vpop.f32.mrf.mxu0
      %v1188 = vadd.f32 0.0, %v1187
      %v1189 = vpop.f32.mrf.mxu0
      %1190 = vdwg.mxu0
      %v1191 = vld [vmem:[%s7] sm:$0xff]
      %v1192 = vld [vmem:[%s8] sm:$0xff]
      %1194 = vset.pattern.permute.xlu0 0
      %1195 = vperm.xlu0 %1194, %v1191
      %v1196 = vpop.permute.xlu0 %1195
      %v1198 = vmul.f32 %v1117, %v1196
      %v1199 = vmul.f32 %v1119, %v1196
      %v1200 = vmul.f32 %v1188, %v1196
      %1202 = vset.pattern.permute.xlu0 0
      %1203 = vperm.xlu0 %1202, %v1192
      %v1204 = vpop.permute.xlu0 %1203
      %v1206 = vadd.f32 %v1198, %v1204
      %v1207 = vadd.f32 %v1199, %v1204
      %v1208 = vadd.f32 %v1200, %v1204
      %v1209 = vmax.f32 %v1206, 0.0
      %v1210 = vmax.f32 %v1207, 0.0
      %v1211 = vmax.f32 %v1208, 0.0
      %v1212 = vmul.f32 %v1209, %v925
      %v1213 = vmul.f32 %v1210, %v929
      %v1214 = vmul.f32 %v1211, %v933
      %1215 = vst [vmem:[%s379] sm:$0xff] %v1212
      %1216 = vst [vmem:[%s379 + $0x8] sm:$0xff] %v1213
      %vm1217 = vcmask 556032
      %1218 = vst.msk [vmem:[%s379 + $0x10] sm:$0xff] %vm1217, %v1214
      %p1219 = scmp.lt.s32.totalorder %s21, 1
      %s1220 = scalar_select %p1219, %s21, 1
      %s1221 = smul.addr %s1220, 3
      %s1222 = smul.addr %s1221, 8
      %s1223 = scalar_lea.vmem %s10, %s1222
      // Predicated region
      $region61: #{_lambda_.7} parent=59 // pred_check
        %p1224 = pneg %p259
      $region62: #{_lambda_.7} parent=59 // pred_check_branch
        %1226 = sbr.rel (%p1224) target = $region64
      $region63: #{_lambda_.7} parent=59 // pred_region
        _
      $region64: #{_lambda_.7} parent=59 // pred_fallthru
        _
    $region60: #{_lambda_.7} parent=5 // pred_fallthru
      _
    %p1227 = scmp.le.s32.totalorder 2, %s16
    // Predicated region
    $region65: #{_lambda_.7} parent=5 // pred_check
      %p1228 = pneg %p1227
    $region66: #{_lambda_.7} parent=5 // pred_check_branch
      %1230 = sbr.rel (%p1228) target = $region68
    $region67: #{_lambda_.7} parent=5 // pred_region
      %s1231 = ssub.s32 %s16, 2
      // Predicated region
      $region69: #{_lambda_.7} parent=67 // pred_check
        %p1232 = pneg %p265
      $region70: #{_lambda_.7} parent=67 // pred_check_branch
        %1234 = sbr.rel (%p1232) target = $region72
      $region71: #{_lambda_.7} parent=67 // pred_region
        %p1235 = scmp.lt.s32.totalorder %s22, 1
        %s1236 = scalar_select %p1235, %s22, 1
        %s1237 = smul.addr %s1236, 3
        %s1238 = smul.addr %s1237, 8
        %s1239 = scalar_lea.vmem %s10, %s1238
      $region72: #{_lambda_.7} parent=67 // pred_fallthru
        _
    $region68: #{_lambda_.7} parent=5 // pred_fallthru
      _
  $region6: #{_lambda_.7} parent=0 // loop_footer
    %s20 = sadd.s32 1, %s16
  $region7: #{_lambda_.7} parent=0 // loop_footer_branch
    %15 = sbr.rel target = $region3
  $region8: #{_lambda_.7} parent=0 // loop_exit
    _

</llo_original>
